<compile_context>
chip_gen: v5e
topology: v5e:2x2
jax: 0.10.0
libtpu: 0.0.40
codegen_flags: <defaults>
</compile_context>

<pallas_src>
import functools

import jax
import jax.numpy as jnp
from jax.experimental import pallas as pl
from jax.experimental.pallas import tpu as pltpu


# ----------------------------------------------------------------------------
# Fused forward-pass kernel (single invocation, everything VMEM-resident)
# ----------------------------------------------------------------------------

def _fused_decoder_kernel(
    z_ref, mem_ref,
    emb_w_ref, emb_b_ref,
    sa_qkv_w_ref, sa_qkv_b_ref, sa_out_w_ref, sa_out_b_ref,
    ca_qkv_w_ref, ca_qkv_b_ref, ca_out_w_ref, ca_out_b_ref,
    n1_g_ref, n1_b_ref, n2_g_ref, n2_b_ref, n3_g_ref, n3_b_ref,
    ff1_w_ref, ff1_b_ref, ff2_w_ref, ff2_b_ref,
    out_w_ref, out_b_ref,
    o_ref,
    *, num_heads, batch, eps):
    E = emb_w_ref.shape[1]
    H = num_heads
    Dh = E // H
    L = sa_qkv_w_ref.shape[0]

    def layer_norm_res(x, res, g, b):
        # residual add fused into the LayerNorm; mean and mean-of-squares are
        # independent cross-lane reductions (var = E[v^2] - mu^2, biased,
        # eps inside rsqrt) -> matches PyTorch LayerNorm numerics.
        v = x + res
        mu = jnp.mean(v, axis=-1, keepdims=True)
        ms = jnp.mean(v * v, axis=-1, keepdims=True)
        var = ms - mu * mu
        return (v - mu) * jax.lax.rsqrt(var + eps) * g + b

    def softmax(s):
        m = jnp.max(s, axis=-1, keepdims=True)
        p = jnp.exp(s - m)
        return p * pl.reciprocal(jnp.sum(p, axis=-1, keepdims=True), approx=True)

    def mha(q, k, v, out_w, out_b):
        # q: (B*Sq, E), k/v: (B*Skv, E).  One Dh lane-slice per head, then a
        # cheap leading-dim reshape keeps batches separate through a batched
        # dot_general.  1/sqrt(Dh) is already folded into the Q projection.
        sq = q.shape[0] // batch
        skv = k.shape[0] // batch
        heads = []
        for h in range(H):
            sl = slice(h * Dh, (h + 1) * Dh)
            qh = q[:, sl].reshape(batch, sq, Dh)
            kh = k[:, sl].reshape(batch, skv, Dh)
            vh = v[:, sl].reshape(batch, skv, Dh)
            s = jax.lax.dot_general(qh, kh, (((2,), (2,)), ((0,), (0,))),
                                    preferred_element_type=jnp.float32)   # (B, Sq, Skv)
            p = softmax(s)
            oh = jax.lax.dot_general(p, vh, (((2,), (1,)), ((0,), (0,))),
                                     preferred_element_type=jnp.float32)  # (B, Sq, Dh)
            heads.append(oh.reshape(batch * sq, Dh))
        # merged output projection: concat the per-head context tiles along the
        # lane axis (XLU shifts, which have slack) and do a single matmul.
        ctx = jnp.concatenate(heads, axis=-1)                              # (B*Sq, E)
        return jnp.dot(ctx, out_w, preferred_element_type=jnp.float32) + out_b

    # ---- shared embedding for target and memory (batched over all rows) ----
    emb_w = emb_w_ref[...]
    emb_b = emb_b_ref[...]
    x = jnp.dot(z_ref[...], emb_w, preferred_element_type=jnp.float32) + emb_b     # (B*Sz, E)
    mem = jnp.dot(mem_ref[...], emb_w, preferred_element_type=jnp.float32) + emb_b # (B*Sm, E)

    # ---- num_layers post-LN decoder layers (static Python unroll, L is tiny) ----
    for l in range(L):
        # self-attention: Q/K/V split is a leading-axis index, no lane slices
        q = jnp.dot(x, sa_qkv_w_ref[l, 0],
                    preferred_element_type=jnp.float32) + sa_qkv_b_ref[l, 0]
        k = jnp.dot(x, sa_qkv_w_ref[l, 1],
                    preferred_element_type=jnp.float32) + sa_qkv_b_ref[l, 1]
        v = jnp.dot(x, sa_qkv_w_ref[l, 2],
                    preferred_element_type=jnp.float32) + sa_qkv_b_ref[l, 2]
        sa = mha(q, k, v, sa_out_w_ref[l], sa_out_b_ref[l])
        x = layer_norm_res(x, sa, n1_g_ref[l], n1_b_ref[l])

        # cross-attention: Q from x, K/V from memory
        q = jnp.dot(x, ca_qkv_w_ref[l, 0],
                    preferred_element_type=jnp.float32) + ca_qkv_b_ref[l, 0]
        k = jnp.dot(mem, ca_qkv_w_ref[l, 1],
                    preferred_element_type=jnp.float32) + ca_qkv_b_ref[l, 1]
        v = jnp.dot(mem, ca_qkv_w_ref[l, 2],
                    preferred_element_type=jnp.float32) + ca_qkv_b_ref[l, 2]
        ca = mha(q, k, v, ca_out_w_ref[l], ca_out_b_ref[l])
        x = layer_norm_res(x, ca, n2_g_ref[l], n2_b_ref[l])

        # feed-forward (relu)
        h1 = jnp.dot(x, ff1_w_ref[l], preferred_element_type=jnp.float32) + ff1_b_ref[l]
        h1 = jnp.maximum(h1, 0.0)
        h2 = jnp.dot(h1, ff2_w_ref[l], preferred_element_type=jnp.float32) + ff2_b_ref[l]
        x = layer_norm_res(x, h2, n3_g_ref[l], n3_b_ref[l])

    # ---- output head + sigmoid (exp on EUP + approx reciprocal) ----
    logits = jnp.dot(x, out_w_ref[...],
                     preferred_element_type=jnp.float32) + out_b_ref[...]
    o_ref[...] = pl.reciprocal(1.0 + jnp.exp(-logits), approx=True).astype(o_ref.dtype)


# ----------------------------------------------------------------------------
# Wrapper: one pallas_call, no grid (single step), all operands in VMEM
# ----------------------------------------------------------------------------

def attention_decoder_forward(z, memory, params, num_heads):
    """z: (B, S_tgt, input_dim), memory: (B, S_mem, input_dim) -> (B, S_tgt, output_dim)."""
    B, Sz, Din = z.shape
    Sm = memory.shape[1]
    E = params["emb_w"].shape[1]
    Dout = params["out_w"].shape[1]
    L = params["sa_qkv_w"].shape[0]
    F = params["ff1_w"].shape[2]

    inputs = (
        z.reshape(B * Sz, Din), memory.reshape(B * Sm, Din),
        params["emb_w"], params["emb_b"],
        params["sa_qkv_w"], params["sa_qkv_b"],
        params["sa_out_w"], params["sa_out_b"],
        params["ca_qkv_w"], params["ca_qkv_b"],
        params["ca_out_w"], params["ca_out_b"],
        params["n1_g"], params["n1_b"],
        params["n2_g"], params["n2_b"],
        params["n3_g"], params["n3_b"],
        params["ff1_w"], params["ff1_b"],
        params["ff2_w"], params["ff2_b"],
        params["out_w"], params["out_b"],
    )

    vmem_spec = pl.BlockSpec(memory_space=pltpu.MemorySpace.VMEM)

    # advisory cost estimate for the XLA scheduler
    R, Rm = B * Sz, B * Sm
    mm = lambda m, k, n: 2 * m * k * n
    attn = lambda skv: B * 4 * Sz * skv * E               # scores + PV over all heads
    flops = (mm(R + Rm, Din, E)
             + L * (4 * mm(R, E, E) + attn(Sz)             # self-attn QKV + out-proj
                    + 2 * mm(R, E, E) + 2 * mm(Rm, E, E) + attn(Sm)   # cross-attn
                    + mm(R, E, F) + mm(R, F, E))           # FFN
             + mm(R, E, Dout))
    transcendentals = (L * B * num_heads * Sz * (Sz + Sm) + 3 * L * R + R * Dout)
    bytes_accessed = sum(int(a.size) * 4 for a in inputs) + R * Dout * 4
    cost = pl.CostEstimate(flops=flops, transcendentals=transcendentals,
                           bytes_accessed=bytes_accessed)

    kernel = functools.partial(_fused_decoder_kernel,
                               num_heads=num_heads, batch=B, eps=1e-5)

    out = pl.pallas_call(
        kernel,
        out_shape=jax.ShapeDtypeStruct((B * Sz, Dout), z.dtype),
        in_specs=[vmem_spec] * len(inputs),
        out_specs=vmem_spec,
        cost_estimate=cost,
    )(*inputs)
    return out.reshape(B, Sz, Dout)


# ----------------------------------------------------------------------------
# Deterministic parameter init in kernel layout:
#   * weights pre-transposed to (Din, Dout) and stacked over layers,
#   * Q/K/V stacked along a leading axis (L, 3, E, E) -> leading-index split,
#   * 1/sqrt(Dh) attention scale pre-folded into the Q projection.
# (This is the one-time transform a PyTorch-weight converter would apply.)
# ----------------------------------------------------------------------------

def init_params(key, input_dim, output_dim, num_heads, num_layers, ff_dim):
    E = ff_dim
    F = ff_dim                      # dim_feedforward == ff_dim in the module
    Dh = E // num_heads
    scale = 1.0 / (Dh ** 0.5)
    keys = iter(jax.random.split(key, 32))

    def w(shape, s=0.05):
        return s * jax.random.normal(next(keys), shape, jnp.float32)

    def stack(shape):
        return w((num_layers,) + shape)

    def fold_q_scale(qkv_w, qkv_b):
        # fold the attention scale into the Q projection (weights and bias)
        return qkv_w.at[:, 0].multiply(scale), qkv_b.at[:, 0].multiply(scale)

    sa_qkv_w, sa_qkv_b = fold_q_scale(stack((3, E, E)), stack((3, 1, E)))
    ca_qkv_w, ca_qkv_b = fold_q_scale(stack((3, E, E)), stack((3, 1, E)))

    return dict(
        emb_w=w((input_dim, E)), emb_b=w((1, E)),
        out_w=w((E, output_dim)), out_b=w((1, output_dim)),
        sa_qkv_w=sa_qkv_w, sa_qkv_b=sa_qkv_b,
        sa_out_w=stack((E, E)), sa_out_b=stack((1, E)),
        ca_qkv_w=ca_qkv_w, ca_qkv_b=ca_qkv_b,
        ca_out_w=stack((E, E)), ca_out_b=stack((1, E)),
        n1_g=jnp.ones((num_layers, 1, E), jnp.float32),
        n1_b=jnp.zeros((num_layers, 1, E), jnp.float32),
        n2_g=jnp.ones((num_layers, 1, E), jnp.float32),
        n2_b=jnp.zeros((num_layers, 1, E), jnp.float32),
        n3_g=jnp.ones((num_layers, 1, E), jnp.float32),
        n3_b=jnp.zeros((num_layers, 1, E), jnp.float32),
        ff1_w=stack((E, F)), ff1_b=stack((1, F)),
        ff2_w=stack((F, E)), ff2_b=stack((1, E)),
    )


# ----------------------------------------------------------------------------
# Main
# ----------------------------------------------------------------------------

if __name__ == "__main__":
    input_dim, output_dim = 4, 4
    num_heads, num_layers, ff_dim = 4, 2, 32
    B, S_tgt, S_mem = 2, 8, 8

    kp, kz, km = jax.random.split(jax.random.PRNGKey(0), 3)
    params = init_params(kp, input_dim, output_dim, num_heads, num_layers, ff_dim)
    z = jax.random.normal(kz, (B, S_tgt, input_dim), jnp.float32)
    memory = jax.random.normal(km, (B, S_mem, input_dim), jnp.float32)

    fwd = jax.jit(functools.partial(attention_decoder_forward, num_heads=num_heads))
    out = fwd(z, memory, params)
    jax.block_until_ready(out)

    assert out.shape == (B, S_tgt, output_dim)
    assert bool(jnp.all(jnp.isfinite(out)))
    # sigmoid range (small tolerance for the approx reciprocal)
    assert bool(jnp.all((out >= 0.0) & (out <= 1.0 + 1e-3)))
    print("KERNEL_OK")
</pallas_src>

<mosaic_0001>
module attributes {stable_mosaic.version = 11 : i64} {
  func.func @_fused_decoder_kernel(%arg0: memref<16x4xf32, #tpu.memory_space<vmem>>, %arg1: memref<16x4xf32, #tpu.memory_space<vmem>>, %arg2: memref<4x32xf32, #tpu.memory_space<vmem>>, %arg3: memref<1x32xf32, #tpu.memory_space<vmem>>, %arg4: memref<2x3x32x32xf32, #tpu.memory_space<vmem>>, %arg5: memref<2x3x1x32xf32, #tpu.memory_space<vmem>>, %arg6: memref<2x32x32xf32, #tpu.memory_space<vmem>>, %arg7: memref<2x1x32xf32, #tpu.memory_space<vmem>>, %arg8: memref<2x3x32x32xf32, #tpu.memory_space<vmem>>, %arg9: memref<2x3x1x32xf32, #tpu.memory_space<vmem>>, %arg10: memref<2x32x32xf32, #tpu.memory_space<vmem>>, %arg11: memref<2x1x32xf32, #tpu.memory_space<vmem>>, %arg12: memref<2x1x32xf32, #tpu.memory_space<vmem>>, %arg13: memref<2x1x32xf32, #tpu.memory_space<vmem>>, %arg14: memref<2x1x32xf32, #tpu.memory_space<vmem>>, %arg15: memref<2x1x32xf32, #tpu.memory_space<vmem>>, %arg16: memref<2x1x32xf32, #tpu.memory_space<vmem>>, %arg17: memref<2x1x32xf32, #tpu.memory_space<vmem>>, %arg18: memref<2x32x32xf32, #tpu.memory_space<vmem>>, %arg19: memref<2x1x32xf32, #tpu.memory_space<vmem>>, %arg20: memref<2x32x32xf32, #tpu.memory_space<vmem>>, %arg21: memref<2x1x32xf32, #tpu.memory_space<vmem>>, %arg22: memref<32x4xf32, #tpu.memory_space<vmem>>, %arg23: memref<1x4xf32, #tpu.memory_space<vmem>>, %arg24: memref<16x4xf32, #tpu.memory_space<vmem>>) attributes {dimension_semantics = [], scalar_prefetch = 0 : i64, scratch_operands = 0 : i64, tpu.core_type = #tpu.core_type<tc>} {
    %c0 = arith.constant 0 : index
    %c0_0 = arith.constant 0 : index
    %0 = vector.load %arg2[%c0, %c0_0] : memref<4x32xf32, #tpu.memory_space<vmem>>, vector<4x32xf32>
    %c0_1 = arith.constant 0 : index
    %c0_2 = arith.constant 0 : index
    %1 = vector.load %arg3[%c0_1, %c0_2] : memref<1x32xf32, #tpu.memory_space<vmem>>, vector<1x32xf32>
    %c0_3 = arith.constant 0 : index
    %c0_4 = arith.constant 0 : index
    %2 = vector.load %arg0[%c0_3, %c0_4] : memref<16x4xf32, #tpu.memory_space<vmem>>, vector<16x4xf32>
    %cst = arith.constant dense<0.000000e+00> : vector<16x32xf32>
    %3 = tpu.matmul %2, %0, %cst {dimension_numbers = #tpu.dot_dimension_numbers<[1], [0], [0], [1], [0, 0, 1, 1], [], []>} : vector<16x4xf32>, vector<4x32xf32>, vector<16x32xf32> -> vector<16x32xf32>
    %4 = vector.broadcast %1 : vector<1x32xf32> to vector<16x32xf32>
    %5 = arith.addf %3, %4 : vector<16x32xf32>
    %c0_5 = arith.constant 0 : index
    %c0_6 = arith.constant 0 : index
    %6 = vector.load %arg1[%c0_5, %c0_6] : memref<16x4xf32, #tpu.memory_space<vmem>>, vector<16x4xf32>
    %cst_7 = arith.constant dense<0.000000e+00> : vector<16x32xf32>
    %7 = tpu.matmul %6, %0, %cst_7 {dimension_numbers = #tpu.dot_dimension_numbers<[1], [0], [0], [1], [0, 0, 1, 1], [], []>} : vector<16x4xf32>, vector<4x32xf32>, vector<16x32xf32> -> vector<16x32xf32>
    %8 = vector.broadcast %1 : vector<1x32xf32> to vector<16x32xf32>
    %9 = arith.addf %7, %8 : vector<16x32xf32>
    %c0_8 = arith.constant 0 : index
    %c0_9 = arith.constant 0 : index
    %c0_10 = arith.constant 0 : index
    %c0_11 = arith.constant 0 : index
    %10 = vector.load %arg4[%c0_8, %c0_9, %c0_10, %c0_11] : memref<2x3x32x32xf32, #tpu.memory_space<vmem>>, vector<1x1x32x32xf32>
    %11 = vector.shape_cast %10 : vector<1x1x32x32xf32> to vector<32x32xf32>
    %cst_12 = arith.constant dense<0.000000e+00> : vector<16x32xf32>
    %12 = tpu.matmul %5, %11, %cst_12 {dimension_numbers = #tpu.dot_dimension_numbers<[1], [0], [0], [1], [0, 0, 1, 1], [], []>} : vector<16x32xf32>, vector<32x32xf32>, vector<16x32xf32> -> vector<16x32xf32>
    %c0_13 = arith.constant 0 : index
    %c0_14 = arith.constant 0 : index
    %c0_15 = arith.constant 0 : index
    %c0_16 = arith.constant 0 : index
    %13 = vector.load %arg5[%c0_13, %c0_14, %c0_15, %c0_16] : memref<2x3x1x32xf32, #tpu.memory_space<vmem>>, vector<1x1x1x32xf32>
    %14 = vector.shape_cast %13 : vector<1x1x1x32xf32> to vector<1x32xf32>
    %15 = vector.broadcast %14 : vector<1x32xf32> to vector<16x32xf32>
    %16 = arith.addf %12, %15 : vector<16x32xf32>
    %c0_17 = arith.constant 0 : index
    %c1 = arith.constant 1 : index
    %c0_18 = arith.constant 0 : index
    %c0_19 = arith.constant 0 : index
    %17 = vector.load %arg4[%c0_17, %c1, %c0_18, %c0_19] : memref<2x3x32x32xf32, #tpu.memory_space<vmem>>, vector<1x1x32x32xf32>
    %18 = vector.shape_cast %17 : vector<1x1x32x32xf32> to vector<32x32xf32>
    %cst_20 = arith.constant dense<0.000000e+00> : vector<16x32xf32>
    %19 = tpu.matmul %5, %18, %cst_20 {dimension_numbers = #tpu.dot_dimension_numbers<[1], [0], [0], [1], [0, 0, 1, 1], [], []>} : vector<16x32xf32>, vector<32x32xf32>, vector<16x32xf32> -> vector<16x32xf32>
    %c0_21 = arith.constant 0 : index
    %c1_22 = arith.constant 1 : index
    %c0_23 = arith.constant 0 : index
    %c0_24 = arith.constant 0 : index
    %20 = vector.load %arg5[%c0_21, %c1_22, %c0_23, %c0_24] : memref<2x3x1x32xf32, #tpu.memory_space<vmem>>, vector<1x1x1x32xf32>
    %21 = vector.shape_cast %20 : vector<1x1x1x32xf32> to vector<1x32xf32>
    %22 = vector.broadcast %21 : vector<1x32xf32> to vector<16x32xf32>
    %23 = arith.addf %19, %22 : vector<16x32xf32>
    %c0_25 = arith.constant 0 : index
    %c2 = arith.constant 2 : index
    %c0_26 = arith.constant 0 : index
    %c0_27 = arith.constant 0 : index
    %24 = vector.load %arg4[%c0_25, %c2, %c0_26, %c0_27] : memref<2x3x32x32xf32, #tpu.memory_space<vmem>>, vector<1x1x32x32xf32>
    %25 = vector.shape_cast %24 : vector<1x1x32x32xf32> to vector<32x32xf32>
    %cst_28 = arith.constant dense<0.000000e+00> : vector<16x32xf32>
    %26 = tpu.matmul %5, %25, %cst_28 {dimension_numbers = #tpu.dot_dimension_numbers<[1], [0], [0], [1], [0, 0, 1, 1], [], []>} : vector<16x32xf32>, vector<32x32xf32>, vector<16x32xf32> -> vector<16x32xf32>
    %c0_29 = arith.constant 0 : index
    %c2_30 = arith.constant 2 : index
    %c0_31 = arith.constant 0 : index
    %c0_32 = arith.constant 0 : index
    %27 = vector.load %arg5[%c0_29, %c2_30, %c0_31, %c0_32] : memref<2x3x1x32xf32, #tpu.memory_space<vmem>>, vector<1x1x1x32xf32>
    %28 = vector.shape_cast %27 : vector<1x1x1x32xf32> to vector<1x32xf32>
    %29 = vector.broadcast %28 : vector<1x32xf32> to vector<16x32xf32>
    %30 = arith.addf %26, %29 : vector<16x32xf32>
    %c0_33 = arith.constant 0 : index
    %c0_34 = arith.constant 0 : index
    %c0_35 = arith.constant 0 : index
    %31 = vector.load %arg6[%c0_33, %c0_34, %c0_35] : memref<2x32x32xf32, #tpu.memory_space<vmem>>, vector<1x32x32xf32>
    %32 = vector.shape_cast %31 : vector<1x32x32xf32> to vector<32x32xf32>
    %c0_36 = arith.constant 0 : index
    %c0_37 = arith.constant 0 : index
    %c0_38 = arith.constant 0 : index
    %33 = vector.load %arg7[%c0_36, %c0_37, %c0_38] : memref<2x1x32xf32, #tpu.memory_space<vmem>>, vector<1x1x32xf32>
    %34 = vector.shape_cast %33 : vector<1x1x32xf32> to vector<1x32xf32>
    %35 = vector.extract_strided_slice %16 {offsets = [0, 0], sizes = [16, 8], strides = [1, 1]} : vector<16x32xf32> to vector<16x8xf32>
    %36 = vector.shape_cast %35 : vector<16x8xf32> to vector<2x8x8xf32>
    %37 = vector.extract_strided_slice %23 {offsets = [0, 0], sizes = [16, 8], strides = [1, 1]} : vector<16x32xf32> to vector<16x8xf32>
    %38 = vector.shape_cast %37 : vector<16x8xf32> to vector<2x8x8xf32>
    %39 = vector.extract_strided_slice %30 {offsets = [0, 0], sizes = [16, 8], strides = [1, 1]} : vector<16x32xf32> to vector<16x8xf32>
    %40 = vector.shape_cast %39 : vector<16x8xf32> to vector<2x8x8xf32>
    %cst_39 = arith.constant dense<0.000000e+00> : vector<2x8x8xf32>
    %41 = tpu.matmul %36, %38, %cst_39 {dimension_numbers = #tpu.dot_dimension_numbers<[2], [2], [1], [1], [0, 0, 0, 1, 1, 1], [0], [0]>} : vector<2x8x8xf32>, vector<2x8x8xf32>, vector<2x8x8xf32> -> vector<2x8x8xf32>
    %cst_40 = arith.constant dense<0xFF800000> : vector<2x8xf32>
    %42 = vector.multi_reduction <maximumf>, %41, %cst_40 [2] : vector<2x8x8xf32> to vector<2x8xf32>
    %43 = vector.shape_cast %42 : vector<2x8xf32> to vector<2x8x1xf32>
    %44 = vector.broadcast %43 : vector<2x8x1xf32> to vector<2x8x8xf32>
    %45 = arith.subf %41, %44 : vector<2x8x8xf32>
    %46 = math.exp %45 : vector<2x8x8xf32>
    %cst_41 = arith.constant dense<0.000000e+00> : vector<2x8xf32>
    %47 = vector.multi_reduction <add>, %46, %cst_41 [2] : vector<2x8x8xf32> to vector<2x8xf32>
    %48 = vector.shape_cast %47 : vector<2x8xf32> to vector<2x8x1xf32>
    %49 = tpu.reciprocal %48 {approx = true} : vector<2x8x1xf32> -> vector<2x8x1xf32>
    %50 = vector.broadcast %49 : vector<2x8x1xf32> to vector<2x8x8xf32>
    %51 = arith.mulf %46, %50 : vector<2x8x8xf32>
    %cst_42 = arith.constant dense<0.000000e+00> : vector<2x8x8xf32>
    %52 = tpu.matmul %51, %40, %cst_42 {dimension_numbers = #tpu.dot_dimension_numbers<[2], [1], [1], [2], [0, 0, 0, 1, 1, 2], [0], [0]>} : vector<2x8x8xf32>, vector<2x8x8xf32>, vector<2x8x8xf32> -> vector<2x8x8xf32>
    %53 = vector.shape_cast %52 : vector<2x8x8xf32> to vector<16x8xf32>
    %54 = vector.extract_strided_slice %16 {offsets = [0, 8], sizes = [16, 8], strides = [1, 1]} : vector<16x32xf32> to vector<16x8xf32>
    %55 = vector.shape_cast %54 : vector<16x8xf32> to vector<2x8x8xf32>
    %56 = vector.extract_strided_slice %23 {offsets = [0, 8], sizes = [16, 8], strides = [1, 1]} : vector<16x32xf32> to vector<16x8xf32>
    %57 = vector.shape_cast %56 : vector<16x8xf32> to vector<2x8x8xf32>
    %58 = vector.extract_strided_slice %30 {offsets = [0, 8], sizes = [16, 8], strides = [1, 1]} : vector<16x32xf32> to vector<16x8xf32>
    %59 = vector.shape_cast %58 : vector<16x8xf32> to vector<2x8x8xf32>
    %cst_43 = arith.constant dense<0.000000e+00> : vector<2x8x8xf32>
    %60 = tpu.matmul %55, %57, %cst_43 {dimension_numbers = #tpu.dot_dimension_numbers<[2], [2], [1], [1], [0, 0, 0, 1, 1, 1], [0], [0]>} : vector<2x8x8xf32>, vector<2x8x8xf32>, vector<2x8x8xf32> -> vector<2x8x8xf32>
    %cst_44 = arith.constant dense<0xFF800000> : vector<2x8xf32>
    %61 = vector.multi_reduction <maximumf>, %60, %cst_44 [2] : vector<2x8x8xf32> to vector<2x8xf32>
    %62 = vector.shape_cast %61 : vector<2x8xf32> to vector<2x8x1xf32>
    %63 = vector.broadcast %62 : vector<2x8x1xf32> to vector<2x8x8xf32>
    %64 = arith.subf %60, %63 : vector<2x8x8xf32>
    %65 = math.exp %64 : vector<2x8x8xf32>
    %cst_45 = arith.constant dense<0.000000e+00> : vector<2x8xf32>
    %66 = vector.multi_reduction <add>, %65, %cst_45 [2] : vector<2x8x8xf32> to vector<2x8xf32>
    %67 = vector.shape_cast %66 : vector<2x8xf32> to vector<2x8x1xf32>
    %68 = tpu.reciprocal %67 {approx = true} : vector<2x8x1xf32> -> vector<2x8x1xf32>
    %69 = vector.broadcast %68 : vector<2x8x1xf32> to vector<2x8x8xf32>
    %70 = arith.mulf %65, %69 : vector<2x8x8xf32>
    %cst_46 = arith.constant dense<0.000000e+00> : vector<2x8x8xf32>
    %71 = tpu.matmul %70, %59, %cst_46 {dimension_numbers = #tpu.dot_dimension_numbers<[2], [1], [1], [2], [0, 0, 0, 1, 1, 2], [0], [0]>} : vector<2x8x8xf32>, vector<2x8x8xf32>, vector<2x8x8xf32> -> vector<2x8x8xf32>
    %72 = vector.shape_cast %71 : vector<2x8x8xf32> to vector<16x8xf32>
    %73 = vector.extract_strided_slice %16 {offsets = [0, 16], sizes = [16, 8], strides = [1, 1]} : vector<16x32xf32> to vector<16x8xf32>
    %74 = vector.shape_cast %73 : vector<16x8xf32> to vector<2x8x8xf32>
    %75 = vector.extract_strided_slice %23 {offsets = [0, 16], sizes = [16, 8], strides = [1, 1]} : vector<16x32xf32> to vector<16x8xf32>
    %76 = vector.shape_cast %75 : vector<16x8xf32> to vector<2x8x8xf32>
    %77 = vector.extract_strided_slice %30 {offsets = [0, 16], sizes = [16, 8], strides = [1, 1]} : vector<16x32xf32> to vector<16x8xf32>
    %78 = vector.shape_cast %77 : vector<16x8xf32> to vector<2x8x8xf32>
    %cst_47 = arith.constant dense<0.000000e+00> : vector<2x8x8xf32>
    %79 = tpu.matmul %74, %76, %cst_47 {dimension_numbers = #tpu.dot_dimension_numbers<[2], [2], [1], [1], [0, 0, 0, 1, 1, 1], [0], [0]>} : vector<2x8x8xf32>, vector<2x8x8xf32>, vector<2x8x8xf32> -> vector<2x8x8xf32>
    %cst_48 = arith.constant dense<0xFF800000> : vector<2x8xf32>
    %80 = vector.multi_reduction <maximumf>, %79, %cst_48 [2] : vector<2x8x8xf32> to vector<2x8xf32>
    %81 = vector.shape_cast %80 : vector<2x8xf32> to vector<2x8x1xf32>
    %82 = vector.broadcast %81 : vector<2x8x1xf32> to vector<2x8x8xf32>
    %83 = arith.subf %79, %82 : vector<2x8x8xf32>
    %84 = math.exp %83 : vector<2x8x8xf32>
    %cst_49 = arith.constant dense<0.000000e+00> : vector<2x8xf32>
    %85 = vector.multi_reduction <add>, %84, %cst_49 [2] : vector<2x8x8xf32> to vector<2x8xf32>
    %86 = vector.shape_cast %85 : vector<2x8xf32> to vector<2x8x1xf32>
    %87 = tpu.reciprocal %86 {approx = true} : vector<2x8x1xf32> -> vector<2x8x1xf32>
    %88 = vector.broadcast %87 : vector<2x8x1xf32> to vector<2x8x8xf32>
    %89 = arith.mulf %84, %88 : vector<2x8x8xf32>
    %cst_50 = arith.constant dense<0.000000e+00> : vector<2x8x8xf32>
    %90 = tpu.matmul %89, %78, %cst_50 {dimension_numbers = #tpu.dot_dimension_numbers<[2], [1], [1], [2], [0, 0, 0, 1, 1, 2], [0], [0]>} : vector<2x8x8xf32>, vector<2x8x8xf32>, vector<2x8x8xf32> -> vector<2x8x8xf32>
    %91 = vector.shape_cast %90 : vector<2x8x8xf32> to vector<16x8xf32>
    %92 = vector.extract_strided_slice %16 {offsets = [0, 24], sizes = [16, 8], strides = [1, 1]} : vector<16x32xf32> to vector<16x8xf32>
    %93 = vector.shape_cast %92 : vector<16x8xf32> to vector<2x8x8xf32>
    %94 = vector.extract_strided_slice %23 {offsets = [0, 24], sizes = [16, 8], strides = [1, 1]} : vector<16x32xf32> to vector<16x8xf32>
    %95 = vector.shape_cast %94 : vector<16x8xf32> to vector<2x8x8xf32>
    %96 = vector.extract_strided_slice %30 {offsets = [0, 24], sizes = [16, 8], strides = [1, 1]} : vector<16x32xf32> to vector<16x8xf32>
    %97 = vector.shape_cast %96 : vector<16x8xf32> to vector<2x8x8xf32>
    %cst_51 = arith.constant dense<0.000000e+00> : vector<2x8x8xf32>
    %98 = tpu.matmul %93, %95, %cst_51 {dimension_numbers = #tpu.dot_dimension_numbers<[2], [2], [1], [1], [0, 0, 0, 1, 1, 1], [0], [0]>} : vector<2x8x8xf32>, vector<2x8x8xf32>, vector<2x8x8xf32> -> vector<2x8x8xf32>
    %cst_52 = arith.constant dense<0xFF800000> : vector<2x8xf32>
    %99 = vector.multi_reduction <maximumf>, %98, %cst_52 [2] : vector<2x8x8xf32> to vector<2x8xf32>
    %100 = vector.shape_cast %99 : vector<2x8xf32> to vector<2x8x1xf32>
    %101 = vector.broadcast %100 : vector<2x8x1xf32> to vector<2x8x8xf32>
    %102 = arith.subf %98, %101 : vector<2x8x8xf32>
    %103 = math.exp %102 : vector<2x8x8xf32>
    %cst_53 = arith.constant dense<0.000000e+00> : vector<2x8xf32>
    %104 = vector.multi_reduction <add>, %103, %cst_53 [2] : vector<2x8x8xf32> to vector<2x8xf32>
    %105 = vector.shape_cast %104 : vector<2x8xf32> to vector<2x8x1xf32>
    %106 = tpu.reciprocal %105 {approx = true} : vector<2x8x1xf32> -> vector<2x8x1xf32>
    %107 = vector.broadcast %106 : vector<2x8x1xf32> to vector<2x8x8xf32>
    %108 = arith.mulf %103, %107 : vector<2x8x8xf32>
    %cst_54 = arith.constant dense<0.000000e+00> : vector<2x8x8xf32>
    %109 = tpu.matmul %108, %97, %cst_54 {dimension_numbers = #tpu.dot_dimension_numbers<[2], [1], [1], [2], [0, 0, 0, 1, 1, 2], [0], [0]>} : vector<2x8x8xf32>, vector<2x8x8xf32>, vector<2x8x8xf32> -> vector<2x8x8xf32>
    %110 = vector.shape_cast %109 : vector<2x8x8xf32> to vector<16x8xf32>
    %111 = tpu.concatenate %53, %72, %91, %110 in 1 : vector<16x8xf32>, vector<16x8xf32>, vector<16x8xf32>, vector<16x8xf32> -> vector<16x32xf32>
    %cst_55 = arith.constant dense<0.000000e+00> : vector<16x32xf32>
    %112 = tpu.matmul %111, %32, %cst_55 {dimension_numbers = #tpu.dot_dimension_numbers<[1], [0], [0], [1], [0, 0, 1, 1], [], []>} : vector<16x32xf32>, vector<32x32xf32>, vector<16x32xf32> -> vector<16x32xf32>
    %113 = vector.broadcast %34 : vector<1x32xf32> to vector<16x32xf32>
    %114 = arith.addf %112, %113 : vector<16x32xf32>
    %c0_56 = arith.constant 0 : index
    %c0_57 = arith.constant 0 : index
    %c0_58 = arith.constant 0 : index
    %115 = vector.load %arg12[%c0_56, %c0_57, %c0_58] : memref<2x1x32xf32, #tpu.memory_space<vmem>>, vector<1x1x32xf32>
    %116 = vector.shape_cast %115 : vector<1x1x32xf32> to vector<1x32xf32>
    %c0_59 = arith.constant 0 : index
    %c0_60 = arith.constant 0 : index
    %c0_61 = arith.constant 0 : index
    %117 = vector.load %arg13[%c0_59, %c0_60, %c0_61] : memref<2x1x32xf32, #tpu.memory_space<vmem>>, vector<1x1x32xf32>
    %118 = vector.shape_cast %117 : vector<1x1x32xf32> to vector<1x32xf32>
    %119 = arith.addf %5, %114 : vector<16x32xf32>
    %cst_62 = arith.constant dense<0.000000e+00> : vector<16xf32>
    %120 = vector.multi_reduction <add>, %119, %cst_62 [1] : vector<16x32xf32> to vector<16xf32>
    %121 = vector.shape_cast %120 : vector<16xf32> to vector<16x1xf32>
    %cst_63 = arith.constant 3.200000e+01 : f32
    %122 = vector.broadcast %cst_63 : f32 to vector<16x1xf32>
    %123 = arith.divf %121, %122 : vector<16x1xf32>
    %124 = arith.mulf %119, %119 : vector<16x32xf32>
    %cst_64 = arith.constant dense<0.000000e+00> : vector<16xf32>
    %125 = vector.multi_reduction <add>, %124, %cst_64 [1] : vector<16x32xf32> to vector<16xf32>
    %126 = vector.shape_cast %125 : vector<16xf32> to vector<16x1xf32>
    %cst_65 = arith.constant 3.200000e+01 : f32
    %127 = vector.broadcast %cst_65 : f32 to vector<16x1xf32>
    %128 = arith.divf %126, %127 : vector<16x1xf32>
    %129 = arith.mulf %123, %123 : vector<16x1xf32>
    %130 = arith.subf %128, %129 : vector<16x1xf32>
    %131 = vector.broadcast %123 : vector<16x1xf32> to vector<16x32xf32>
    %132 = arith.subf %119, %131 : vector<16x32xf32>
    %cst_66 = arith.constant 9.99999974E-6 : f32
    %133 = vector.broadcast %cst_66 : f32 to vector<16x1xf32>
    %134 = arith.addf %130, %133 : vector<16x1xf32>
    %135 = math.rsqrt %134 : vector<16x1xf32>
    %136 = vector.broadcast %135 : vector<16x1xf32> to vector<16x32xf32>
    %137 = arith.mulf %132, %136 : vector<16x32xf32>
    %138 = vector.broadcast %116 : vector<1x32xf32> to vector<16x32xf32>
    %139 = arith.mulf %137, %138 : vector<16x32xf32>
    %140 = vector.broadcast %118 : vector<1x32xf32> to vector<16x32xf32>
    %141 = arith.addf %139, %140 : vector<16x32xf32>
    %c0_67 = arith.constant 0 : index
    %c0_68 = arith.constant 0 : index
    %c0_69 = arith.constant 0 : index
    %c0_70 = arith.constant 0 : index
    %142 = vector.load %arg8[%c0_67, %c0_68, %c0_69, %c0_70] : memref<2x3x32x32xf32, #tpu.memory_space<vmem>>, vector<1x1x32x32xf32>
    %143 = vector.shape_cast %142 : vector<1x1x32x32xf32> to vector<32x32xf32>
    %cst_71 = arith.constant dense<0.000000e+00> : vector<16x32xf32>
    %144 = tpu.matmul %141, %143, %cst_71 {dimension_numbers = #tpu.dot_dimension_numbers<[1], [0], [0], [1], [0, 0, 1, 1], [], []>} : vector<16x32xf32>, vector<32x32xf32>, vector<16x32xf32> -> vector<16x32xf32>
    %c0_72 = arith.constant 0 : index
    %c0_73 = arith.constant 0 : index
    %c0_74 = arith.constant 0 : index
    %c0_75 = arith.constant 0 : index
    %145 = vector.load %arg9[%c0_72, %c0_73, %c0_74, %c0_75] : memref<2x3x1x32xf32, #tpu.memory_space<vmem>>, vector<1x1x1x32xf32>
    %146 = vector.shape_cast %145 : vector<1x1x1x32xf32> to vector<1x32xf32>
    %147 = vector.broadcast %146 : vector<1x32xf32> to vector<16x32xf32>
    %148 = arith.addf %144, %147 : vector<16x32xf32>
    %c0_76 = arith.constant 0 : index
    %c1_77 = arith.constant 1 : index
    %c0_78 = arith.constant 0 : index
    %c0_79 = arith.constant 0 : index
    %149 = vector.load %arg8[%c0_76, %c1_77, %c0_78, %c0_79] : memref<2x3x32x32xf32, #tpu.memory_space<vmem>>, vector<1x1x32x32xf32>
    %150 = vector.shape_cast %149 : vector<1x1x32x32xf32> to vector<32x32xf32>
    %cst_80 = arith.constant dense<0.000000e+00> : vector<16x32xf32>
    %151 = tpu.matmul %9, %150, %cst_80 {dimension_numbers = #tpu.dot_dimension_numbers<[1], [0], [0], [1], [0, 0, 1, 1], [], []>} : vector<16x32xf32>, vector<32x32xf32>, vector<16x32xf32> -> vector<16x32xf32>
    %c0_81 = arith.constant 0 : index
    %c1_82 = arith.constant 1 : index
    %c0_83 = arith.constant 0 : index
    %c0_84 = arith.constant 0 : index
    %152 = vector.load %arg9[%c0_81, %c1_82, %c0_83, %c0_84] : memref<2x3x1x32xf32, #tpu.memory_space<vmem>>, vector<1x1x1x32xf32>
    %153 = vector.shape_cast %152 : vector<1x1x1x32xf32> to vector<1x32xf32>
    %154 = vector.broadcast %153 : vector<1x32xf32> to vector<16x32xf32>
    %155 = arith.addf %151, %154 : vector<16x32xf32>
    %c0_85 = arith.constant 0 : index
    %c2_86 = arith.constant 2 : index
    %c0_87 = arith.constant 0 : index
    %c0_88 = arith.constant 0 : index
    %156 = vector.load %arg8[%c0_85, %c2_86, %c0_87, %c0_88] : memref<2x3x32x32xf32, #tpu.memory_space<vmem>>, vector<1x1x32x32xf32>
    %157 = vector.shape_cast %156 : vector<1x1x32x32xf32> to vector<32x32xf32>
    %cst_89 = arith.constant dense<0.000000e+00> : vector<16x32xf32>
    %158 = tpu.matmul %9, %157, %cst_89 {dimension_numbers = #tpu.dot_dimension_numbers<[1], [0], [0], [1], [0, 0, 1, 1], [], []>} : vector<16x32xf32>, vector<32x32xf32>, vector<16x32xf32> -> vector<16x32xf32>
    %c0_90 = arith.constant 0 : index
    %c2_91 = arith.constant 2 : index
    %c0_92 = arith.constant 0 : index
    %c0_93 = arith.constant 0 : index
    %159 = vector.load %arg9[%c0_90, %c2_91, %c0_92, %c0_93] : memref<2x3x1x32xf32, #tpu.memory_space<vmem>>, vector<1x1x1x32xf32>
    %160 = vector.shape_cast %159 : vector<1x1x1x32xf32> to vector<1x32xf32>
    %161 = vector.broadcast %160 : vector<1x32xf32> to vector<16x32xf32>
    %162 = arith.addf %158, %161 : vector<16x32xf32>
    %c0_94 = arith.constant 0 : index
    %c0_95 = arith.constant 0 : index
    %c0_96 = arith.constant 0 : index
    %163 = vector.load %arg10[%c0_94, %c0_95, %c0_96] : memref<2x32x32xf32, #tpu.memory_space<vmem>>, vector<1x32x32xf32>
    %164 = vector.shape_cast %163 : vector<1x32x32xf32> to vector<32x32xf32>
    %c0_97 = arith.constant 0 : index
    %c0_98 = arith.constant 0 : index
    %c0_99 = arith.constant 0 : index
    %165 = vector.load %arg11[%c0_97, %c0_98, %c0_99] : memref<2x1x32xf32, #tpu.memory_space<vmem>>, vector<1x1x32xf32>
    %166 = vector.shape_cast %165 : vector<1x1x32xf32> to vector<1x32xf32>
    %167 = vector.extract_strided_slice %148 {offsets = [0, 0], sizes = [16, 8], strides = [1, 1]} : vector<16x32xf32> to vector<16x8xf32>
    %168 = vector.shape_cast %167 : vector<16x8xf32> to vector<2x8x8xf32>
    %169 = vector.extract_strided_slice %155 {offsets = [0, 0], sizes = [16, 8], strides = [1, 1]} : vector<16x32xf32> to vector<16x8xf32>
    %170 = vector.shape_cast %169 : vector<16x8xf32> to vector<2x8x8xf32>
    %171 = vector.extract_strided_slice %162 {offsets = [0, 0], sizes = [16, 8], strides = [1, 1]} : vector<16x32xf32> to vector<16x8xf32>
    %172 = vector.shape_cast %171 : vector<16x8xf32> to vector<2x8x8xf32>
    %cst_100 = arith.constant dense<0.000000e+00> : vector<2x8x8xf32>
    %173 = tpu.matmul %168, %170, %cst_100 {dimension_numbers = #tpu.dot_dimension_numbers<[2], [2], [1], [1], [0, 0, 0, 1, 1, 1], [0], [0]>} : vector<2x8x8xf32>, vector<2x8x8xf32>, vector<2x8x8xf32> -> vector<2x8x8xf32>
    %cst_101 = arith.constant dense<0xFF800000> : vector<2x8xf32>
    %174 = vector.multi_reduction <maximumf>, %173, %cst_101 [2] : vector<2x8x8xf32> to vector<2x8xf32>
    %175 = vector.shape_cast %174 : vector<2x8xf32> to vector<2x8x1xf32>
    %176 = vector.broadcast %175 : vector<2x8x1xf32> to vector<2x8x8xf32>
    %177 = arith.subf %173, %176 : vector<2x8x8xf32>
    %178 = math.exp %177 : vector<2x8x8xf32>
    %cst_102 = arith.constant dense<0.000000e+00> : vector<2x8xf32>
    %179 = vector.multi_reduction <add>, %178, %cst_102 [2] : vector<2x8x8xf32> to vector<2x8xf32>
    %180 = vector.shape_cast %179 : vector<2x8xf32> to vector<2x8x1xf32>
    %181 = tpu.reciprocal %180 {approx = true} : vector<2x8x1xf32> -> vector<2x8x1xf32>
    %182 = vector.broadcast %181 : vector<2x8x1xf32> to vector<2x8x8xf32>
    %183 = arith.mulf %178, %182 : vector<2x8x8xf32>
    %cst_103 = arith.constant dense<0.000000e+00> : vector<2x8x8xf32>
    %184 = tpu.matmul %183, %172, %cst_103 {dimension_numbers = #tpu.dot_dimension_numbers<[2], [1], [1], [2], [0, 0, 0, 1, 1, 2], [0], [0]>} : vector<2x8x8xf32>, vector<2x8x8xf32>, vector<2x8x8xf32> -> vector<2x8x8xf32>
    %185 = vector.shape_cast %184 : vector<2x8x8xf32> to vector<16x8xf32>
    %186 = vector.extract_strided_slice %148 {offsets = [0, 8], sizes = [16, 8], strides = [1, 1]} : vector<16x32xf32> to vector<16x8xf32>
    %187 = vector.shape_cast %186 : vector<16x8xf32> to vector<2x8x8xf32>
    %188 = vector.extract_strided_slice %155 {offsets = [0, 8], sizes = [16, 8], strides = [1, 1]} : vector<16x32xf32> to vector<16x8xf32>
    %189 = vector.shape_cast %188 : vector<16x8xf32> to vector<2x8x8xf32>
    %190 = vector.extract_strided_slice %162 {offsets = [0, 8], sizes = [16, 8], strides = [1, 1]} : vector<16x32xf32> to vector<16x8xf32>
    %191 = vector.shape_cast %190 : vector<16x8xf32> to vector<2x8x8xf32>
    %cst_104 = arith.constant dense<0.000000e+00> : vector<2x8x8xf32>
    %192 = tpu.matmul %187, %189, %cst_104 {dimension_numbers = #tpu.dot_dimension_numbers<[2], [2], [1], [1], [0, 0, 0, 1, 1, 1], [0], [0]>} : vector<2x8x8xf32>, vector<2x8x8xf32>, vector<2x8x8xf32> -> vector<2x8x8xf32>
    %cst_105 = arith.constant dense<0xFF800000> : vector<2x8xf32>
    %193 = vector.multi_reduction <maximumf>, %192, %cst_105 [2] : vector<2x8x8xf32> to vector<2x8xf32>
    %194 = vector.shape_cast %193 : vector<2x8xf32> to vector<2x8x1xf32>
    %195 = vector.broadcast %194 : vector<2x8x1xf32> to vector<2x8x8xf32>
    %196 = arith.subf %192, %195 : vector<2x8x8xf32>
    %197 = math.exp %196 : vector<2x8x8xf32>
    %cst_106 = arith.constant dense<0.000000e+00> : vector<2x8xf32>
    %198 = vector.multi_reduction <add>, %197, %cst_106 [2] : vector<2x8x8xf32> to vector<2x8xf32>
    %199 = vector.shape_cast %198 : vector<2x8xf32> to vector<2x8x1xf32>
    %200 = tpu.reciprocal %199 {approx = true} : vector<2x8x1xf32> -> vector<2x8x1xf32>
    %201 = vector.broadcast %200 : vector<2x8x1xf32> to vector<2x8x8xf32>
    %202 = arith.mulf %197, %201 : vector<2x8x8xf32>
    %cst_107 = arith.constant dense<0.000000e+00> : vector<2x8x8xf32>
    %203 = tpu.matmul %202, %191, %cst_107 {dimension_numbers = #tpu.dot_dimension_numbers<[2], [1], [1], [2], [0, 0, 0, 1, 1, 2], [0], [0]>} : vector<2x8x8xf32>, vector<2x8x8xf32>, vector<2x8x8xf32> -> vector<2x8x8xf32>
    %204 = vector.shape_cast %203 : vector<2x8x8xf32> to vector<16x8xf32>
    %205 = vector.extract_strided_slice %148 {offsets = [0, 16], sizes = [16, 8], strides = [1, 1]} : vector<16x32xf32> to vector<16x8xf32>
    %206 = vector.shape_cast %205 : vector<16x8xf32> to vector<2x8x8xf32>
    %207 = vector.extract_strided_slice %155 {offsets = [0, 16], sizes = [16, 8], strides = [1, 1]} : vector<16x32xf32> to vector<16x8xf32>
    %208 = vector.shape_cast %207 : vector<16x8xf32> to vector<2x8x8xf32>
    %209 = vector.extract_strided_slice %162 {offsets = [0, 16], sizes = [16, 8], strides = [1, 1]} : vector<16x32xf32> to vector<16x8xf32>
    %210 = vector.shape_cast %209 : vector<16x8xf32> to vector<2x8x8xf32>
    %cst_108 = arith.constant dense<0.000000e+00> : vector<2x8x8xf32>
    %211 = tpu.matmul %206, %208, %cst_108 {dimension_numbers = #tpu.dot_dimension_numbers<[2], [2], [1], [1], [0, 0, 0, 1, 1, 1], [0], [0]>} : vector<2x8x8xf32>, vector<2x8x8xf32>, vector<2x8x8xf32> -> vector<2x8x8xf32>
    %cst_109 = arith.constant dense<0xFF800000> : vector<2x8xf32>
    %212 = vector.multi_reduction <maximumf>, %211, %cst_109 [2] : vector<2x8x8xf32> to vector<2x8xf32>
    %213 = vector.shape_cast %212 : vector<2x8xf32> to vector<2x8x1xf32>
    %214 = vector.broadcast %213 : vector<2x8x1xf32> to vector<2x8x8xf32>
    %215 = arith.subf %211, %214 : vector<2x8x8xf32>
    %216 = math.exp %215 : vector<2x8x8xf32>
    %cst_110 = arith.constant dense<0.000000e+00> : vector<2x8xf32>
    %217 = vector.multi_reduction <add>, %216, %cst_110 [2] : vector<2x8x8xf32> to vector<2x8xf32>
    %218 = vector.shape_cast %217 : vector<2x8xf32> to vector<2x8x1xf32>
    %219 = tpu.reciprocal %218 {approx = true} : vector<2x8x1xf32> -> vector<2x8x1xf32>
    %220 = vector.broadcast %219 : vector<2x8x1xf32> to vector<2x8x8xf32>
    %221 = arith.mulf %216, %220 : vector<2x8x8xf32>
    %cst_111 = arith.constant dense<0.000000e+00> : vector<2x8x8xf32>
    %222 = tpu.matmul %221, %210, %cst_111 {dimension_numbers = #tpu.dot_dimension_numbers<[2], [1], [1], [2], [0, 0, 0, 1, 1, 2], [0], [0]>} : vector<2x8x8xf32>, vector<2x8x8xf32>, vector<2x8x8xf32> -> vector<2x8x8xf32>
    %223 = vector.shape_cast %222 : vector<2x8x8xf32> to vector<16x8xf32>
    %224 = vector.extract_strided_slice %148 {offsets = [0, 24], sizes = [16, 8], strides = [1, 1]} : vector<16x32xf32> to vector<16x8xf32>
    %225 = vector.shape_cast %224 : vector<16x8xf32> to vector<2x8x8xf32>
    %226 = vector.extract_strided_slice %155 {offsets = [0, 24], sizes = [16, 8], strides = [1, 1]} : vector<16x32xf32> to vector<16x8xf32>
    %227 = vector.shape_cast %226 : vector<16x8xf32> to vector<2x8x8xf32>
    %228 = vector.extract_strided_slice %162 {offsets = [0, 24], sizes = [16, 8], strides = [1, 1]} : vector<16x32xf32> to vector<16x8xf32>
    %229 = vector.shape_cast %228 : vector<16x8xf32> to vector<2x8x8xf32>
    %cst_112 = arith.constant dense<0.000000e+00> : vector<2x8x8xf32>
    %230 = tpu.matmul %225, %227, %cst_112 {dimension_numbers = #tpu.dot_dimension_numbers<[2], [2], [1], [1], [0, 0, 0, 1, 1, 1], [0], [0]>} : vector<2x8x8xf32>, vector<2x8x8xf32>, vector<2x8x8xf32> -> vector<2x8x8xf32>
    %cst_113 = arith.constant dense<0xFF800000> : vector<2x8xf32>
    %231 = vector.multi_reduction <maximumf>, %230, %cst_113 [2] : vector<2x8x8xf32> to vector<2x8xf32>
    %232 = vector.shape_cast %231 : vector<2x8xf32> to vector<2x8x1xf32>
    %233 = vector.broadcast %232 : vector<2x8x1xf32> to vector<2x8x8xf32>
    %234 = arith.subf %230, %233 : vector<2x8x8xf32>
    %235 = math.exp %234 : vector<2x8x8xf32>
    %cst_114 = arith.constant dense<0.000000e+00> : vector<2x8xf32>
    %236 = vector.multi_reduction <add>, %235, %cst_114 [2] : vector<2x8x8xf32> to vector<2x8xf32>
    %237 = vector.shape_cast %236 : vector<2x8xf32> to vector<2x8x1xf32>
    %238 = tpu.reciprocal %237 {approx = true} : vector<2x8x1xf32> -> vector<2x8x1xf32>
    %239 = vector.broadcast %238 : vector<2x8x1xf32> to vector<2x8x8xf32>
    %240 = arith.mulf %235, %239 : vector<2x8x8xf32>
    %cst_115 = arith.constant dense<0.000000e+00> : vector<2x8x8xf32>
    %241 = tpu.matmul %240, %229, %cst_115 {dimension_numbers = #tpu.dot_dimension_numbers<[2], [1], [1], [2], [0, 0, 0, 1, 1, 2], [0], [0]>} : vector<2x8x8xf32>, vector<2x8x8xf32>, vector<2x8x8xf32> -> vector<2x8x8xf32>
    %242 = vector.shape_cast %241 : vector<2x8x8xf32> to vector<16x8xf32>
    %243 = tpu.concatenate %185, %204, %223, %242 in 1 : vector<16x8xf32>, vector<16x8xf32>, vector<16x8xf32>, vector<16x8xf32> -> vector<16x32xf32>
    %cst_116 = arith.constant dense<0.000000e+00> : vector<16x32xf32>
    %244 = tpu.matmul %243, %164, %cst_116 {dimension_numbers = #tpu.dot_dimension_numbers<[1], [0], [0], [1], [0, 0, 1, 1], [], []>} : vector<16x32xf32>, vector<32x32xf32>, vector<16x32xf32> -> vector<16x32xf32>
    %245 = vector.broadcast %166 : vector<1x32xf32> to vector<16x32xf32>
    %246 = arith.addf %244, %245 : vector<16x32xf32>
    %c0_117 = arith.constant 0 : index
    %c0_118 = arith.constant 0 : index
    %c0_119 = arith.constant 0 : index
    %247 = vector.load %arg14[%c0_117, %c0_118, %c0_119] : memref<2x1x32xf32, #tpu.memory_space<vmem>>, vector<1x1x32xf32>
    %248 = vector.shape_cast %247 : vector<1x1x32xf32> to vector<1x32xf32>
    %c0_120 = arith.constant 0 : index
    %c0_121 = arith.constant 0 : index
    %c0_122 = arith.constant 0 : index
    %249 = vector.load %arg15[%c0_120, %c0_121, %c0_122] : memref<2x1x32xf32, #tpu.memory_space<vmem>>, vector<1x1x32xf32>
    %250 = vector.shape_cast %249 : vector<1x1x32xf32> to vector<1x32xf32>
    %251 = arith.addf %141, %246 : vector<16x32xf32>
    %cst_123 = arith.constant dense<0.000000e+00> : vector<16xf32>
    %252 = vector.multi_reduction <add>, %251, %cst_123 [1] : vector<16x32xf32> to vector<16xf32>
    %253 = vector.shape_cast %252 : vector<16xf32> to vector<16x1xf32>
    %cst_124 = arith.constant 3.200000e+01 : f32
    %254 = vector.broadcast %cst_124 : f32 to vector<16x1xf32>
    %255 = arith.divf %253, %254 : vector<16x1xf32>
    %256 = arith.mulf %251, %251 : vector<16x32xf32>
    %cst_125 = arith.constant dense<0.000000e+00> : vector<16xf32>
    %257 = vector.multi_reduction <add>, %256, %cst_125 [1] : vector<16x32xf32> to vector<16xf32>
    %258 = vector.shape_cast %257 : vector<16xf32> to vector<16x1xf32>
    %cst_126 = arith.constant 3.200000e+01 : f32
    %259 = vector.broadcast %cst_126 : f32 to vector<16x1xf32>
    %260 = arith.divf %258, %259 : vector<16x1xf32>
    %261 = arith.mulf %255, %255 : vector<16x1xf32>
    %262 = arith.subf %260, %261 : vector<16x1xf32>
    %263 = vector.broadcast %255 : vector<16x1xf32> to vector<16x32xf32>
    %264 = arith.subf %251, %263 : vector<16x32xf32>
    %cst_127 = arith.constant 9.99999974E-6 : f32
    %265 = vector.broadcast %cst_127 : f32 to vector<16x1xf32>
    %266 = arith.addf %262, %265 : vector<16x1xf32>
    %267 = math.rsqrt %266 : vector<16x1xf32>
    %268 = vector.broadcast %267 : vector<16x1xf32> to vector<16x32xf32>
    %269 = arith.mulf %264, %268 : vector<16x32xf32>
    %270 = vector.broadcast %248 : vector<1x32xf32> to vector<16x32xf32>
    %271 = arith.mulf %269, %270 : vector<16x32xf32>
    %272 = vector.broadcast %250 : vector<1x32xf32> to vector<16x32xf32>
    %273 = arith.addf %271, %272 : vector<16x32xf32>
    %c0_128 = arith.constant 0 : index
    %c0_129 = arith.constant 0 : index
    %c0_130 = arith.constant 0 : index
    %274 = vector.load %arg18[%c0_128, %c0_129, %c0_130] : memref<2x32x32xf32, #tpu.memory_space<vmem>>, vector<1x32x32xf32>
    %275 = vector.shape_cast %274 : vector<1x32x32xf32> to vector<32x32xf32>
    %cst_131 = arith.constant dense<0.000000e+00> : vector<16x32xf32>
    %276 = tpu.matmul %273, %275, %cst_131 {dimension_numbers = #tpu.dot_dimension_numbers<[1], [0], [0], [1], [0, 0, 1, 1], [], []>} : vector<16x32xf32>, vector<32x32xf32>, vector<16x32xf32> -> vector<16x32xf32>
    %c0_132 = arith.constant 0 : index
    %c0_133 = arith.constant 0 : index
    %c0_134 = arith.constant 0 : index
    %277 = vector.load %arg19[%c0_132, %c0_133, %c0_134] : memref<2x1x32xf32, #tpu.memory_space<vmem>>, vector<1x1x32xf32>
    %278 = vector.shape_cast %277 : vector<1x1x32xf32> to vector<1x32xf32>
    %279 = vector.broadcast %278 : vector<1x32xf32> to vector<16x32xf32>
    %280 = arith.addf %276, %279 : vector<16x32xf32>
    %cst_135 = arith.constant 0.000000e+00 : f32
    %281 = vector.broadcast %cst_135 : f32 to vector<16x32xf32>
    %282 = arith.maximumf %280, %281 : vector<16x32xf32>
    %c0_136 = arith.constant 0 : index
    %c0_137 = arith.constant 0 : index
    %c0_138 = arith.constant 0 : index
    %283 = vector.load %arg20[%c0_136, %c0_137, %c0_138] : memref<2x32x32xf32, #tpu.memory_space<vmem>>, vector<1x32x32xf32>
    %284 = vector.shape_cast %283 : vector<1x32x32xf32> to vector<32x32xf32>
    %cst_139 = arith.constant dense<0.000000e+00> : vector<16x32xf32>
    %285 = tpu.matmul %282, %284, %cst_139 {dimension_numbers = #tpu.dot_dimension_numbers<[1], [0], [0], [1], [0, 0, 1, 1], [], []>} : vector<16x32xf32>, vector<32x32xf32>, vector<16x32xf32> -> vector<16x32xf32>
    %c0_140 = arith.constant 0 : index
    %c0_141 = arith.constant 0 : index
    %c0_142 = arith.constant 0 : index
    %286 = vector.load %arg21[%c0_140, %c0_141, %c0_142] : memref<2x1x32xf32, #tpu.memory_space<vmem>>, vector<1x1x32xf32>
    %287 = vector.shape_cast %286 : vector<1x1x32xf32> to vector<1x32xf32>
    %288 = vector.broadcast %287 : vector<1x32xf32> to vector<16x32xf32>
    %289 = arith.addf %285, %288 : vector<16x32xf32>
    %c0_143 = arith.constant 0 : index
    %c0_144 = arith.constant 0 : index
    %c0_145 = arith.constant 0 : index
    %290 = vector.load %arg16[%c0_143, %c0_144, %c0_145] : memref<2x1x32xf32, #tpu.memory_space<vmem>>, vector<1x1x32xf32>
    %291 = vector.shape_cast %290 : vector<1x1x32xf32> to vector<1x32xf32>
    %c0_146 = arith.constant 0 : index
    %c0_147 = arith.constant 0 : index
    %c0_148 = arith.constant 0 : index
    %292 = vector.load %arg17[%c0_146, %c0_147, %c0_148] : memref<2x1x32xf32, #tpu.memory_space<vmem>>, vector<1x1x32xf32>
    %293 = vector.shape_cast %292 : vector<1x1x32xf32> to vector<1x32xf32>
    %294 = arith.addf %273, %289 : vector<16x32xf32>
    %cst_149 = arith.constant dense<0.000000e+00> : vector<16xf32>
    %295 = vector.multi_reduction <add>, %294, %cst_149 [1] : vector<16x32xf32> to vector<16xf32>
    %296 = vector.shape_cast %295 : vector<16xf32> to vector<16x1xf32>
    %cst_150 = arith.constant 3.200000e+01 : f32
    %297 = vector.broadcast %cst_150 : f32 to vector<16x1xf32>
    %298 = arith.divf %296, %297 : vector<16x1xf32>
    %299 = arith.mulf %294, %294 : vector<16x32xf32>
    %cst_151 = arith.constant dense<0.000000e+00> : vector<16xf32>
    %300 = vector.multi_reduction <add>, %299, %cst_151 [1] : vector<16x32xf32> to vector<16xf32>
    %301 = vector.shape_cast %300 : vector<16xf32> to vector<16x1xf32>
    %cst_152 = arith.constant 3.200000e+01 : f32
    %302 = vector.broadcast %cst_152 : f32 to vector<16x1xf32>
    %303 = arith.divf %301, %302 : vector<16x1xf32>
    %304 = arith.mulf %298, %298 : vector<16x1xf32>
    %305 = arith.subf %303, %304 : vector<16x1xf32>
    %306 = vector.broadcast %298 : vector<16x1xf32> to vector<16x32xf32>
    %307 = arith.subf %294, %306 : vector<16x32xf32>
    %cst_153 = arith.constant 9.99999974E-6 : f32
    %308 = vector.broadcast %cst_153 : f32 to vector<16x1xf32>
    %309 = arith.addf %305, %308 : vector<16x1xf32>
    %310 = math.rsqrt %309 : vector<16x1xf32>
    %311 = vector.broadcast %310 : vector<16x1xf32> to vector<16x32xf32>
    %312 = arith.mulf %307, %311 : vector<16x32xf32>
    %313 = vector.broadcast %291 : vector<1x32xf32> to vector<16x32xf32>
    %314 = arith.mulf %312, %313 : vector<16x32xf32>
    %315 = vector.broadcast %293 : vector<1x32xf32> to vector<16x32xf32>
    %316 = arith.addf %314, %315 : vector<16x32xf32>
    %c1_154 = arith.constant 1 : index
    %c0_155 = arith.constant 0 : index
    %c0_156 = arith.constant 0 : index
    %c0_157 = arith.constant 0 : index
    %317 = vector.load %arg4[%c1_154, %c0_155, %c0_156, %c0_157] : memref<2x3x32x32xf32, #tpu.memory_space<vmem>>, vector<1x1x32x32xf32>
    %318 = vector.shape_cast %317 : vector<1x1x32x32xf32> to vector<32x32xf32>
    %cst_158 = arith.constant dense<0.000000e+00> : vector<16x32xf32>
    %319 = tpu.matmul %316, %318, %cst_158 {dimension_numbers = #tpu.dot_dimension_numbers<[1], [0], [0], [1], [0, 0, 1, 1], [], []>} : vector<16x32xf32>, vector<32x32xf32>, vector<16x32xf32> -> vector<16x32xf32>
    %c1_159 = arith.constant 1 : index
    %c0_160 = arith.constant 0 : index
    %c0_161 = arith.constant 0 : index
    %c0_162 = arith.constant 0 : index
    %320 = vector.load %arg5[%c1_159, %c0_160, %c0_161, %c0_162] : memref<2x3x1x32xf32, #tpu.memory_space<vmem>>, vector<1x1x1x32xf32>
    %321 = vector.shape_cast %320 : vector<1x1x1x32xf32> to vector<1x32xf32>
    %322 = vector.broadcast %321 : vector<1x32xf32> to vector<16x32xf32>
    %323 = arith.addf %319, %322 : vector<16x32xf32>
    %c1_163 = arith.constant 1 : index
    %c1_164 = arith.constant 1 : index
    %c0_165 = arith.constant 0 : index
    %c0_166 = arith.constant 0 : index
    %324 = vector.load %arg4[%c1_163, %c1_164, %c0_165, %c0_166] : memref<2x3x32x32xf32, #tpu.memory_space<vmem>>, vector<1x1x32x32xf32>
    %325 = vector.shape_cast %324 : vector<1x1x32x32xf32> to vector<32x32xf32>
    %cst_167 = arith.constant dense<0.000000e+00> : vector<16x32xf32>
    %326 = tpu.matmul %316, %325, %cst_167 {dimension_numbers = #tpu.dot_dimension_numbers<[1], [0], [0], [1], [0, 0, 1, 1], [], []>} : vector<16x32xf32>, vector<32x32xf32>, vector<16x32xf32> -> vector<16x32xf32>
    %c1_168 = arith.constant 1 : index
    %c1_169 = arith.constant 1 : index
    %c0_170 = arith.constant 0 : index
    %c0_171 = arith.constant 0 : index
    %327 = vector.load %arg5[%c1_168, %c1_169, %c0_170, %c0_171] : memref<2x3x1x32xf32, #tpu.memory_space<vmem>>, vector<1x1x1x32xf32>
    %328 = vector.shape_cast %327 : vector<1x1x1x32xf32> to vector<1x32xf32>
    %329 = vector.broadcast %328 : vector<1x32xf32> to vector<16x32xf32>
    %330 = arith.addf %326, %329 : vector<16x32xf32>
    %c1_172 = arith.constant 1 : index
    %c2_173 = arith.constant 2 : index
    %c0_174 = arith.constant 0 : index
    %c0_175 = arith.constant 0 : index
    %331 = vector.load %arg4[%c1_172, %c2_173, %c0_174, %c0_175] : memref<2x3x32x32xf32, #tpu.memory_space<vmem>>, vector<1x1x32x32xf32>
    %332 = vector.shape_cast %331 : vector<1x1x32x32xf32> to vector<32x32xf32>
    %cst_176 = arith.constant dense<0.000000e+00> : vector<16x32xf32>
    %333 = tpu.matmul %316, %332, %cst_176 {dimension_numbers = #tpu.dot_dimension_numbers<[1], [0], [0], [1], [0, 0, 1, 1], [], []>} : vector<16x32xf32>, vector<32x32xf32>, vector<16x32xf32> -> vector<16x32xf32>
    %c1_177 = arith.constant 1 : index
    %c2_178 = arith.constant 2 : index
    %c0_179 = arith.constant 0 : index
    %c0_180 = arith.constant 0 : index
    %334 = vector.load %arg5[%c1_177, %c2_178, %c0_179, %c0_180] : memref<2x3x1x32xf32, #tpu.memory_space<vmem>>, vector<1x1x1x32xf32>
    %335 = vector.shape_cast %334 : vector<1x1x1x32xf32> to vector<1x32xf32>
    %336 = vector.broadcast %335 : vector<1x32xf32> to vector<16x32xf32>
    %337 = arith.addf %333, %336 : vector<16x32xf32>
    %c1_181 = arith.constant 1 : index
    %c0_182 = arith.constant 0 : index
    %c0_183 = arith.constant 0 : index
    %338 = vector.load %arg6[%c1_181, %c0_182, %c0_183] : memref<2x32x32xf32, #tpu.memory_space<vmem>>, vector<1x32x32xf32>
    %339 = vector.shape_cast %338 : vector<1x32x32xf32> to vector<32x32xf32>
    %c1_184 = arith.constant 1 : index
    %c0_185 = arith.constant 0 : index
    %c0_186 = arith.constant 0 : index
    %340 = vector.load %arg7[%c1_184, %c0_185, %c0_186] : memref<2x1x32xf32, #tpu.memory_space<vmem>>, vector<1x1x32xf32>
    %341 = vector.shape_cast %340 : vector<1x1x32xf32> to vector<1x32xf32>
    %342 = vector.extract_strided_slice %323 {offsets = [0, 0], sizes = [16, 8], strides = [1, 1]} : vector<16x32xf32> to vector<16x8xf32>
    %343 = vector.shape_cast %342 : vector<16x8xf32> to vector<2x8x8xf32>
    %344 = vector.extract_strided_slice %330 {offsets = [0, 0], sizes = [16, 8], strides = [1, 1]} : vector<16x32xf32> to vector<16x8xf32>
    %345 = vector.shape_cast %344 : vector<16x8xf32> to vector<2x8x8xf32>
    %346 = vector.extract_strided_slice %337 {offsets = [0, 0], sizes = [16, 8], strides = [1, 1]} : vector<16x32xf32> to vector<16x8xf32>
    %347 = vector.shape_cast %346 : vector<16x8xf32> to vector<2x8x8xf32>
    %cst_187 = arith.constant dense<0.000000e+00> : vector<2x8x8xf32>
    %348 = tpu.matmul %343, %345, %cst_187 {dimension_numbers = #tpu.dot_dimension_numbers<[2], [2], [1], [1], [0, 0, 0, 1, 1, 1], [0], [0]>} : vector<2x8x8xf32>, vector<2x8x8xf32>, vector<2x8x8xf32> -> vector<2x8x8xf32>
    %cst_188 = arith.constant dense<0xFF800000> : vector<2x8xf32>
    %349 = vector.multi_reduction <maximumf>, %348, %cst_188 [2] : vector<2x8x8xf32> to vector<2x8xf32>
    %350 = vector.shape_cast %349 : vector<2x8xf32> to vector<2x8x1xf32>
    %351 = vector.broadcast %350 : vector<2x8x1xf32> to vector<2x8x8xf32>
    %352 = arith.subf %348, %351 : vector<2x8x8xf32>
    %353 = math.exp %352 : vector<2x8x8xf32>
    %cst_189 = arith.constant dense<0.000000e+00> : vector<2x8xf32>
    %354 = vector.multi_reduction <add>, %353, %cst_189 [2] : vector<2x8x8xf32> to vector<2x8xf32>
    %355 = vector.shape_cast %354 : vector<2x8xf32> to vector<2x8x1xf32>
    %356 = tpu.reciprocal %355 {approx = true} : vector<2x8x1xf32> -> vector<2x8x1xf32>
    %357 = vector.broadcast %356 : vector<2x8x1xf32> to vector<2x8x8xf32>
    %358 = arith.mulf %353, %357 : vector<2x8x8xf32>
    %cst_190 = arith.constant dense<0.000000e+00> : vector<2x8x8xf32>
    %359 = tpu.matmul %358, %347, %cst_190 {dimension_numbers = #tpu.dot_dimension_numbers<[2], [1], [1], [2], [0, 0, 0, 1, 1, 2], [0], [0]>} : vector<2x8x8xf32>, vector<2x8x8xf32>, vector<2x8x8xf32> -> vector<2x8x8xf32>
    %360 = vector.shape_cast %359 : vector<2x8x8xf32> to vector<16x8xf32>
    %361 = vector.extract_strided_slice %323 {offsets = [0, 8], sizes = [16, 8], strides = [1, 1]} : vector<16x32xf32> to vector<16x8xf32>
    %362 = vector.shape_cast %361 : vector<16x8xf32> to vector<2x8x8xf32>
    %363 = vector.extract_strided_slice %330 {offsets = [0, 8], sizes = [16, 8], strides = [1, 1]} : vector<16x32xf32> to vector<16x8xf32>
    %364 = vector.shape_cast %363 : vector<16x8xf32> to vector<2x8x8xf32>
    %365 = vector.extract_strided_slice %337 {offsets = [0, 8], sizes = [16, 8], strides = [1, 1]} : vector<16x32xf32> to vector<16x8xf32>
    %366 = vector.shape_cast %365 : vector<16x8xf32> to vector<2x8x8xf32>
    %cst_191 = arith.constant dense<0.000000e+00> : vector<2x8x8xf32>
    %367 = tpu.matmul %362, %364, %cst_191 {dimension_numbers = #tpu.dot_dimension_numbers<[2], [2], [1], [1], [0, 0, 0, 1, 1, 1], [0], [0]>} : vector<2x8x8xf32>, vector<2x8x8xf32>, vector<2x8x8xf32> -> vector<2x8x8xf32>
    %cst_192 = arith.constant dense<0xFF800000> : vector<2x8xf32>
    %368 = vector.multi_reduction <maximumf>, %367, %cst_192 [2] : vector<2x8x8xf32> to vector<2x8xf32>
    %369 = vector.shape_cast %368 : vector<2x8xf32> to vector<2x8x1xf32>
    %370 = vector.broadcast %369 : vector<2x8x1xf32> to vector<2x8x8xf32>
    %371 = arith.subf %367, %370 : vector<2x8x8xf32>
    %372 = math.exp %371 : vector<2x8x8xf32>
    %cst_193 = arith.constant dense<0.000000e+00> : vector<2x8xf32>
    %373 = vector.multi_reduction <add>, %372, %cst_193 [2] : vector<2x8x8xf32> to vector<2x8xf32>
    %374 = vector.shape_cast %373 : vector<2x8xf32> to vector<2x8x1xf32>
    %375 = tpu.reciprocal %374 {approx = true} : vector<2x8x1xf32> -> vector<2x8x1xf32>
    %376 = vector.broadcast %375 : vector<2x8x1xf32> to vector<2x8x8xf32>
    %377 = arith.mulf %372, %376 : vector<2x8x8xf32>
    %cst_194 = arith.constant dense<0.000000e+00> : vector<2x8x8xf32>
    %378 = tpu.matmul %377, %366, %cst_194 {dimension_numbers = #tpu.dot_dimension_numbers<[2], [1], [1], [2], [0, 0, 0, 1, 1, 2], [0], [0]>} : vector<2x8x8xf32>, vector<2x8x8xf32>, vector<2x8x8xf32> -> vector<2x8x8xf32>
    %379 = vector.shape_cast %378 : vector<2x8x8xf32> to vector<16x8xf32>
    %380 = vector.extract_strided_slice %323 {offsets = [0, 16], sizes = [16, 8], strides = [1, 1]} : vector<16x32xf32> to vector<16x8xf32>
    %381 = vector.shape_cast %380 : vector<16x8xf32> to vector<2x8x8xf32>
    %382 = vector.extract_strided_slice %330 {offsets = [0, 16], sizes = [16, 8], strides = [1, 1]} : vector<16x32xf32> to vector<16x8xf32>
    %383 = vector.shape_cast %382 : vector<16x8xf32> to vector<2x8x8xf32>
    %384 = vector.extract_strided_slice %337 {offsets = [0, 16], sizes = [16, 8], strides = [1, 1]} : vector<16x32xf32> to vector<16x8xf32>
    %385 = vector.shape_cast %384 : vector<16x8xf32> to vector<2x8x8xf32>
    %cst_195 = arith.constant dense<0.000000e+00> : vector<2x8x8xf32>
    %386 = tpu.matmul %381, %383, %cst_195 {dimension_numbers = #tpu.dot_dimension_numbers<[2], [2], [1], [1], [0, 0, 0, 1, 1, 1], [0], [0]>} : vector<2x8x8xf32>, vector<2x8x8xf32>, vector<2x8x8xf32> -> vector<2x8x8xf32>
    %cst_196 = arith.constant dense<0xFF800000> : vector<2x8xf32>
    %387 = vector.multi_reduction <maximumf>, %386, %cst_196 [2] : vector<2x8x8xf32> to vector<2x8xf32>
    %388 = vector.shape_cast %387 : vector<2x8xf32> to vector<2x8x1xf32>
    %389 = vector.broadcast %388 : vector<2x8x1xf32> to vector<2x8x8xf32>
    %390 = arith.subf %386, %389 : vector<2x8x8xf32>
    %391 = math.exp %390 : vector<2x8x8xf32>
    %cst_197 = arith.constant dense<0.000000e+00> : vector<2x8xf32>
    %392 = vector.multi_reduction <add>, %391, %cst_197 [2] : vector<2x8x8xf32> to vector<2x8xf32>
    %393 = vector.shape_cast %392 : vector<2x8xf32> to vector<2x8x1xf32>
    %394 = tpu.reciprocal %393 {approx = true} : vector<2x8x1xf32> -> vector<2x8x1xf32>
    %395 = vector.broadcast %394 : vector<2x8x1xf32> to vector<2x8x8xf32>
    %396 = arith.mulf %391, %395 : vector<2x8x8xf32>
    %cst_198 = arith.constant dense<0.000000e+00> : vector<2x8x8xf32>
    %397 = tpu.matmul %396, %385, %cst_198 {dimension_numbers = #tpu.dot_dimension_numbers<[2], [1], [1], [2], [0, 0, 0, 1, 1, 2], [0], [0]>} : vector<2x8x8xf32>, vector<2x8x8xf32>, vector<2x8x8xf32> -> vector<2x8x8xf32>
    %398 = vector.shape_cast %397 : vector<2x8x8xf32> to vector<16x8xf32>
    %399 = vector.extract_strided_slice %323 {offsets = [0, 24], sizes = [16, 8], strides = [1, 1]} : vector<16x32xf32> to vector<16x8xf32>
    %400 = vector.shape_cast %399 : vector<16x8xf32> to vector<2x8x8xf32>
    %401 = vector.extract_strided_slice %330 {offsets = [0, 24], sizes = [16, 8], strides = [1, 1]} : vector<16x32xf32> to vector<16x8xf32>
    %402 = vector.shape_cast %401 : vector<16x8xf32> to vector<2x8x8xf32>
    %403 = vector.extract_strided_slice %337 {offsets = [0, 24], sizes = [16, 8], strides = [1, 1]} : vector<16x32xf32> to vector<16x8xf32>
    %404 = vector.shape_cast %403 : vector<16x8xf32> to vector<2x8x8xf32>
    %cst_199 = arith.constant dense<0.000000e+00> : vector<2x8x8xf32>
    %405 = tpu.matmul %400, %402, %cst_199 {dimension_numbers = #tpu.dot_dimension_numbers<[2], [2], [1], [1], [0, 0, 0, 1, 1, 1], [0], [0]>} : vector<2x8x8xf32>, vector<2x8x8xf32>, vector<2x8x8xf32> -> vector<2x8x8xf32>
    %cst_200 = arith.constant dense<0xFF800000> : vector<2x8xf32>
    %406 = vector.multi_reduction <maximumf>, %405, %cst_200 [2] : vector<2x8x8xf32> to vector<2x8xf32>
    %407 = vector.shape_cast %406 : vector<2x8xf32> to vector<2x8x1xf32>
    %408 = vector.broadcast %407 : vector<2x8x1xf32> to vector<2x8x8xf32>
    %409 = arith.subf %405, %408 : vector<2x8x8xf32>
    %410 = math.exp %409 : vector<2x8x8xf32>
    %cst_201 = arith.constant dense<0.000000e+00> : vector<2x8xf32>
    %411 = vector.multi_reduction <add>, %410, %cst_201 [2] : vector<2x8x8xf32> to vector<2x8xf32>
    %412 = vector.shape_cast %411 : vector<2x8xf32> to vector<2x8x1xf32>
    %413 = tpu.reciprocal %412 {approx = true} : vector<2x8x1xf32> -> vector<2x8x1xf32>
    %414 = vector.broadcast %413 : vector<2x8x1xf32> to vector<2x8x8xf32>
    %415 = arith.mulf %410, %414 : vector<2x8x8xf32>
    %cst_202 = arith.constant dense<0.000000e+00> : vector<2x8x8xf32>
    %416 = tpu.matmul %415, %404, %cst_202 {dimension_numbers = #tpu.dot_dimension_numbers<[2], [1], [1], [2], [0, 0, 0, 1, 1, 2], [0], [0]>} : vector<2x8x8xf32>, vector<2x8x8xf32>, vector<2x8x8xf32> -> vector<2x8x8xf32>
    %417 = vector.shape_cast %416 : vector<2x8x8xf32> to vector<16x8xf32>
    %418 = tpu.concatenate %360, %379, %398, %417 in 1 : vector<16x8xf32>, vector<16x8xf32>, vector<16x8xf32>, vector<16x8xf32> -> vector<16x32xf32>
    %cst_203 = arith.constant dense<0.000000e+00> : vector<16x32xf32>
    %419 = tpu.matmul %418, %339, %cst_203 {dimension_numbers = #tpu.dot_dimension_numbers<[1], [0], [0], [1], [0, 0, 1, 1], [], []>} : vector<16x32xf32>, vector<32x32xf32>, vector<16x32xf32> -> vector<16x32xf32>
    %420 = vector.broadcast %341 : vector<1x32xf32> to vector<16x32xf32>
    %421 = arith.addf %419, %420 : vector<16x32xf32>
    %c1_204 = arith.constant 1 : index
    %c0_205 = arith.constant 0 : index
    %c0_206 = arith.constant 0 : index
    %422 = vector.load %arg12[%c1_204, %c0_205, %c0_206] : memref<2x1x32xf32, #tpu.memory_space<vmem>>, vector<1x1x32xf32>
    %423 = vector.shape_cast %422 : vector<1x1x32xf32> to vector<1x32xf32>
    %c1_207 = arith.constant 1 : index
    %c0_208 = arith.constant 0 : index
    %c0_209 = arith.constant 0 : index
    %424 = vector.load %arg13[%c1_207, %c0_208, %c0_209] : memref<2x1x32xf32, #tpu.memory_space<vmem>>, vector<1x1x32xf32>
    %425 = vector.shape_cast %424 : vector<1x1x32xf32> to vector<1x32xf32>
    %426 = arith.addf %316, %421 : vector<16x32xf32>
    %cst_210 = arith.constant dense<0.000000e+00> : vector<16xf32>
    %427 = vector.multi_reduction <add>, %426, %cst_210 [1] : vector<16x32xf32> to vector<16xf32>
    %428 = vector.shape_cast %427 : vector<16xf32> to vector<16x1xf32>
    %cst_211 = arith.constant 3.200000e+01 : f32
    %429 = vector.broadcast %cst_211 : f32 to vector<16x1xf32>
    %430 = arith.divf %428, %429 : vector<16x1xf32>
    %431 = arith.mulf %426, %426 : vector<16x32xf32>
    %cst_212 = arith.constant dense<0.000000e+00> : vector<16xf32>
    %432 = vector.multi_reduction <add>, %431, %cst_212 [1] : vector<16x32xf32> to vector<16xf32>
    %433 = vector.shape_cast %432 : vector<16xf32> to vector<16x1xf32>
    %cst_213 = arith.constant 3.200000e+01 : f32
    %434 = vector.broadcast %cst_213 : f32 to vector<16x1xf32>
    %435 = arith.divf %433, %434 : vector<16x1xf32>
    %436 = arith.mulf %430, %430 : vector<16x1xf32>
    %437 = arith.subf %435, %436 : vector<16x1xf32>
    %438 = vector.broadcast %430 : vector<16x1xf32> to vector<16x32xf32>
    %439 = arith.subf %426, %438 : vector<16x32xf32>
    %cst_214 = arith.constant 9.99999974E-6 : f32
    %440 = vector.broadcast %cst_214 : f32 to vector<16x1xf32>
    %441 = arith.addf %437, %440 : vector<16x1xf32>
    %442 = math.rsqrt %441 : vector<16x1xf32>
    %443 = vector.broadcast %442 : vector<16x1xf32> to vector<16x32xf32>
    %444 = arith.mulf %439, %443 : vector<16x32xf32>
    %445 = vector.broadcast %423 : vector<1x32xf32> to vector<16x32xf32>
    %446 = arith.mulf %444, %445 : vector<16x32xf32>
    %447 = vector.broadcast %425 : vector<1x32xf32> to vector<16x32xf32>
    %448 = arith.addf %446, %447 : vector<16x32xf32>
    %c1_215 = arith.constant 1 : index
    %c0_216 = arith.constant 0 : index
    %c0_217 = arith.constant 0 : index
    %c0_218 = arith.constant 0 : index
    %449 = vector.load %arg8[%c1_215, %c0_216, %c0_217, %c0_218] : memref<2x3x32x32xf32, #tpu.memory_space<vmem>>, vector<1x1x32x32xf32>
    %450 = vector.shape_cast %449 : vector<1x1x32x32xf32> to vector<32x32xf32>
    %cst_219 = arith.constant dense<0.000000e+00> : vector<16x32xf32>
    %451 = tpu.matmul %448, %450, %cst_219 {dimension_numbers = #tpu.dot_dimension_numbers<[1], [0], [0], [1], [0, 0, 1, 1], [], []>} : vector<16x32xf32>, vector<32x32xf32>, vector<16x32xf32> -> vector<16x32xf32>
    %c1_220 = arith.constant 1 : index
    %c0_221 = arith.constant 0 : index
    %c0_222 = arith.constant 0 : index
    %c0_223 = arith.constant 0 : index
    %452 = vector.load %arg9[%c1_220, %c0_221, %c0_222, %c0_223] : memref<2x3x1x32xf32, #tpu.memory_space<vmem>>, vector<1x1x1x32xf32>
    %453 = vector.shape_cast %452 : vector<1x1x1x32xf32> to vector<1x32xf32>
    %454 = vector.broadcast %453 : vector<1x32xf32> to vector<16x32xf32>
    %455 = arith.addf %451, %454 : vector<16x32xf32>
    %c1_224 = arith.constant 1 : index
    %c1_225 = arith.constant 1 : index
    %c0_226 = arith.constant 0 : index
    %c0_227 = arith.constant 0 : index
    %456 = vector.load %arg8[%c1_224, %c1_225, %c0_226, %c0_227] : memref<2x3x32x32xf32, #tpu.memory_space<vmem>>, vector<1x1x32x32xf32>
    %457 = vector.shape_cast %456 : vector<1x1x32x32xf32> to vector<32x32xf32>
    %cst_228 = arith.constant dense<0.000000e+00> : vector<16x32xf32>
    %458 = tpu.matmul %9, %457, %cst_228 {dimension_numbers = #tpu.dot_dimension_numbers<[1], [0], [0], [1], [0, 0, 1, 1], [], []>} : vector<16x32xf32>, vector<32x32xf32>, vector<16x32xf32> -> vector<16x32xf32>
    %c1_229 = arith.constant 1 : index
    %c1_230 = arith.constant 1 : index
    %c0_231 = arith.constant 0 : index
    %c0_232 = arith.constant 0 : index
    %459 = vector.load %arg9[%c1_229, %c1_230, %c0_231, %c0_232] : memref<2x3x1x32xf32, #tpu.memory_space<vmem>>, vector<1x1x1x32xf32>
    %460 = vector.shape_cast %459 : vector<1x1x1x32xf32> to vector<1x32xf32>
    %461 = vector.broadcast %460 : vector<1x32xf32> to vector<16x32xf32>
    %462 = arith.addf %458, %461 : vector<16x32xf32>
    %c1_233 = arith.constant 1 : index
    %c2_234 = arith.constant 2 : index
    %c0_235 = arith.constant 0 : index
    %c0_236 = arith.constant 0 : index
    %463 = vector.load %arg8[%c1_233, %c2_234, %c0_235, %c0_236] : memref<2x3x32x32xf32, #tpu.memory_space<vmem>>, vector<1x1x32x32xf32>
    %464 = vector.shape_cast %463 : vector<1x1x32x32xf32> to vector<32x32xf32>
    %cst_237 = arith.constant dense<0.000000e+00> : vector<16x32xf32>
    %465 = tpu.matmul %9, %464, %cst_237 {dimension_numbers = #tpu.dot_dimension_numbers<[1], [0], [0], [1], [0, 0, 1, 1], [], []>} : vector<16x32xf32>, vector<32x32xf32>, vector<16x32xf32> -> vector<16x32xf32>
    %c1_238 = arith.constant 1 : index
    %c2_239 = arith.constant 2 : index
    %c0_240 = arith.constant 0 : index
    %c0_241 = arith.constant 0 : index
    %466 = vector.load %arg9[%c1_238, %c2_239, %c0_240, %c0_241] : memref<2x3x1x32xf32, #tpu.memory_space<vmem>>, vector<1x1x1x32xf32>
    %467 = vector.shape_cast %466 : vector<1x1x1x32xf32> to vector<1x32xf32>
    %468 = vector.broadcast %467 : vector<1x32xf32> to vector<16x32xf32>
    %469 = arith.addf %465, %468 : vector<16x32xf32>
    %c1_242 = arith.constant 1 : index
    %c0_243 = arith.constant 0 : index
    %c0_244 = arith.constant 0 : index
    %470 = vector.load %arg10[%c1_242, %c0_243, %c0_244] : memref<2x32x32xf32, #tpu.memory_space<vmem>>, vector<1x32x32xf32>
    %471 = vector.shape_cast %470 : vector<1x32x32xf32> to vector<32x32xf32>
    %c1_245 = arith.constant 1 : index
    %c0_246 = arith.constant 0 : index
    %c0_247 = arith.constant 0 : index
    %472 = vector.load %arg11[%c1_245, %c0_246, %c0_247] : memref<2x1x32xf32, #tpu.memory_space<vmem>>, vector<1x1x32xf32>
    %473 = vector.shape_cast %472 : vector<1x1x32xf32> to vector<1x32xf32>
    %474 = vector.extract_strided_slice %455 {offsets = [0, 0], sizes = [16, 8], strides = [1, 1]} : vector<16x32xf32> to vector<16x8xf32>
    %475 = vector.shape_cast %474 : vector<16x8xf32> to vector<2x8x8xf32>
    %476 = vector.extract_strided_slice %462 {offsets = [0, 0], sizes = [16, 8], strides = [1, 1]} : vector<16x32xf32> to vector<16x8xf32>
    %477 = vector.shape_cast %476 : vector<16x8xf32> to vector<2x8x8xf32>
    %478 = vector.extract_strided_slice %469 {offsets = [0, 0], sizes = [16, 8], strides = [1, 1]} : vector<16x32xf32> to vector<16x8xf32>
    %479 = vector.shape_cast %478 : vector<16x8xf32> to vector<2x8x8xf32>
    %cst_248 = arith.constant dense<0.000000e+00> : vector<2x8x8xf32>
    %480 = tpu.matmul %475, %477, %cst_248 {dimension_numbers = #tpu.dot_dimension_numbers<[2], [2], [1], [1], [0, 0, 0, 1, 1, 1], [0], [0]>} : vector<2x8x8xf32>, vector<2x8x8xf32>, vector<2x8x8xf32> -> vector<2x8x8xf32>
    %cst_249 = arith.constant dense<0xFF800000> : vector<2x8xf32>
    %481 = vector.multi_reduction <maximumf>, %480, %cst_249 [2] : vector<2x8x8xf32> to vector<2x8xf32>
    %482 = vector.shape_cast %481 : vector<2x8xf32> to vector<2x8x1xf32>
    %483 = vector.broadcast %482 : vector<2x8x1xf32> to vector<2x8x8xf32>
    %484 = arith.subf %480, %483 : vector<2x8x8xf32>
    %485 = math.exp %484 : vector<2x8x8xf32>
    %cst_250 = arith.constant dense<0.000000e+00> : vector<2x8xf32>
    %486 = vector.multi_reduction <add>, %485, %cst_250 [2] : vector<2x8x8xf32> to vector<2x8xf32>
    %487 = vector.shape_cast %486 : vector<2x8xf32> to vector<2x8x1xf32>
    %488 = tpu.reciprocal %487 {approx = true} : vector<2x8x1xf32> -> vector<2x8x1xf32>
    %489 = vector.broadcast %488 : vector<2x8x1xf32> to vector<2x8x8xf32>
    %490 = arith.mulf %485, %489 : vector<2x8x8xf32>
    %cst_251 = arith.constant dense<0.000000e+00> : vector<2x8x8xf32>
    %491 = tpu.matmul %490, %479, %cst_251 {dimension_numbers = #tpu.dot_dimension_numbers<[2], [1], [1], [2], [0, 0, 0, 1, 1, 2], [0], [0]>} : vector<2x8x8xf32>, vector<2x8x8xf32>, vector<2x8x8xf32> -> vector<2x8x8xf32>
    %492 = vector.shape_cast %491 : vector<2x8x8xf32> to vector<16x8xf32>
    %493 = vector.extract_strided_slice %455 {offsets = [0, 8], sizes = [16, 8], strides = [1, 1]} : vector<16x32xf32> to vector<16x8xf32>
    %494 = vector.shape_cast %493 : vector<16x8xf32> to vector<2x8x8xf32>
    %495 = vector.extract_strided_slice %462 {offsets = [0, 8], sizes = [16, 8], strides = [1, 1]} : vector<16x32xf32> to vector<16x8xf32>
    %496 = vector.shape_cast %495 : vector<16x8xf32> to vector<2x8x8xf32>
    %497 = vector.extract_strided_slice %469 {offsets = [0, 8], sizes = [16, 8], strides = [1, 1]} : vector<16x32xf32> to vector<16x8xf32>
    %498 = vector.shape_cast %497 : vector<16x8xf32> to vector<2x8x8xf32>
    %cst_252 = arith.constant dense<0.000000e+00> : vector<2x8x8xf32>
    %499 = tpu.matmul %494, %496, %cst_252 {dimension_numbers = #tpu.dot_dimension_numbers<[2], [2], [1], [1], [0, 0, 0, 1, 1, 1], [0], [0]>} : vector<2x8x8xf32>, vector<2x8x8xf32>, vector<2x8x8xf32> -> vector<2x8x8xf32>
    %cst_253 = arith.constant dense<0xFF800000> : vector<2x8xf32>
    %500 = vector.multi_reduction <maximumf>, %499, %cst_253 [2] : vector<2x8x8xf32> to vector<2x8xf32>
    %501 = vector.shape_cast %500 : vector<2x8xf32> to vector<2x8x1xf32>
    %502 = vector.broadcast %501 : vector<2x8x1xf32> to vector<2x8x8xf32>
    %503 = arith.subf %499, %502 : vector<2x8x8xf32>
    %504 = math.exp %503 : vector<2x8x8xf32>
    %cst_254 = arith.constant dense<0.000000e+00> : vector<2x8xf32>
    %505 = vector.multi_reduction <add>, %504, %cst_254 [2] : vector<2x8x8xf32> to vector<2x8xf32>
    %506 = vector.shape_cast %505 : vector<2x8xf32> to vector<2x8x1xf32>
    %507 = tpu.reciprocal %506 {approx = true} : vector<2x8x1xf32> -> vector<2x8x1xf32>
    %508 = vector.broadcast %507 : vector<2x8x1xf32> to vector<2x8x8xf32>
    %509 = arith.mulf %504, %508 : vector<2x8x8xf32>
    %cst_255 = arith.constant dense<0.000000e+00> : vector<2x8x8xf32>
    %510 = tpu.matmul %509, %498, %cst_255 {dimension_numbers = #tpu.dot_dimension_numbers<[2], [1], [1], [2], [0, 0, 0, 1, 1, 2], [0], [0]>} : vector<2x8x8xf32>, vector<2x8x8xf32>, vector<2x8x8xf32> -> vector<2x8x8xf32>
    %511 = vector.shape_cast %510 : vector<2x8x8xf32> to vector<16x8xf32>
    %512 = vector.extract_strided_slice %455 {offsets = [0, 16], sizes = [16, 8], strides = [1, 1]} : vector<16x32xf32> to vector<16x8xf32>
    %513 = vector.shape_cast %512 : vector<16x8xf32> to vector<2x8x8xf32>
    %514 = vector.extract_strided_slice %462 {offsets = [0, 16], sizes = [16, 8], strides = [1, 1]} : vector<16x32xf32> to vector<16x8xf32>
    %515 = vector.shape_cast %514 : vector<16x8xf32> to vector<2x8x8xf32>
    %516 = vector.extract_strided_slice %469 {offsets = [0, 16], sizes = [16, 8], strides = [1, 1]} : vector<16x32xf32> to vector<16x8xf32>
    %517 = vector.shape_cast %516 : vector<16x8xf32> to vector<2x8x8xf32>
    %cst_256 = arith.constant dense<0.000000e+00> : vector<2x8x8xf32>
    %518 = tpu.matmul %513, %515, %cst_256 {dimension_numbers = #tpu.dot_dimension_numbers<[2], [2], [1], [1], [0, 0, 0, 1, 1, 1], [0], [0]>} : vector<2x8x8xf32>, vector<2x8x8xf32>, vector<2x8x8xf32> -> vector<2x8x8xf32>
    %cst_257 = arith.constant dense<0xFF800000> : vector<2x8xf32>
    %519 = vector.multi_reduction <maximumf>, %518, %cst_257 [2] : vector<2x8x8xf32> to vector<2x8xf32>
    %520 = vector.shape_cast %519 : vector<2x8xf32> to vector<2x8x1xf32>
    %521 = vector.broadcast %520 : vector<2x8x1xf32> to vector<2x8x8xf32>
    %522 = arith.subf %518, %521 : vector<2x8x8xf32>
    %523 = math.exp %522 : vector<2x8x8xf32>
    %cst_258 = arith.constant dense<0.000000e+00> : vector<2x8xf32>
    %524 = vector.multi_reduction <add>, %523, %cst_258 [2] : vector<2x8x8xf32> to vector<2x8xf32>
    %525 = vector.shape_cast %524 : vector<2x8xf32> to vector<2x8x1xf32>
    %526 = tpu.reciprocal %525 {approx = true} : vector<2x8x1xf32> -> vector<2x8x1xf32>
    %527 = vector.broadcast %526 : vector<2x8x1xf32> to vector<2x8x8xf32>
    %528 = arith.mulf %523, %527 : vector<2x8x8xf32>
    %cst_259 = arith.constant dense<0.000000e+00> : vector<2x8x8xf32>
    %529 = tpu.matmul %528, %517, %cst_259 {dimension_numbers = #tpu.dot_dimension_numbers<[2], [1], [1], [2], [0, 0, 0, 1, 1, 2], [0], [0]>} : vector<2x8x8xf32>, vector<2x8x8xf32>, vector<2x8x8xf32> -> vector<2x8x8xf32>
    %530 = vector.shape_cast %529 : vector<2x8x8xf32> to vector<16x8xf32>
    %531 = vector.extract_strided_slice %455 {offsets = [0, 24], sizes = [16, 8], strides = [1, 1]} : vector<16x32xf32> to vector<16x8xf32>
    %532 = vector.shape_cast %531 : vector<16x8xf32> to vector<2x8x8xf32>
    %533 = vector.extract_strided_slice %462 {offsets = [0, 24], sizes = [16, 8], strides = [1, 1]} : vector<16x32xf32> to vector<16x8xf32>
    %534 = vector.shape_cast %533 : vector<16x8xf32> to vector<2x8x8xf32>
    %535 = vector.extract_strided_slice %469 {offsets = [0, 24], sizes = [16, 8], strides = [1, 1]} : vector<16x32xf32> to vector<16x8xf32>
    %536 = vector.shape_cast %535 : vector<16x8xf32> to vector<2x8x8xf32>
    %cst_260 = arith.constant dense<0.000000e+00> : vector<2x8x8xf32>
    %537 = tpu.matmul %532, %534, %cst_260 {dimension_numbers = #tpu.dot_dimension_numbers<[2], [2], [1], [1], [0, 0, 0, 1, 1, 1], [0], [0]>} : vector<2x8x8xf32>, vector<2x8x8xf32>, vector<2x8x8xf32> -> vector<2x8x8xf32>
    %cst_261 = arith.constant dense<0xFF800000> : vector<2x8xf32>
    %538 = vector.multi_reduction <maximumf>, %537, %cst_261 [2] : vector<2x8x8xf32> to vector<2x8xf32>
    %539 = vector.shape_cast %538 : vector<2x8xf32> to vector<2x8x1xf32>
    %540 = vector.broadcast %539 : vector<2x8x1xf32> to vector<2x8x8xf32>
    %541 = arith.subf %537, %540 : vector<2x8x8xf32>
    %542 = math.exp %541 : vector<2x8x8xf32>
    %cst_262 = arith.constant dense<0.000000e+00> : vector<2x8xf32>
    %543 = vector.multi_reduction <add>, %542, %cst_262 [2] : vector<2x8x8xf32> to vector<2x8xf32>
    %544 = vector.shape_cast %543 : vector<2x8xf32> to vector<2x8x1xf32>
    %545 = tpu.reciprocal %544 {approx = true} : vector<2x8x1xf32> -> vector<2x8x1xf32>
    %546 = vector.broadcast %545 : vector<2x8x1xf32> to vector<2x8x8xf32>
    %547 = arith.mulf %542, %546 : vector<2x8x8xf32>
    %cst_263 = arith.constant dense<0.000000e+00> : vector<2x8x8xf32>
    %548 = tpu.matmul %547, %536, %cst_263 {dimension_numbers = #tpu.dot_dimension_numbers<[2], [1], [1], [2], [0, 0, 0, 1, 1, 2], [0], [0]>} : vector<2x8x8xf32>, vector<2x8x8xf32>, vector<2x8x8xf32> -> vector<2x8x8xf32>
    %549 = vector.shape_cast %548 : vector<2x8x8xf32> to vector<16x8xf32>
    %550 = tpu.concatenate %492, %511, %530, %549 in 1 : vector<16x8xf32>, vector<16x8xf32>, vector<16x8xf32>, vector<16x8xf32> -> vector<16x32xf32>
    %cst_264 = arith.constant dense<0.000000e+00> : vector<16x32xf32>
    %551 = tpu.matmul %550, %471, %cst_264 {dimension_numbers = #tpu.dot_dimension_numbers<[1], [0], [0], [1], [0, 0, 1, 1], [], []>} : vector<16x32xf32>, vector<32x32xf32>, vector<16x32xf32> -> vector<16x32xf32>
    %552 = vector.broadcast %473 : vector<1x32xf32> to vector<16x32xf32>
    %553 = arith.addf %551, %552 : vector<16x32xf32>
    %c1_265 = arith.constant 1 : index
    %c0_266 = arith.constant 0 : index
    %c0_267 = arith.constant 0 : index
    %554 = vector.load %arg14[%c1_265, %c0_266, %c0_267] : memref<2x1x32xf32, #tpu.memory_space<vmem>>, vector<1x1x32xf32>
    %555 = vector.shape_cast %554 : vector<1x1x32xf32> to vector<1x32xf32>
    %c1_268 = arith.constant 1 : index
    %c0_269 = arith.constant 0 : index
    %c0_270 = arith.constant 0 : index
    %556 = vector.load %arg15[%c1_268, %c0_269, %c0_270] : memref<2x1x32xf32, #tpu.memory_space<vmem>>, vector<1x1x32xf32>
    %557 = vector.shape_cast %556 : vector<1x1x32xf32> to vector<1x32xf32>
    %558 = arith.addf %448, %553 : vector<16x32xf32>
    %cst_271 = arith.constant dense<0.000000e+00> : vector<16xf32>
    %559 = vector.multi_reduction <add>, %558, %cst_271 [1] : vector<16x32xf32> to vector<16xf32>
    %560 = vector.shape_cast %559 : vector<16xf32> to vector<16x1xf32>
    %cst_272 = arith.constant 3.200000e+01 : f32
    %561 = vector.broadcast %cst_272 : f32 to vector<16x1xf32>
    %562 = arith.divf %560, %561 : vector<16x1xf32>
    %563 = arith.mulf %558, %558 : vector<16x32xf32>
    %cst_273 = arith.constant dense<0.000000e+00> : vector<16xf32>
    %564 = vector.multi_reduction <add>, %563, %cst_273 [1] : vector<16x32xf32> to vector<16xf32>
    %565 = vector.shape_cast %564 : vector<16xf32> to vector<16x1xf32>
    %cst_274 = arith.constant 3.200000e+01 : f32
    %566 = vector.broadcast %cst_274 : f32 to vector<16x1xf32>
    %567 = arith.divf %565, %566 : vector<16x1xf32>
    %568 = arith.mulf %562, %562 : vector<16x1xf32>
    %569 = arith.subf %567, %568 : vector<16x1xf32>
    %570 = vector.broadcast %562 : vector<16x1xf32> to vector<16x32xf32>
    %571 = arith.subf %558, %570 : vector<16x32xf32>
    %cst_275 = arith.constant 9.99999974E-6 : f32
    %572 = vector.broadcast %cst_275 : f32 to vector<16x1xf32>
    %573 = arith.addf %569, %572 : vector<16x1xf32>
    %574 = math.rsqrt %573 : vector<16x1xf32>
    %575 = vector.broadcast %574 : vector<16x1xf32> to vector<16x32xf32>
    %576 = arith.mulf %571, %575 : vector<16x32xf32>
    %577 = vector.broadcast %555 : vector<1x32xf32> to vector<16x32xf32>
    %578 = arith.mulf %576, %577 : vector<16x32xf32>
    %579 = vector.broadcast %557 : vector<1x32xf32> to vector<16x32xf32>
    %580 = arith.addf %578, %579 : vector<16x32xf32>
    %c1_276 = arith.constant 1 : index
    %c0_277 = arith.constant 0 : index
    %c0_278 = arith.constant 0 : index
    %581 = vector.load %arg18[%c1_276, %c0_277, %c0_278] : memref<2x32x32xf32, #tpu.memory_space<vmem>>, vector<1x32x32xf32>
    %582 = vector.shape_cast %581 : vector<1x32x32xf32> to vector<32x32xf32>
    %cst_279 = arith.constant dense<0.000000e+00> : vector<16x32xf32>
    %583 = tpu.matmul %580, %582, %cst_279 {dimension_numbers = #tpu.dot_dimension_numbers<[1], [0], [0], [1], [0, 0, 1, 1], [], []>} : vector<16x32xf32>, vector<32x32xf32>, vector<16x32xf32> -> vector<16x32xf32>
    %c1_280 = arith.constant 1 : index
    %c0_281 = arith.constant 0 : index
    %c0_282 = arith.constant 0 : index
    %584 = vector.load %arg19[%c1_280, %c0_281, %c0_282] : memref<2x1x32xf32, #tpu.memory_space<vmem>>, vector<1x1x32xf32>
    %585 = vector.shape_cast %584 : vector<1x1x32xf32> to vector<1x32xf32>
    %586 = vector.broadcast %585 : vector<1x32xf32> to vector<16x32xf32>
    %587 = arith.addf %583, %586 : vector<16x32xf32>
    %cst_283 = arith.constant 0.000000e+00 : f32
    %588 = vector.broadcast %cst_283 : f32 to vector<16x32xf32>
    %589 = arith.maximumf %587, %588 : vector<16x32xf32>
    %c1_284 = arith.constant 1 : index
    %c0_285 = arith.constant 0 : index
    %c0_286 = arith.constant 0 : index
    %590 = vector.load %arg20[%c1_284, %c0_285, %c0_286] : memref<2x32x32xf32, #tpu.memory_space<vmem>>, vector<1x32x32xf32>
    %591 = vector.shape_cast %590 : vector<1x32x32xf32> to vector<32x32xf32>
    %cst_287 = arith.constant dense<0.000000e+00> : vector<16x32xf32>
    %592 = tpu.matmul %589, %591, %cst_287 {dimension_numbers = #tpu.dot_dimension_numbers<[1], [0], [0], [1], [0, 0, 1, 1], [], []>} : vector<16x32xf32>, vector<32x32xf32>, vector<16x32xf32> -> vector<16x32xf32>
    %c1_288 = arith.constant 1 : index
    %c0_289 = arith.constant 0 : index
    %c0_290 = arith.constant 0 : index
    %593 = vector.load %arg21[%c1_288, %c0_289, %c0_290] : memref<2x1x32xf32, #tpu.memory_space<vmem>>, vector<1x1x32xf32>
    %594 = vector.shape_cast %593 : vector<1x1x32xf32> to vector<1x32xf32>
    %595 = vector.broadcast %594 : vector<1x32xf32> to vector<16x32xf32>
    %596 = arith.addf %592, %595 : vector<16x32xf32>
    %c1_291 = arith.constant 1 : index
    %c0_292 = arith.constant 0 : index
    %c0_293 = arith.constant 0 : index
    %597 = vector.load %arg16[%c1_291, %c0_292, %c0_293] : memref<2x1x32xf32, #tpu.memory_space<vmem>>, vector<1x1x32xf32>
    %598 = vector.shape_cast %597 : vector<1x1x32xf32> to vector<1x32xf32>
    %c1_294 = arith.constant 1 : index
    %c0_295 = arith.constant 0 : index
    %c0_296 = arith.constant 0 : index
    %599 = vector.load %arg17[%c1_294, %c0_295, %c0_296] : memref<2x1x32xf32, #tpu.memory_space<vmem>>, vector<1x1x32xf32>
    %600 = vector.shape_cast %599 : vector<1x1x32xf32> to vector<1x32xf32>
    %601 = arith.addf %580, %596 : vector<16x32xf32>
    %cst_297 = arith.constant dense<0.000000e+00> : vector<16xf32>
    %602 = vector.multi_reduction <add>, %601, %cst_297 [1] : vector<16x32xf32> to vector<16xf32>
    %603 = vector.shape_cast %602 : vector<16xf32> to vector<16x1xf32>
    %cst_298 = arith.constant 3.200000e+01 : f32
    %604 = vector.broadcast %cst_298 : f32 to vector<16x1xf32>
    %605 = arith.divf %603, %604 : vector<16x1xf32>
    %606 = arith.mulf %601, %601 : vector<16x32xf32>
    %cst_299 = arith.constant dense<0.000000e+00> : vector<16xf32>
    %607 = vector.multi_reduction <add>, %606, %cst_299 [1] : vector<16x32xf32> to vector<16xf32>
    %608 = vector.shape_cast %607 : vector<16xf32> to vector<16x1xf32>
    %cst_300 = arith.constant 3.200000e+01 : f32
    %609 = vector.broadcast %cst_300 : f32 to vector<16x1xf32>
    %610 = arith.divf %608, %609 : vector<16x1xf32>
    %611 = arith.mulf %605, %605 : vector<16x1xf32>
    %612 = arith.subf %610, %611 : vector<16x1xf32>
    %613 = vector.broadcast %605 : vector<16x1xf32> to vector<16x32xf32>
    %614 = arith.subf %601, %613 : vector<16x32xf32>
    %cst_301 = arith.constant 9.99999974E-6 : f32
    %615 = vector.broadcast %cst_301 : f32 to vector<16x1xf32>
    %616 = arith.addf %612, %615 : vector<16x1xf32>
    %617 = math.rsqrt %616 : vector<16x1xf32>
    %618 = vector.broadcast %617 : vector<16x1xf32> to vector<16x32xf32>
    %619 = arith.mulf %614, %618 : vector<16x32xf32>
    %620 = vector.broadcast %598 : vector<1x32xf32> to vector<16x32xf32>
    %621 = arith.mulf %619, %620 : vector<16x32xf32>
    %622 = vector.broadcast %600 : vector<1x32xf32> to vector<16x32xf32>
    %623 = arith.addf %621, %622 : vector<16x32xf32>
    %c0_302 = arith.constant 0 : index
    %c0_303 = arith.constant 0 : index
    %624 = vector.load %arg22[%c0_302, %c0_303] : memref<32x4xf32, #tpu.memory_space<vmem>>, vector<32x4xf32>
    %cst_304 = arith.constant dense<0.000000e+00> : vector<16x4xf32>
    %625 = tpu.matmul %623, %624, %cst_304 {dimension_numbers = #tpu.dot_dimension_numbers<[1], [0], [0], [1], [0, 0, 1, 1], [], []>} : vector<16x32xf32>, vector<32x4xf32>, vector<16x4xf32> -> vector<16x4xf32>
    %c0_305 = arith.constant 0 : index
    %c0_306 = arith.constant 0 : index
    %626 = vector.load %arg23[%c0_305, %c0_306] : memref<1x4xf32, #tpu.memory_space<vmem>>, vector<1x4xf32>
    %627 = vector.broadcast %626 : vector<1x4xf32> to vector<16x4xf32>
    %628 = arith.addf %625, %627 : vector<16x4xf32>
    %cst_307 = arith.constant 0.000000e+00 : f32
    %629 = vector.broadcast %cst_307 : f32 to vector<16x4xf32>
    %630 = arith.subf %629, %628 : vector<16x4xf32>
    %631 = math.exp %630 : vector<16x4xf32>
    %cst_308 = arith.constant 1.000000e+00 : f32
    %632 = vector.broadcast %cst_308 : f32 to vector<16x4xf32>
    %633 = arith.addf %632, %631 : vector<16x4xf32>
    %634 = tpu.reciprocal %633 {approx = true} : vector<16x4xf32> -> vector<16x4xf32>
    %c0_309 = arith.constant 0 : index
    %c0_310 = arith.constant 0 : index
    %635 = vector.load %arg24[%c0_309, %c0_310] : memref<16x4xf32, #tpu.memory_space<vmem>>, vector<16x4xf32>
    tpu.vector_store %arg24[%c0_309, %c0_310], %634 {strides = array<i32>} : memref<16x4xf32, #tpu.memory_space<vmem>>, vector<16x4xf32>,
    return
  }
}

</mosaic_0001>

<llo_original>
// kernel: attention_decoder_forward.1
$region0: #{attention_decoder_forward.1}
  #allocation0 [shape = 'u32[]', space=smem, size = 0x4, offset = 0x4, fixed_abs, tag = 'smem constant byte address 0x4 - core index']
  #allocation1 [shape = 'u32[72,128]{1,0:T(1,128)}', space=vmem, size = 0x9000, scoped, tag = 'internal scratch']
  %s0 = inlined_call_operand.vmem [shape: f32[16,4], index: 0, kind: input, shape index: {}]
  %s1 = inlined_call_operand.vmem [shape: f32[16,4], index: 1, kind: input, shape index: {}]
  %s2 = inlined_call_operand.vmem [shape: f32[4,32], index: 2, kind: input, shape index: {}]
  %s3 = inlined_call_operand.vmem [shape: f32[1,32], index: 3, kind: input, shape index: {}]
  %s4 = inlined_call_operand.hbm [shape: f32[2,3,32,32], index: 4, kind: input, shape index: {}]
  %s5 = inlined_call_operand.vmem [shape: f32[2,3,1,32], index: 5, kind: input, shape index: {}]
  %s6 = inlined_call_operand.vmem [shape: f32[2,32,32], index: 6, kind: input, shape index: {}]
  %s7 = inlined_call_operand.vmem [shape: f32[2,1,32], index: 7, kind: input, shape index: {}]
  %s8 = inlined_call_operand.hbm [shape: f32[2,3,32,32], index: 8, kind: input, shape index: {}]
  %s9 = inlined_call_operand.vmem [shape: f32[2,3,1,32], index: 9, kind: input, shape index: {}]
  %s10 = inlined_call_operand.hbm [shape: f32[2,32,32], index: 10, kind: input, shape index: {}]
  %s11 = inlined_call_operand.vmem [shape: f32[2,1,32], index: 11, kind: input, shape index: {}]
  %s12 = inlined_call_operand.vmem [shape: f32[2,1,32], index: 12, kind: input, shape index: {}]
  %s13 = inlined_call_operand.vmem [shape: f32[2,1,32], index: 13, kind: input, shape index: {}]
  %s14 = inlined_call_operand.vmem [shape: f32[2,1,32], index: 14, kind: input, shape index: {}]
  %s15 = inlined_call_operand.vmem [shape: f32[2,1,32], index: 15, kind: input, shape index: {}]
  %s16 = inlined_call_operand.vmem [shape: f32[2,1,32], index: 16, kind: input, shape index: {}]
  %s17 = inlined_call_operand.vmem [shape: f32[2,1,32], index: 17, kind: input, shape index: {}]
  %s18 = inlined_call_operand.hbm [shape: f32[2,32,32], index: 18, kind: input, shape index: {}]
  %s19 = inlined_call_operand.vmem [shape: f32[2,1,32], index: 19, kind: input, shape index: {}]
  %s20 = inlined_call_operand.hbm [shape: f32[2,32,32], index: 20, kind: input, shape index: {}]
  %s21 = inlined_call_operand.vmem [shape: f32[2,1,32], index: 21, kind: input, shape index: {}]
  %s22 = inlined_call_operand.vmem [shape: f32[32,4], index: 22, kind: input, shape index: {}]
  %s23 = inlined_call_operand.vmem [shape: f32[1,4], index: 23, kind: input, shape index: {}]
  %s24 = inlined_call_operand.vmem [shape: f32[16,4], index: 24, kind: output, shape index: {}]
  %s25 = sld [smem:[#allocation0]]
  $region126: #{attention_decoder_forward.1} parent=0
    _
  %s27 = ssub.s32 1, %s25
  %s28 = scalar_select 0, %s27, %s25
  $region1: #{attention_decoder_forward.1} parent=0
    #allocation2 [shape = 'u8[98304]{0}', space=vmem, size = 0x18000, scoped, tag = 'input window, operand 4, single buffered']
    #allocation3 [shape = 's32[1]{0}', space=sflag, size = 0x4, scoped, tag = 'scoped memory for attention_decoder_forward.1']
    #allocation4 [shape = 'u8[98304]{0}', space=vmem, size = 0x18000, scoped, tag = 'input window, operand 8, single buffered']
    #allocation5 [shape = 's32[1]{0}', space=sflag, size = 0x4, scoped, tag = 'scoped memory for attention_decoder_forward.1']
    #allocation6 [shape = 'u8[32768]{0}', space=vmem, size = 0x8000, scoped, tag = 'input window, operand 10, single buffered']
    #allocation7 [shape = 'u8[32768]{0}', space=vmem, size = 0x8000, scoped, tag = 'input window, operand 18, single buffered']
    #allocation8 [shape = 's32[1]{0}', space=sflag, size = 0x4, scoped, tag = 'scoped memory for attention_decoder_forward.1']
    #allocation9 [shape = 'u8[32768]{0}', space=vmem, size = 0x8000, scoped, tag = 'input window, operand 20, single buffered']
    %29 = vsyncpa [#allocation3], 0
    %30 = vsyncpa [#allocation5], 0
    %31 = vsyncpa [#allocation8], 0
    // Predicated region
    $region2: #{attention_decoder_forward.1} parent=1 // pred_check
      _
    $region3: #{attention_decoder_forward.1} parent=1 // pred_check_branch
      %33 = sbr.rel (0) target = $region5
    $region4: #{attention_decoder_forward.1} parent=1 // pred_region
      _
    $region5: #{attention_decoder_forward.1} parent=1 // pred_fallthru
      _
    // Predicated region
    $region6: #{attention_decoder_forward.1} parent=1 // pred_check
      _
    $region7: #{attention_decoder_forward.1} parent=1 // pred_check_branch
      %35 = sbr.rel (0) target = $region9
    $region8: #{attention_decoder_forward.1} parent=1 // pred_region
      _
    $region9: #{attention_decoder_forward.1} parent=1 // pred_fallthru
      _
    // Predicated region
    $region10: #{attention_decoder_forward.1} parent=1 // pred_check
      _
    $region11: #{attention_decoder_forward.1} parent=1 // pred_check_branch
      %37 = sbr.rel (0) target = $region13
    $region12: #{attention_decoder_forward.1} parent=1 // pred_region
      _
    $region13: #{attention_decoder_forward.1} parent=1 // pred_fallthru
      _
    // Predicated region
    $region14: #{attention_decoder_forward.1} parent=1 // pred_check
      _
    $region15: #{attention_decoder_forward.1} parent=1 // pred_check_branch
      %39 = sbr.rel (0) target = $region17
    $region16: #{attention_decoder_forward.1} parent=1 // pred_region
      _
    $region17: #{attention_decoder_forward.1} parent=1 // pred_fallthru
      _
    // Predicated region
    $region18: #{attention_decoder_forward.1} parent=1 // pred_check
      _
    $region19: #{attention_decoder_forward.1} parent=1 // pred_check_branch
      %41 = sbr.rel (0) target = $region21
    $region20: #{attention_decoder_forward.1} parent=1 // pred_region
      %43 = vsyncadd [#allocation3], 0
      %s44 = sshll.u32 %s4, 4
      %s45 = int_to_ptr.hbm [resolvable:$true] %s44
      %s46 = sshll.u32 [#allocation2], 4
      %s47 = int_to_ptr.vmem [resolvable:$true] %s46
      %52 = dma.hbm_to_vmem [thread:$0]  %s45, 3072, %s47, [#allocation3], 128, 128, 8
    $region21: #{attention_decoder_forward.1} parent=1 // pred_fallthru
      _
    // Predicated region
    $region22: #{attention_decoder_forward.1} parent=1 // pred_check
      _
    $region23: #{attention_decoder_forward.1} parent=1 // pred_check_branch
      %54 = sbr.rel (0) target = $region25
    $region24: #{attention_decoder_forward.1} parent=1 // pred_region
      _
    $region25: #{attention_decoder_forward.1} parent=1 // pred_fallthru
      _
    // Predicated region
    $region26: #{attention_decoder_forward.1} parent=1 // pred_check
      _
    $region27: #{attention_decoder_forward.1} parent=1 // pred_check_branch
      %56 = sbr.rel (0) target = $region29
    $region28: #{attention_decoder_forward.1} parent=1 // pred_region
      _
    $region29: #{attention_decoder_forward.1} parent=1 // pred_fallthru
      _
    // Predicated region
    $region30: #{attention_decoder_forward.1} parent=1 // pred_check
      _
    $region31: #{attention_decoder_forward.1} parent=1 // pred_check_branch
      %58 = sbr.rel (0) target = $region33
    $region32: #{attention_decoder_forward.1} parent=1 // pred_region
      _
    $region33: #{attention_decoder_forward.1} parent=1 // pred_fallthru
      _
    // Predicated region
    $region34: #{attention_decoder_forward.1} parent=1 // pred_check
      _
    $region35: #{attention_decoder_forward.1} parent=1 // pred_check_branch
      %60 = sbr.rel (0) target = $region37
    $region36: #{attention_decoder_forward.1} parent=1 // pred_region
      %62 = vsyncadd [#allocation5], 0
      %s63 = sshll.u32 %s8, 4
      %s64 = int_to_ptr.hbm [resolvable:$true] %s63
      %s65 = sshll.u32 [#allocation4], 4
      %s66 = int_to_ptr.vmem [resolvable:$true] %s65
      %71 = dma.hbm_to_vmem [thread:$0]  %s64, 3072, %s66, [#allocation5], 128, 128, 8
    $region37: #{attention_decoder_forward.1} parent=1 // pred_fallthru
      _
    // Predicated region
    $region38: #{attention_decoder_forward.1} parent=1 // pred_check
      _
    $region39: #{attention_decoder_forward.1} parent=1 // pred_check_branch
      %73 = sbr.rel (0) target = $region41
    $region40: #{attention_decoder_forward.1} parent=1 // pred_region
      _
    $region41: #{attention_decoder_forward.1} parent=1 // pred_fallthru
      _
    // Predicated region
    $region42: #{attention_decoder_forward.1} parent=1 // pred_check
      _
    $region43: #{attention_decoder_forward.1} parent=1 // pred_check_branch
      %75 = sbr.rel (0) target = $region45
    $region44: #{attention_decoder_forward.1} parent=1 // pred_region
      %77 = vsyncadd [#allocation5], 0
      %s78 = sshll.u32 %s10, 4
      %s79 = int_to_ptr.hbm [resolvable:$true] %s78
      %s80 = sshll.u32 [#allocation6], 4
      %s81 = int_to_ptr.vmem [resolvable:$true] %s80
      %86 = dma.hbm_to_vmem [thread:$0]  %s79, 1024, %s81, [#allocation5], 128, 128, 8
    $region45: #{attention_decoder_forward.1} parent=1 // pred_fallthru
      _
    // Predicated region
    $region46: #{attention_decoder_forward.1} parent=1 // pred_check
      _
    $region47: #{attention_decoder_forward.1} parent=1 // pred_check_branch
      %88 = sbr.rel (0) target = $region49
    $region48: #{attention_decoder_forward.1} parent=1 // pred_region
      _
    $region49: #{attention_decoder_forward.1} parent=1 // pred_fallthru
      _
    // Predicated region
    $region50: #{attention_decoder_forward.1} parent=1 // pred_check
      _
    $region51: #{attention_decoder_forward.1} parent=1 // pred_check_branch
      %90 = sbr.rel (0) target = $region53
    $region52: #{attention_decoder_forward.1} parent=1 // pred_region
      _
    $region53: #{attention_decoder_forward.1} parent=1 // pred_fallthru
      _
    // Predicated region
    $region54: #{attention_decoder_forward.1} parent=1 // pred_check
      _
    $region55: #{attention_decoder_forward.1} parent=1 // pred_check_branch
      %92 = sbr.rel (0) target = $region57
    $region56: #{attention_decoder_forward.1} parent=1 // pred_region
      _
    $region57: #{attention_decoder_forward.1} parent=1 // pred_fallthru
      _
    // Predicated region
    $region58: #{attention_decoder_forward.1} parent=1 // pred_check
      _
    $region59: #{attention_decoder_forward.1} parent=1 // pred_check_branch
      %94 = sbr.rel (0) target = $region61
    $region60: #{attention_decoder_forward.1} parent=1 // pred_region
      _
    $region61: #{attention_decoder_forward.1} parent=1 // pred_fallthru
      _
    // Predicated region
    $region62: #{attention_decoder_forward.1} parent=1 // pred_check
      _
    $region63: #{attention_decoder_forward.1} parent=1 // pred_check_branch
      %96 = sbr.rel (0) target = $region65
    $region64: #{attention_decoder_forward.1} parent=1 // pred_region
      _
    $region65: #{attention_decoder_forward.1} parent=1 // pred_fallthru
      _
    // Predicated region
    $region66: #{attention_decoder_forward.1} parent=1 // pred_check
      _
    $region67: #{attention_decoder_forward.1} parent=1 // pred_check_branch
      %98 = sbr.rel (0) target = $region69
    $region68: #{attention_decoder_forward.1} parent=1 // pred_region
      _
    $region69: #{attention_decoder_forward.1} parent=1 // pred_fallthru
      _
    // Predicated region
    $region70: #{attention_decoder_forward.1} parent=1 // pred_check
      _
    $region71: #{attention_decoder_forward.1} parent=1 // pred_check_branch
      %100 = sbr.rel (0) target = $region73
    $region72: #{attention_decoder_forward.1} parent=1 // pred_region
      _
    $region73: #{attention_decoder_forward.1} parent=1 // pred_fallthru
      _
    // Predicated region
    $region74: #{attention_decoder_forward.1} parent=1 // pred_check
      _
    $region75: #{attention_decoder_forward.1} parent=1 // pred_check_branch
      %102 = sbr.rel (0) target = $region77
    $region76: #{attention_decoder_forward.1} parent=1 // pred_region
      %104 = vsyncadd [#allocation8], 0
      %s105 = sshll.u32 %s18, 4
      %s106 = int_to_ptr.hbm [resolvable:$true] %s105
      %s107 = sshll.u32 [#allocation7], 4
      %s108 = int_to_ptr.vmem [resolvable:$true] %s107
      %113 = dma.hbm_to_vmem [thread:$0]  %s106, 1024, %s108, [#allocation8], 128, 128, 8
    $region77: #{attention_decoder_forward.1} parent=1 // pred_fallthru
      _
    // Predicated region
    $region78: #{attention_decoder_forward.1} parent=1 // pred_check
      _
    $region79: #{attention_decoder_forward.1} parent=1 // pred_check_branch
      %115 = sbr.rel (0) target = $region81
    $region80: #{attention_decoder_forward.1} parent=1 // pred_region
      _
    $region81: #{attention_decoder_forward.1} parent=1 // pred_fallthru
      _
    // Predicated region
    $region82: #{attention_decoder_forward.1} parent=1 // pred_check
      _
    $region83: #{attention_decoder_forward.1} parent=1 // pred_check_branch
      %117 = sbr.rel (0) target = $region85
    $region84: #{attention_decoder_forward.1} parent=1 // pred_region
      %119 = vsyncadd [#allocation8], 0
      %s120 = sshll.u32 %s20, 4
      %s121 = int_to_ptr.hbm [resolvable:$true] %s120
      %s122 = sshll.u32 [#allocation9], 4
      %s123 = int_to_ptr.vmem [resolvable:$true] %s122
      %128 = dma.hbm_to_vmem [thread:$0]  %s121, 1024, %s123, [#allocation8], 128, 128, 8
    $region85: #{attention_decoder_forward.1} parent=1 // pred_fallthru
      _
    // Predicated region
    $region86: #{attention_decoder_forward.1} parent=1 // pred_check
      _
    $region87: #{attention_decoder_forward.1} parent=1 // pred_check_branch
      %130 = sbr.rel (0) target = $region89
    $region88: #{attention_decoder_forward.1} parent=1 // pred_region
      _
    $region89: #{attention_decoder_forward.1} parent=1 // pred_fallthru
      _
    // Predicated region
    $region90: #{attention_decoder_forward.1} parent=1 // pred_check
      _
    $region91: #{attention_decoder_forward.1} parent=1 // pred_check_branch
      %132 = sbr.rel (0) target = $region93
    $region92: #{attention_decoder_forward.1} parent=1 // pred_region
      _
    $region93: #{attention_decoder_forward.1} parent=1 // pred_fallthru
      _
    // Predicated region
    $region94: #{attention_decoder_forward.1} parent=1 // pred_check
      _
    $region95: #{attention_decoder_forward.1} parent=1 // pred_check_branch
      %134 = sbr.rel (0) target = $region97
    $region96: #{attention_decoder_forward.1} parent=1 // pred_region
      _
    $region97: #{attention_decoder_forward.1} parent=1 // pred_fallthru
      _
    // Predicated region
    $region98: #{attention_decoder_forward.1} parent=1 // pred_check
      _
    $region99: #{attention_decoder_forward.1} parent=1 // pred_check_branch
      %136 = sbr.rel (0) target = $region101
    $region100: #{attention_decoder_forward.1} parent=1 // pred_region
      %138 = dma.done [#allocation3], 3072
    $region101: #{attention_decoder_forward.1} parent=1 // pred_fallthru
      _
    // Predicated region
    $region102: #{attention_decoder_forward.1} parent=1 // pred_check
      _
    $region103: #{attention_decoder_forward.1} parent=1 // pred_check_branch
      %140 = sbr.rel (0) target = $region105
    $region104: #{attention_decoder_forward.1} parent=1 // pred_region
      %142 = dma.done [#allocation5], 3072
    $region105: #{attention_decoder_forward.1} parent=1 // pred_fallthru
      _
    // Predicated region
    $region106: #{attention_decoder_forward.1} parent=1 // pred_check
      _
    $region107: #{attention_decoder_forward.1} parent=1 // pred_check_branch
      %144 = sbr.rel (0) target = $region109
    $region108: #{attention_decoder_forward.1} parent=1 // pred_region
      %146 = dma.done [#allocation5], 1024
    $region109: #{attention_decoder_forward.1} parent=1 // pred_fallthru
      _
    // Predicated region
    $region110: #{attention_decoder_forward.1} parent=1 // pred_check
      _
    $region111: #{attention_decoder_forward.1} parent=1 // pred_check_branch
      %148 = sbr.rel (0) target = $region113
    $region112: #{attention_decoder_forward.1} parent=1 // pred_region
      %150 = dma.done [#allocation8], 1024
    $region113: #{attention_decoder_forward.1} parent=1 // pred_fallthru
      _
    // Predicated region
    $region114: #{attention_decoder_forward.1} parent=1 // pred_check
      _
    $region115: #{attention_decoder_forward.1} parent=1 // pred_check_branch
      %152 = sbr.rel (0) target = $region117
    $region116: #{attention_decoder_forward.1} parent=1 // pred_region
      %154 = dma.done [#allocation8], 1024
    $region117: #{attention_decoder_forward.1} parent=1 // pred_fallthru
      _
    %v155 = vld [vmem:[%s2] sm:$0xf]
    %v156 = vld [vmem:[%s3] sm:$0x1]
    %v157 = vld [vmem:[%s0] sm:$0xff]
    %v158 = vld [vmem:[%s0 + $0x8] sm:$0xff]
    %v160 = vperm.slane %v156, 0
    %vm162 = vcmask 31744
    %v164 = vsel %vm162, %v157, 0
    %v167 = vsel %vm162, %v158, 0
    %vm169 = vcmask 1043456
    %v171 = vsel %vm169, %v155, 0
    %173 = vmatpush.msra.mxu0 0.0
    %174 = vmatpush.msra.mxu0 0.0
    %175 = vmatpush.msra.mxu0 0.0
    %176 = vmatpush.msra.mxu0 0.0
    %177 = vmatpush.msra.mxu0 0.0
    %178 = vmatpush.msra.mxu0 0.0
    %179 = vmatpush.msra.mxu0 0.0
    %180 = vmatpush.msra.mxu0 0.0
    %181 = vmatpush.msra.mxu0 0.0
    %182 = vmatpush.msra.mxu0 0.0
    %183 = vmatpush.msra.mxu0 0.0
    %184 = vmatpush.msra.mxu0 0.0
    %185 = vmatpush.msra.mxu0 0.0
    %186 = vmatpush.msra.mxu0 0.0
    %187 = vmatpush.msra.mxu0 0.0
    %188 = vmatpush.msra.mxu0 %v171
    %189 = vmatmul.f32.gmra.mxu0 %v164
    %v190 = vpop.f32.mrf.mxu0
    %v191 = vadd.f32 %v160, %v190
    %192 = vmatmul.f32.gmra.mxu0 %v167
    %v193 = vpop.f32.mrf.mxu0
    %v194 = vadd.f32 %v160, %v193
    %195 = vdwg.mxu0
    %v196 = vld [vmem:[%s1] sm:$0xff]
    %v197 = vld [vmem:[%s1 + $0x8] sm:$0xff]
    %v199 = vsel %vm162, %v196, 0
    %v202 = vsel %vm162, %v197, 0
    %204 = vmatpush.msra.mxu0 0.0
    %205 = vmatpush.msra.mxu0 0.0
    %206 = vmatpush.msra.mxu0 0.0
    %207 = vmatpush.msra.mxu0 0.0
    %208 = vmatpush.msra.mxu0 0.0
    %209 = vmatpush.msra.mxu0 0.0
    %210 = vmatpush.msra.mxu0 0.0
    %211 = vmatpush.msra.mxu0 0.0
    %212 = vmatpush.msra.mxu0 0.0
    %213 = vmatpush.msra.mxu0 0.0
    %214 = vmatpush.msra.mxu0 0.0
    %215 = vmatpush.msra.mxu0 0.0
    %216 = vmatpush.msra.mxu0 0.0
    %217 = vmatpush.msra.mxu0 0.0
    %218 = vmatpush.msra.mxu0 0.0
    %219 = vmatpush.msra.mxu0 %v171
    %220 = vmatmul.f32.gmra.mxu0 %v199
    %v221 = vpop.f32.mrf.mxu0
    %v222 = vadd.f32 %v160, %v221
    %223 = vmatmul.f32.gmra.mxu0 %v202
    %v224 = vpop.f32.mrf.mxu0
    %v225 = vadd.f32 %v160, %v224
    %226 = vdwg.mxu0
    %v227 = vld [vmem:[#allocation2] sm:$0xff]
    %v228 = vld [vmem:[#allocation2 + $0x8] sm:$0xff]
    %v229 = vld [vmem:[#allocation2 + $0x10] sm:$0xff]
    %v230 = vld [vmem:[#allocation2 + $0x18] sm:$0xff]
    %v231 = vld [vmem:[%s5] sm:$0x1]
    %v233 = vperm.slane %v231, 0
    %vm235 = vcmask 261120
    %v237 = vsel %vm235, %v191, 0
    %v240 = vsel %vm235, %v194, 0
    %242 = vmatpush.msra.mxu0 0.0
    %243 = vmatpush.msra.mxu0 0.0
    %244 = vmatpush.msra.mxu0 0.0
    %245 = vmatpush.msra.mxu0 0.0
    %246 = vmatpush.msra.mxu0 0.0
    %247 = vmatpush.msra.mxu0 0.0
    %248 = vmatpush.msra.mxu0 0.0
    %249 = vmatpush.msra.mxu0 0.0
    %250 = vmatpush.msra.mxu0 0.0
    %251 = vmatpush.msra.mxu0 0.0
    %252 = vmatpush.msra.mxu0 0.0
    %253 = vmatpush.msra.mxu0 0.0
    %254 = vmatpush.msra.mxu0 %v230
    %255 = vmatpush.msra.mxu0 %v229
    %256 = vmatpush.msra.mxu0 %v228
    %257 = vmatpush.msra.mxu0 %v227
    %258 = vmatmul.f32.gmra.mxu0 %v237
    %v259 = vpop.f32.mrf.mxu0
    %v260 = vadd.f32 %v233, %v259
    %261 = vmatmul.f32.gmra.mxu0 %v240
    %v262 = vpop.f32.mrf.mxu0
    %v263 = vadd.f32 %v233, %v262
    %264 = vdwg.mxu0
    %s265 = scalar_lea.vmem [#allocation2], 32
    %v266 = vld [vmem:[%s265] sm:$0xff]
    %v267 = vld [vmem:[%s265 + $0x8] sm:$0xff]
    %v268 = vld [vmem:[%s265 + $0x10] sm:$0xff]
    %v269 = vld [vmem:[%s265 + $0x18] sm:$0xff]
    %s270 = scalar_lea.vmem %s5, 1
    %v271 = vld [vmem:[%s270] sm:$0x1]
    %v273 = vperm.slane %v271, 0
    %275 = vmatpush.msra.mxu0 0.0
    %276 = vmatpush.msra.mxu0 0.0
    %277 = vmatpush.msra.mxu0 0.0
    %278 = vmatpush.msra.mxu0 0.0
    %279 = vmatpush.msra.mxu0 0.0
    %280 = vmatpush.msra.mxu0 0.0
    %281 = vmatpush.msra.mxu0 0.0
    %282 = vmatpush.msra.mxu0 0.0
    %283 = vmatpush.msra.mxu0 0.0
    %284 = vmatpush.msra.mxu0 0.0
    %285 = vmatpush.msra.mxu0 0.0
    %286 = vmatpush.msra.mxu0 0.0
    %287 = vmatpush.msra.mxu0 %v269
    %288 = vmatpush.msra.mxu0 %v268
    %289 = vmatpush.msra.mxu0 %v267
    %290 = vmatpush.msra.mxu0 %v266
    %291 = vmatmul.f32.gmra.mxu0 %v237
    %v292 = vpop.f32.mrf.mxu0
    %v293 = vadd.f32 %v273, %v292
    %294 = vmatmul.f32.gmra.mxu0 %v240
    %v295 = vpop.f32.mrf.mxu0
    %v296 = vadd.f32 %v273, %v295
    %297 = vdwg.mxu0
    %s298 = scalar_lea.vmem [#allocation2], 64
    %v299 = vld [vmem:[%s298] sm:$0xff]
    %v300 = vld [vmem:[%s298 + $0x8] sm:$0xff]
    %v301 = vld [vmem:[%s298 + $0x10] sm:$0xff]
    %v302 = vld [vmem:[%s298 + $0x18] sm:$0xff]
    %s303 = scalar_lea.vmem %s5, 2
    %v304 = vld [vmem:[%s303] sm:$0x1]
    %v306 = vperm.slane %v304, 0
    %308 = vmatpush.msra.mxu0 0.0
    %309 = vmatpush.msra.mxu0 0.0
    %310 = vmatpush.msra.mxu0 0.0
    %311 = vmatpush.msra.mxu0 0.0
    %312 = vmatpush.msra.mxu0 0.0
    %313 = vmatpush.msra.mxu0 0.0
    %314 = vmatpush.msra.mxu0 0.0
    %315 = vmatpush.msra.mxu0 0.0
    %316 = vmatpush.msra.mxu0 0.0
    %317 = vmatpush.msra.mxu0 0.0
    %318 = vmatpush.msra.mxu0 0.0
    %319 = vmatpush.msra.mxu0 0.0
    %320 = vmatpush.msra.mxu0 %v302
    %321 = vmatpush.msra.mxu0 %v301
    %322 = vmatpush.msra.mxu0 %v300
    %323 = vmatpush.msra.mxu0 %v299
    %324 = vmatmul.f32.gmra.mxu0 %v237
    %v325 = vpop.f32.mrf.mxu0
    %v326 = vadd.f32 %v306, %v325
    %327 = vmatmul.f32.gmra.mxu0 %v240
    %v328 = vpop.f32.mrf.mxu0
    %v329 = vadd.f32 %v306, %v328
    %330 = vdwg.mxu0
    %v331 = vld [vmem:[%s6] sm:$0xff]
    %v332 = vld [vmem:[%s6 + $0x8] sm:$0xff]
    %v333 = vld [vmem:[%s6 + $0x10] sm:$0xff]
    %v334 = vld [vmem:[%s6 + $0x18] sm:$0xff]
    %v335 = vld [vmem:[%s7] sm:$0x1]
    %vm336 = vcmask 64512
    %v338 = vsel %vm336, %v260, 0
    %v341 = vsel %vm336, %v293, 0
    %343 = vmatpush.xpose.msra.mxu0 0.0
    %344 = vmatpush.xpose.msra.mxu0 0.0
    %345 = vmatpush.xpose.msra.mxu0 0.0
    %346 = vmatpush.xpose.msra.mxu0 0.0
    %347 = vmatpush.xpose.msra.mxu0 0.0
    %348 = vmatpush.xpose.msra.mxu0 0.0
    %349 = vmatpush.xpose.msra.mxu0 0.0
    %350 = vmatpush.xpose.msra.mxu0 0.0
    %351 = vmatpush.xpose.msra.mxu0 0.0
    %352 = vmatpush.xpose.msra.mxu0 0.0
    %353 = vmatpush.xpose.msra.mxu0 0.0
    %354 = vmatpush.xpose.msra.mxu0 0.0
    %355 = vmatpush.xpose.msra.mxu0 0.0
    %356 = vmatpush.xpose.msra.mxu0 0.0
    %357 = vmatpush.xpose.msra.mxu0 0.0
    %358 = vmatpush.xpose.msra.mxu0 %v341
    %359 = vmatmul.f32.gmra.mxu0 %v338
    %v360 = vpop.f32.mrf.mxu0
    %v361 = vadd.f32 0.0, %v360
    %362 = vdwg.mxu0
    %v364 = vsel %vm336, %v263, 0
    %v367 = vsel %vm336, %v296, 0
    %369 = vmatpush.xpose.msra.mxu0 0.0
    %370 = vmatpush.xpose.msra.mxu0 0.0
    %371 = vmatpush.xpose.msra.mxu0 0.0
    %372 = vmatpush.xpose.msra.mxu0 0.0
    %373 = vmatpush.xpose.msra.mxu0 0.0
    %374 = vmatpush.xpose.msra.mxu0 0.0
    %375 = vmatpush.xpose.msra.mxu0 0.0
    %376 = vmatpush.xpose.msra.mxu0 0.0
    %377 = vmatpush.xpose.msra.mxu0 0.0
    %378 = vmatpush.xpose.msra.mxu0 0.0
    %379 = vmatpush.xpose.msra.mxu0 0.0
    %380 = vmatpush.xpose.msra.mxu0 0.0
    %381 = vmatpush.xpose.msra.mxu0 0.0
    %382 = vmatpush.xpose.msra.mxu0 0.0
    %383 = vmatpush.xpose.msra.mxu0 0.0
    %384 = vmatpush.xpose.msra.mxu0 %v367
    %385 = vmatmul.f32.gmra.mxu0 %v364
    %v386 = vpop.f32.mrf.mxu0
    %v387 = vadd.f32 0.0, %v386
    %388 = vdwg.mxu0
    %v389 = vsel %vm336, %v361, -inf
    %390 = vmax.xlane.f32.xlu0 %v389
    %v391 = vpop.xlane.xlu0 %390
    %v392 = vsel %vm336, %v387, -inf
    %393 = vmax.xlane.f32.xlu0 %v392
    %v394 = vpop.xlane.xlu0 %393
    %v395 = vsub.f32 %v361, %v391
    %v396 = vsub.f32 %v387, %v394
    %v397 = vmul.f32 %v395, 1.442695
    %v398 = vpow.pop %v397
    %v399 = vmul.f32 %v396, 1.442695
    %v400 = vpow.pop %v399
    %v401 = vsel %vm336, %v398, 0.0
    %402 = vadd.xlane.f32.xlu0 %v401
    %v403 = vpop.xlane.xlu0 %402
    %v404 = vsel %vm336, %v400, 0.0
    %405 = vadd.xlane.f32.xlu0 %v404
    %v406 = vpop.xlane.xlu0 %405
    %v407 = vrcp.pop %v403
    %v408 = vrcp.pop %v406
    %v409 = vmul.f32 %v398, %v407
    %v410 = vmul.f32 %v400, %v408
    %v412 = vsel %vm336, %v409, 0
    %414 = vmatpush.msra.mxu0 0.0
    %415 = vmatpush.msra.mxu0 0.0
    %416 = vmatpush.msra.mxu0 0.0
    %417 = vmatpush.msra.mxu0 0.0
    %418 = vmatpush.msra.mxu0 0.0
    %419 = vmatpush.msra.mxu0 0.0
    %420 = vmatpush.msra.mxu0 0.0
    %421 = vmatpush.msra.mxu0 0.0
    %422 = vmatpush.msra.mxu0 0.0
    %423 = vmatpush.msra.mxu0 0.0
    %424 = vmatpush.msra.mxu0 0.0
    %425 = vmatpush.msra.mxu0 0.0
    %426 = vmatpush.msra.mxu0 0.0
    %427 = vmatpush.msra.mxu0 0.0
    %428 = vmatpush.msra.mxu0 0.0
    %429 = vmatpush.msra.mxu0 %v326
    %430 = vmatmul.f32.gmra.mxu0 %v412
    %v431 = vpop.f32.mrf.mxu0
    %v432 = vadd.f32 0.0, %v431
    %433 = vdwg.mxu0
    %v435 = vsel %vm336, %v410, 0
    %437 = vmatpush.msra.mxu0 0.0
    %438 = vmatpush.msra.mxu0 0.0
    %439 = vmatpush.msra.mxu0 0.0
    %440 = vmatpush.msra.mxu0 0.0
    %441 = vmatpush.msra.mxu0 0.0
    %442 = vmatpush.msra.mxu0 0.0
    %443 = vmatpush.msra.mxu0 0.0
    %444 = vmatpush.msra.mxu0 0.0
    %445 = vmatpush.msra.mxu0 0.0
    %446 = vmatpush.msra.mxu0 0.0
    %447 = vmatpush.msra.mxu0 0.0
    %448 = vmatpush.msra.mxu0 0.0
    %449 = vmatpush.msra.mxu0 0.0
    %450 = vmatpush.msra.mxu0 0.0
    %451 = vmatpush.msra.mxu0 0.0
    %452 = vmatpush.msra.mxu0 %v329
    %453 = vmatmul.f32.gmra.mxu0 %v435
    %v454 = vpop.f32.mrf.mxu0
    %v455 = vadd.f32 0.0, %v454
    %456 = vdwg.mxu0
    %457 = vrot.lane.b32.xlu0 %v260, 120
    %v458 = vpop.permute.xlu0 %457
    %459 = vrot.lane.b32.xlu0 %v293, 120
    %v460 = vpop.permute.xlu0 %459
    %v461 = vsel %vm336, %v458, 0
    %v463 = vsel %vm336, %v460, 0
    %465 = vmatpush.xpose.msra.mxu0 0.0
    %466 = vmatpush.xpose.msra.mxu0 0.0
    %467 = vmatpush.xpose.msra.mxu0 0.0
    %468 = vmatpush.xpose.msra.mxu0 0.0
    %469 = vmatpush.xpose.msra.mxu0 0.0
    %470 = vmatpush.xpose.msra.mxu0 0.0
    %471 = vmatpush.xpose.msra.mxu0 0.0
    %472 = vmatpush.xpose.msra.mxu0 0.0
    %473 = vmatpush.xpose.msra.mxu0 0.0
    %474 = vmatpush.xpose.msra.mxu0 0.0
    %475 = vmatpush.xpose.msra.mxu0 0.0
    %476 = vmatpush.xpose.msra.mxu0 0.0
    %477 = vmatpush.xpose.msra.mxu0 0.0
    %478 = vmatpush.xpose.msra.mxu0 0.0
    %479 = vmatpush.xpose.msra.mxu0 0.0
    %480 = vmatpush.xpose.msra.mxu0 %v463
    %481 = vmatmul.f32.gmra.mxu0 %v461
    %v482 = vpop.f32.mrf.mxu0
    %v483 = vadd.f32 0.0, %v482
    %484 = vdwg.mxu0
    %485 = vrot.lane.b32.xlu0 %v263, 120
    %v486 = vpop.permute.xlu0 %485
    %487 = vrot.lane.b32.xlu0 %v296, 120
    %v488 = vpop.permute.xlu0 %487
    %v489 = vsel %vm336, %v486, 0
    %v491 = vsel %vm336, %v488, 0
    %493 = vmatpush.xpose.msra.mxu0 0.0
    %494 = vmatpush.xpose.msra.mxu0 0.0
    %495 = vmatpush.xpose.msra.mxu0 0.0
    %496 = vmatpush.xpose.msra.mxu0 0.0
    %497 = vmatpush.xpose.msra.mxu0 0.0
    %498 = vmatpush.xpose.msra.mxu0 0.0
    %499 = vmatpush.xpose.msra.mxu0 0.0
    %500 = vmatpush.xpose.msra.mxu0 0.0
    %501 = vmatpush.xpose.msra.mxu0 0.0
    %502 = vmatpush.xpose.msra.mxu0 0.0
    %503 = vmatpush.xpose.msra.mxu0 0.0
    %504 = vmatpush.xpose.msra.mxu0 0.0
    %505 = vmatpush.xpose.msra.mxu0 0.0
    %506 = vmatpush.xpose.msra.mxu0 0.0
    %507 = vmatpush.xpose.msra.mxu0 0.0
    %508 = vmatpush.xpose.msra.mxu0 %v491
    %509 = vmatmul.f32.gmra.mxu0 %v489
    %v510 = vpop.f32.mrf.mxu0
    %v511 = vadd.f32 0.0, %v510
    %512 = vdwg.mxu0
    %v513 = vsel %vm336, %v483, -inf
    %514 = vmax.xlane.f32.xlu0 %v513
    %v515 = vpop.xlane.xlu0 %514
    %v516 = vsel %vm336, %v511, -inf
    %517 = vmax.xlane.f32.xlu0 %v516
    %v518 = vpop.xlane.xlu0 %517
    %v519 = vsub.f32 %v483, %v515
    %v520 = vsub.f32 %v511, %v518
    %v521 = vmul.f32 %v519, 1.442695
    %v522 = vpow.pop %v521
    %v523 = vmul.f32 %v520, 1.442695
    %v524 = vpow.pop %v523
    %v525 = vsel %vm336, %v522, 0.0
    %526 = vadd.xlane.f32.xlu0 %v525
    %v527 = vpop.xlane.xlu0 %526
    %v528 = vsel %vm336, %v524, 0.0
    %529 = vadd.xlane.f32.xlu0 %v528
    %v530 = vpop.xlane.xlu0 %529
    %v531 = vrcp.pop %v527
    %v532 = vrcp.pop %v530
    %v533 = vmul.f32 %v522, %v531
    %v534 = vmul.f32 %v524, %v532
    %536 = vrot.lane.b32.xlu0 %v326, 120
    %v537 = vpop.permute.xlu0 %536
    %v540 = vsel %vm336, %v533, 0
    %542 = vmatpush.msra.mxu0 0.0
    %543 = vmatpush.msra.mxu0 0.0
    %544 = vmatpush.msra.mxu0 0.0
    %545 = vmatpush.msra.mxu0 0.0
    %546 = vmatpush.msra.mxu0 0.0
    %547 = vmatpush.msra.mxu0 0.0
    %548 = vmatpush.msra.mxu0 0.0
    %549 = vmatpush.msra.mxu0 0.0
    %550 = vmatpush.msra.mxu0 0.0
    %551 = vmatpush.msra.mxu0 0.0
    %552 = vmatpush.msra.mxu0 0.0
    %553 = vmatpush.msra.mxu0 0.0
    %554 = vmatpush.msra.mxu0 0.0
    %555 = vmatpush.msra.mxu0 0.0
    %556 = vmatpush.msra.mxu0 0.0
    %557 = vmatpush.msra.mxu0 %v537
    %558 = vmatmul.f32.gmra.mxu0 %v540
    %v559 = vpop.f32.mrf.mxu0
    %v560 = vadd.f32 0.0, %v559
    %561 = vdwg.mxu0
    %563 = vrot.lane.b32.xlu0 %v329, 120
    %v564 = vpop.permute.xlu0 %563
    %v567 = vsel %vm336, %v534, 0
    %569 = vmatpush.msra.mxu0 0.0
    %570 = vmatpush.msra.mxu0 0.0
    %571 = vmatpush.msra.mxu0 0.0
    %572 = vmatpush.msra.mxu0 0.0
    %573 = vmatpush.msra.mxu0 0.0
    %574 = vmatpush.msra.mxu0 0.0
    %575 = vmatpush.msra.mxu0 0.0
    %576 = vmatpush.msra.mxu0 0.0
    %577 = vmatpush.msra.mxu0 0.0
    %578 = vmatpush.msra.mxu0 0.0
    %579 = vmatpush.msra.mxu0 0.0
    %580 = vmatpush.msra.mxu0 0.0
    %581 = vmatpush.msra.mxu0 0.0
    %582 = vmatpush.msra.mxu0 0.0
    %583 = vmatpush.msra.mxu0 0.0
    %584 = vmatpush.msra.mxu0 %v564
    %585 = vmatmul.f32.gmra.mxu0 %v567
    %v586 = vpop.f32.mrf.mxu0
    %v587 = vadd.f32 0.0, %v586
    %588 = vdwg.mxu0
    %589 = vrot.lane.b32.xlu0 %v260, 112
    %v590 = vpop.permute.xlu0 %589
    %591 = vrot.lane.b32.xlu0 %v293, 112
    %v592 = vpop.permute.xlu0 %591
    %v593 = vsel %vm336, %v590, 0
    %v595 = vsel %vm336, %v592, 0
    %597 = vmatpush.xpose.msra.mxu0 0.0
    %598 = vmatpush.xpose.msra.mxu0 0.0
    %599 = vmatpush.xpose.msra.mxu0 0.0
    %600 = vmatpush.xpose.msra.mxu0 0.0
    %601 = vmatpush.xpose.msra.mxu0 0.0
    %602 = vmatpush.xpose.msra.mxu0 0.0
    %603 = vmatpush.xpose.msra.mxu0 0.0
    %604 = vmatpush.xpose.msra.mxu0 0.0
    %605 = vmatpush.xpose.msra.mxu0 0.0
    %606 = vmatpush.xpose.msra.mxu0 0.0
    %607 = vmatpush.xpose.msra.mxu0 0.0
    %608 = vmatpush.xpose.msra.mxu0 0.0
    %609 = vmatpush.xpose.msra.mxu0 0.0
    %610 = vmatpush.xpose.msra.mxu0 0.0
    %611 = vmatpush.xpose.msra.mxu0 0.0
    %612 = vmatpush.xpose.msra.mxu0 %v595
    %613 = vmatmul.f32.gmra.mxu0 %v593
    %v614 = vpop.f32.mrf.mxu0
    %v615 = vadd.f32 0.0, %v614
    %616 = vdwg.mxu0
    %617 = vrot.lane.b32.xlu0 %v263, 112
    %v618 = vpop.permute.xlu0 %617
    %619 = vrot.lane.b32.xlu0 %v296, 112
    %v620 = vpop.permute.xlu0 %619
    %v621 = vsel %vm336, %v618, 0
    %v623 = vsel %vm336, %v620, 0
    %625 = vmatpush.xpose.msra.mxu0 0.0
    %626 = vmatpush.xpose.msra.mxu0 0.0
    %627 = vmatpush.xpose.msra.mxu0 0.0
    %628 = vmatpush.xpose.msra.mxu0 0.0
    %629 = vmatpush.xpose.msra.mxu0 0.0
    %630 = vmatpush.xpose.msra.mxu0 0.0
    %631 = vmatpush.xpose.msra.mxu0 0.0
    %632 = vmatpush.xpose.msra.mxu0 0.0
    %633 = vmatpush.xpose.msra.mxu0 0.0
    %634 = vmatpush.xpose.msra.mxu0 0.0
    %635 = vmatpush.xpose.msra.mxu0 0.0
    %636 = vmatpush.xpose.msra.mxu0 0.0
    %637 = vmatpush.xpose.msra.mxu0 0.0
    %638 = vmatpush.xpose.msra.mxu0 0.0
    %639 = vmatpush.xpose.msra.mxu0 0.0
    %640 = vmatpush.xpose.msra.mxu0 %v623
    %641 = vmatmul.f32.gmra.mxu0 %v621
    %v642 = vpop.f32.mrf.mxu0
    %v643 = vadd.f32 0.0, %v642
    %644 = vdwg.mxu0
    %v645 = vsel %vm336, %v615, -inf
    %646 = vmax.xlane.f32.xlu0 %v645
    %v647 = vpop.xlane.xlu0 %646
    %v648 = vsel %vm336, %v643, -inf
    %649 = vmax.xlane.f32.xlu0 %v648
    %v650 = vpop.xlane.xlu0 %649
    %v651 = vsub.f32 %v615, %v647
    %v652 = vsub.f32 %v643, %v650
    %v653 = vmul.f32 %v651, 1.442695
    %v654 = vpow.pop %v653
    %v655 = vmul.f32 %v652, 1.442695
    %v656 = vpow.pop %v655
    %v657 = vsel %vm336, %v654, 0.0
    %658 = vadd.xlane.f32.xlu0 %v657
    %v659 = vpop.xlane.xlu0 %658
    %v660 = vsel %vm336, %v656, 0.0
    %661 = vadd.xlane.f32.xlu0 %v660
    %v662 = vpop.xlane.xlu0 %661
    %v663 = vrcp.pop %v659
    %v664 = vrcp.pop %v662
    %v665 = vmul.f32 %v654, %v663
    %v666 = vmul.f32 %v656, %v664
    %667 = vrot.lane.b32.xlu0 %v326, 112
    %v668 = vpop.permute.xlu0 %667
    %v671 = vsel %vm336, %v665, 0
    %673 = vmatpush.msra.mxu0 0.0
    %674 = vmatpush.msra.mxu0 0.0
    %675 = vmatpush.msra.mxu0 0.0
    %676 = vmatpush.msra.mxu0 0.0
    %677 = vmatpush.msra.mxu0 0.0
    %678 = vmatpush.msra.mxu0 0.0
    %679 = vmatpush.msra.mxu0 0.0
    %680 = vmatpush.msra.mxu0 0.0
    %681 = vmatpush.msra.mxu0 0.0
    %682 = vmatpush.msra.mxu0 0.0
    %683 = vmatpush.msra.mxu0 0.0
    %684 = vmatpush.msra.mxu0 0.0
    %685 = vmatpush.msra.mxu0 0.0
    %686 = vmatpush.msra.mxu0 0.0
    %687 = vmatpush.msra.mxu0 0.0
    %688 = vmatpush.msra.mxu0 %v668
    %689 = vmatmul.f32.gmra.mxu0 %v671
    %v690 = vpop.f32.mrf.mxu0
    %v691 = vadd.f32 0.0, %v690
    %692 = vdwg.mxu0
    %693 = vrot.lane.b32.xlu0 %v329, 112
    %v694 = vpop.permute.xlu0 %693
    %v697 = vsel %vm336, %v666, 0
    %699 = vmatpush.msra.mxu0 0.0
    %700 = vmatpush.msra.mxu0 0.0
    %701 = vmatpush.msra.mxu0 0.0
    %702 = vmatpush.msra.mxu0 0.0
    %703 = vmatpush.msra.mxu0 0.0
    %704 = vmatpush.msra.mxu0 0.0
    %705 = vmatpush.msra.mxu0 0.0
    %706 = vmatpush.msra.mxu0 0.0
    %707 = vmatpush.msra.mxu0 0.0
    %708 = vmatpush.msra.mxu0 0.0
    %709 = vmatpush.msra.mxu0 0.0
    %710 = vmatpush.msra.mxu0 0.0
    %711 = vmatpush.msra.mxu0 0.0
    %712 = vmatpush.msra.mxu0 0.0
    %713 = vmatpush.msra.mxu0 0.0
    %714 = vmatpush.msra.mxu0 %v694
    %715 = vmatmul.f32.gmra.mxu0 %v697
    %v716 = vpop.f32.mrf.mxu0
    %v717 = vadd.f32 0.0, %v716
    %718 = vdwg.mxu0
    %719 = vrot.lane.b32.xlu0 %v260, 104
    %v720 = vpop.permute.xlu0 %719
    %721 = vrot.lane.b32.xlu0 %v293, 104
    %v722 = vpop.permute.xlu0 %721
    %v723 = vsel %vm336, %v720, 0
    %v725 = vsel %vm336, %v722, 0
    %727 = vmatpush.xpose.msra.mxu0 0.0
    %728 = vmatpush.xpose.msra.mxu0 0.0
    %729 = vmatpush.xpose.msra.mxu0 0.0
    %730 = vmatpush.xpose.msra.mxu0 0.0
    %731 = vmatpush.xpose.msra.mxu0 0.0
    %732 = vmatpush.xpose.msra.mxu0 0.0
    %733 = vmatpush.xpose.msra.mxu0 0.0
    %734 = vmatpush.xpose.msra.mxu0 0.0
    %735 = vmatpush.xpose.msra.mxu0 0.0
    %736 = vmatpush.xpose.msra.mxu0 0.0
    %737 = vmatpush.xpose.msra.mxu0 0.0
    %738 = vmatpush.xpose.msra.mxu0 0.0
    %739 = vmatpush.xpose.msra.mxu0 0.0
    %740 = vmatpush.xpose.msra.mxu0 0.0
    %741 = vmatpush.xpose.msra.mxu0 0.0
    %742 = vmatpush.xpose.msra.mxu0 %v725
    %743 = vmatmul.f32.gmra.mxu0 %v723
    %v744 = vpop.f32.mrf.mxu0
    %v745 = vadd.f32 0.0, %v744
    %746 = vdwg.mxu0
    %747 = vrot.lane.b32.xlu0 %v263, 104
    %v748 = vpop.permute.xlu0 %747
    %749 = vrot.lane.b32.xlu0 %v296, 104
    %v750 = vpop.permute.xlu0 %749
    %v751 = vsel %vm336, %v748, 0
    %v753 = vsel %vm336, %v750, 0
    %755 = vmatpush.xpose.msra.mxu0 0.0
    %756 = vmatpush.xpose.msra.mxu0 0.0
    %757 = vmatpush.xpose.msra.mxu0 0.0
    %758 = vmatpush.xpose.msra.mxu0 0.0
    %759 = vmatpush.xpose.msra.mxu0 0.0
    %760 = vmatpush.xpose.msra.mxu0 0.0
    %761 = vmatpush.xpose.msra.mxu0 0.0
    %762 = vmatpush.xpose.msra.mxu0 0.0
    %763 = vmatpush.xpose.msra.mxu0 0.0
    %764 = vmatpush.xpose.msra.mxu0 0.0
    %765 = vmatpush.xpose.msra.mxu0 0.0
    %766 = vmatpush.xpose.msra.mxu0 0.0
    %767 = vmatpush.xpose.msra.mxu0 0.0
    %768 = vmatpush.xpose.msra.mxu0 0.0
    %769 = vmatpush.xpose.msra.mxu0 0.0
    %770 = vmatpush.xpose.msra.mxu0 %v753
    %771 = vmatmul.f32.gmra.mxu0 %v751
    %v772 = vpop.f32.mrf.mxu0
    %v773 = vadd.f32 0.0, %v772
    %774 = vdwg.mxu0
    %v775 = vsel %vm336, %v745, -inf
    %776 = vmax.xlane.f32.xlu0 %v775
    %v777 = vpop.xlane.xlu0 %776
    %v778 = vsel %vm336, %v773, -inf
    %779 = vmax.xlane.f32.xlu0 %v778
    %v780 = vpop.xlane.xlu0 %779
    %v781 = vsub.f32 %v745, %v777
    %v782 = vsub.f32 %v773, %v780
    %v783 = vmul.f32 %v781, 1.442695
    %v784 = vpow.pop %v783
    %v785 = vmul.f32 %v782, 1.442695
    %v786 = vpow.pop %v785
    %v787 = vsel %vm336, %v784, 0.0
    %788 = vadd.xlane.f32.xlu0 %v787
    %v789 = vpop.xlane.xlu0 %788
    %v790 = vsel %vm336, %v786, 0.0
    %791 = vadd.xlane.f32.xlu0 %v790
    %v792 = vpop.xlane.xlu0 %791
    %v793 = vrcp.pop %v789
    %v794 = vrcp.pop %v792
    %v795 = vmul.f32 %v784, %v793
    %v796 = vmul.f32 %v786, %v794
    %797 = vrot.lane.b32.xlu0 %v326, 104
    %v798 = vpop.permute.xlu0 %797
    %v801 = vsel %vm336, %v795, 0
    %803 = vmatpush.msra.mxu0 0.0
    %804 = vmatpush.msra.mxu0 0.0
    %805 = vmatpush.msra.mxu0 0.0
    %806 = vmatpush.msra.mxu0 0.0
    %807 = vmatpush.msra.mxu0 0.0
    %808 = vmatpush.msra.mxu0 0.0
    %809 = vmatpush.msra.mxu0 0.0
    %810 = vmatpush.msra.mxu0 0.0
    %811 = vmatpush.msra.mxu0 0.0
    %812 = vmatpush.msra.mxu0 0.0
    %813 = vmatpush.msra.mxu0 0.0
    %814 = vmatpush.msra.mxu0 0.0
    %815 = vmatpush.msra.mxu0 0.0
    %816 = vmatpush.msra.mxu0 0.0
    %817 = vmatpush.msra.mxu0 0.0
    %818 = vmatpush.msra.mxu0 %v798
    %819 = vmatmul.f32.gmra.mxu0 %v801
    %v820 = vpop.f32.mrf.mxu0
    %v821 = vadd.f32 0.0, %v820
    %822 = vdwg.mxu0
    %823 = vrot.lane.b32.xlu0 %v329, 104
    %v824 = vpop.permute.xlu0 %823
    %v827 = vsel %vm336, %v796, 0
    %829 = vmatpush.msra.mxu0 0.0
    %830 = vmatpush.msra.mxu0 0.0
    %831 = vmatpush.msra.mxu0 0.0
    %832 = vmatpush.msra.mxu0 0.0
    %833 = vmatpush.msra.mxu0 0.0
    %834 = vmatpush.msra.mxu0 0.0
    %835 = vmatpush.msra.mxu0 0.0
    %836 = vmatpush.msra.mxu0 0.0
    %837 = vmatpush.msra.mxu0 0.0
    %838 = vmatpush.msra.mxu0 0.0
    %839 = vmatpush.msra.mxu0 0.0
    %840 = vmatpush.msra.mxu0 0.0
    %841 = vmatpush.msra.mxu0 0.0
    %842 = vmatpush.msra.mxu0 0.0
    %843 = vmatpush.msra.mxu0 0.0
    %844 = vmatpush.msra.mxu0 %v824
    %845 = vmatmul.f32.gmra.mxu0 %v827
    %v846 = vpop.f32.mrf.mxu0
    %v847 = vadd.f32 0.0, %v846
    %848 = vdwg.mxu0
    %851 = vrot.lane.b32.xlu0 %v560, 8
    %v852 = vpop.permute.xlu0 %851
    %853 = vrot.lane.b32.xlu0 %v587, 8
    %v854 = vpop.permute.xlu0 %853
    %859 = vrot.lane.b32.xlu0 %v691, 16
    %v860 = vpop.permute.xlu0 %859
    %861 = vrot.lane.b32.xlu0 %v717, 16
    %v862 = vpop.permute.xlu0 %861
    %867 = vrot.lane.b32.xlu0 %v821, 24
    %v868 = vpop.permute.xlu0 %867
    %869 = vrot.lane.b32.xlu0 %v847, 24
    %v870 = vpop.permute.xlu0 %869
    %v873 = vsel %vm336, %v432, %v852
    %v874 = vsel %vm336, %v455, %v854
    %vm875 = vcmask 130048
    %v876 = vsel %vm875, %v873, %v860
    %v877 = vsel %vm875, %v874, %v862
    %vm878 = vcmask 195584
    %v879 = vsel %vm878, %v876, %v868
    %v880 = vsel %vm878, %v877, %v870
    %v882 = vperm.slane %v335, 0
    %v885 = vsel %vm235, %v879, 0
    %v888 = vsel %vm235, %v880, 0
    %890 = vmatpush.msra.mxu0 0.0
    %891 = vmatpush.msra.mxu0 0.0
    %892 = vmatpush.msra.mxu0 0.0
    %893 = vmatpush.msra.mxu0 0.0
    %894 = vmatpush.msra.mxu0 0.0
    %895 = vmatpush.msra.mxu0 0.0
    %896 = vmatpush.msra.mxu0 0.0
    %897 = vmatpush.msra.mxu0 0.0
    %898 = vmatpush.msra.mxu0 0.0
    %899 = vmatpush.msra.mxu0 0.0
    %900 = vmatpush.msra.mxu0 0.0
    %901 = vmatpush.msra.mxu0 0.0
    %902 = vmatpush.msra.mxu0 %v334
    %903 = vmatpush.msra.mxu0 %v333
    %904 = vmatpush.msra.mxu0 %v332
    %905 = vmatpush.msra.mxu0 %v331
    %906 = vmatmul.f32.gmra.mxu0 %v885
    %v907 = vpop.f32.mrf.mxu0
    %v908 = vadd.f32 %v882, %v907
    %909 = vmatmul.f32.gmra.mxu0 %v888
    %v910 = vpop.f32.mrf.mxu0
    %v911 = vadd.f32 %v882, %v910
    %912 = vdwg.mxu0
    %v913 = vld [vmem:[%s12] sm:$0x1]
    %v914 = vld [vmem:[%s13] sm:$0x1]
    %v915 = vadd.f32 %v191, %v908
    %v916 = vadd.f32 %v194, %v911
    %v917 = vsel %vm235, %v915, 0.0
    %918 = vadd.xlane.f32.xlu0 %v917
    %v919 = vpop.xlane.xlu0 %918
    %v920 = vsel %vm235, %v916, 0.0
    %921 = vadd.xlane.f32.xlu0 %v920
    %v922 = vpop.xlane.xlu0 %921
    %v923 = vrcp.pop 32.0
    %v924 = vmul.f32 32.0, %v923
    %v925 = vsub.f32 1.0, %v924
    %v926 = vmul.f32 %v923, %v925
    %v927 = vadd.f32 %v923, %v926
    %vm928 = vweird.f32 %v923
    %v929 = vsel %vm928, %v923, %v927
    %v930 = vmul.f32 %v919, %v929
    %v931 = vmul.f32 %v922, %v929
    %v932 = vmul.f32 %v915, %v915
    %v933 = vmul.f32 %v916, %v916
    %v934 = vsel %vm235, %v932, 0.0
    %935 = vadd.xlane.f32.xlu0 %v934
    %v936 = vpop.xlane.xlu0 %935
    %v937 = vsel %vm235, %v933, 0.0
    %938 = vadd.xlane.f32.xlu0 %v937
    %v939 = vpop.xlane.xlu0 %938
    %v940 = vmul.f32 %v936, %v929
    %v941 = vmul.f32 %v939, %v929
    %v942 = vmul.f32 %v930, %v930
    %v943 = vmul.f32 %v931, %v931
    %v944 = vsub.f32 %v940, %v942
    %v945 = vsub.f32 %v941, %v943
    %v946 = vsub.f32 %v915, %v930
    %v947 = vsub.f32 %v916, %v931
    %v948 = vadd.f32 %v944, 1e-05
    %v949 = vadd.f32 %v945, 1e-05
    %v950 = vrsqrt.pop %v948
    %v951 = vmul.f32 %v950, %v948
    %v952 = vmul.f32 %v951, %v950
    %v953 = vmul.f32 0.5, %v952
    %v954 = vsub.f32 1.5, %v953
    %v955 = vmul.f32 %v950, %v954
    %vm956 = vweird.f32 %v948
    %vm957 = vweird.f32 %v950
    %vm958 = vmor %vm956, %vm957
    %v959 = vsel %vm958, %v950, %v955
    %v960 = vrsqrt.pop %v949
    %v961 = vmul.f32 %v960, %v949
    %v962 = vmul.f32 %v961, %v960
    %v963 = vmul.f32 0.5, %v962
    %v964 = vsub.f32 1.5, %v963
    %v965 = vmul.f32 %v960, %v964
    %vm966 = vweird.f32 %v949
    %vm967 = vweird.f32 %v960
    %vm968 = vmor %vm966, %vm967
    %v969 = vsel %vm968, %v960, %v965
    %v970 = vmul.f32 %v946, %v959
    %v971 = vmul.f32 %v947, %v969
    %v973 = vperm.slane %v913, 0
    %v975 = vmul.f32 %v970, %v973
    %v976 = vmul.f32 %v971, %v973
    %v978 = vperm.slane %v914, 0
    %v980 = vadd.f32 %v975, %v978
    %v981 = vadd.f32 %v976, %v978
    %v982 = vld [vmem:[#allocation4] sm:$0xff]
    %v983 = vld [vmem:[#allocation4 + $0x8] sm:$0xff]
    %v984 = vld [vmem:[#allocation4 + $0x10] sm:$0xff]
    %v985 = vld [vmem:[#allocation4 + $0x18] sm:$0xff]
    %v986 = vld [vmem:[%s9] sm:$0x1]
    %v988 = vperm.slane %v986, 0
    %v991 = vsel %vm235, %v980, 0
    %v994 = vsel %vm235, %v981, 0
    %996 = vmatpush.msra.mxu0 0.0
    %997 = vmatpush.msra.mxu0 0.0
    %998 = vmatpush.msra.mxu0 0.0
    %999 = vmatpush.msra.mxu0 0.0
    %1000 = vmatpush.msra.mxu0 0.0
    %1001 = vmatpush.msra.mxu0 0.0
    %1002 = vmatpush.msra.mxu0 0.0
    %1003 = vmatpush.msra.mxu0 0.0
    %1004 = vmatpush.msra.mxu0 0.0
    %1005 = vmatpush.msra.mxu0 0.0
    %1006 = vmatpush.msra.mxu0 0.0
    %1007 = vmatpush.msra.mxu0 0.0
    %1008 = vmatpush.msra.mxu0 %v985
    %1009 = vmatpush.msra.mxu0 %v984
    %1010 = vmatpush.msra.mxu0 %v983
    %1011 = vmatpush.msra.mxu0 %v982
    %1012 = vmatmul.f32.gmra.mxu0 %v991
    %v1013 = vpop.f32.mrf.mxu0
    %v1014 = vadd.f32 %v988, %v1013
    %1015 = vmatmul.f32.gmra.mxu0 %v994
    %v1016 = vpop.f32.mrf.mxu0
    %v1017 = vadd.f32 %v988, %v1016
    %1018 = vdwg.mxu0
    %s1019 = scalar_lea.vmem [#allocation4], 32
    %v1020 = vld [vmem:[%s1019] sm:$0xff]
    %v1021 = vld [vmem:[%s1019 + $0x8] sm:$0xff]
    %v1022 = vld [vmem:[%s1019 + $0x10] sm:$0xff]
    %v1023 = vld [vmem:[%s1019 + $0x18] sm:$0xff]
    %s1024 = scalar_lea.vmem %s9, 1
    %v1025 = vld [vmem:[%s1024] sm:$0x1]
    %v1027 = vperm.slane %v1025, 0
    %v1030 = vsel %vm235, %v222, 0
    %v1033 = vsel %vm235, %v225, 0
    %1035 = vmatpush.msra.mxu0 0.0
    %1036 = vmatpush.msra.mxu0 0.0
    %1037 = vmatpush.msra.mxu0 0.0
    %1038 = vmatpush.msra.mxu0 0.0
    %1039 = vmatpush.msra.mxu0 0.0
    %1040 = vmatpush.msra.mxu0 0.0
    %1041 = vmatpush.msra.mxu0 0.0
    %1042 = vmatpush.msra.mxu0 0.0
    %1043 = vmatpush.msra.mxu0 0.0
    %1044 = vmatpush.msra.mxu0 0.0
    %1045 = vmatpush.msra.mxu0 0.0
    %1046 = vmatpush.msra.mxu0 0.0
    %1047 = vmatpush.msra.mxu0 %v1023
    %1048 = vmatpush.msra.mxu0 %v1022
    %1049 = vmatpush.msra.mxu0 %v1021
    %1050 = vmatpush.msra.mxu0 %v1020
    %1051 = vmatmul.f32.gmra.mxu0 %v1030
    %v1052 = vpop.f32.mrf.mxu0
    %v1053 = vadd.f32 %v1027, %v1052
    %1054 = vmatmul.f32.gmra.mxu0 %v1033
    %v1055 = vpop.f32.mrf.mxu0
    %v1056 = vadd.f32 %v1027, %v1055
    %1057 = vdwg.mxu0
    %s1058 = scalar_lea.vmem [#allocation4], 64
    %v1059 = vld [vmem:[%s1058] sm:$0xff]
    %v1060 = vld [vmem:[%s1058 + $0x8] sm:$0xff]
    %v1061 = vld [vmem:[%s1058 + $0x10] sm:$0xff]
    %v1062 = vld [vmem:[%s1058 + $0x18] sm:$0xff]
    %s1063 = scalar_lea.vmem %s9, 2
    %v1064 = vld [vmem:[%s1063] sm:$0x1]
    %v1066 = vperm.slane %v1064, 0
    %1068 = vmatpush.msra.mxu0 0.0
    %1069 = vmatpush.msra.mxu0 0.0
    %1070 = vmatpush.msra.mxu0 0.0
    %1071 = vmatpush.msra.mxu0 0.0
    %1072 = vmatpush.msra.mxu0 0.0
    %1073 = vmatpush.msra.mxu0 0.0
    %1074 = vmatpush.msra.mxu0 0.0
    %1075 = vmatpush.msra.mxu0 0.0
    %1076 = vmatpush.msra.mxu0 0.0
    %1077 = vmatpush.msra.mxu0 0.0
    %1078 = vmatpush.msra.mxu0 0.0
    %1079 = vmatpush.msra.mxu0 0.0
    %1080 = vmatpush.msra.mxu0 %v1062
    %1081 = vmatpush.msra.mxu0 %v1061
    %1082 = vmatpush.msra.mxu0 %v1060
    %1083 = vmatpush.msra.mxu0 %v1059
    %1084 = vmatmul.f32.gmra.mxu0 %v1030
    %v1085 = vpop.f32.mrf.mxu0
    %v1086 = vadd.f32 %v1066, %v1085
    %1087 = vmatmul.f32.gmra.mxu0 %v1033
    %v1088 = vpop.f32.mrf.mxu0
    %v1089 = vadd.f32 %v1066, %v1088
    %1090 = vdwg.mxu0
    %v1091 = vld [vmem:[#allocation6] sm:$0xff]
    %v1092 = vld [vmem:[#allocation6 + $0x8] sm:$0xff]
    %v1093 = vld [vmem:[#allocation6 + $0x10] sm:$0xff]
    %v1094 = vld [vmem:[#allocation6 + $0x18] sm:$0xff]
    %v1095 = vld [vmem:[%s11] sm:$0x1]
    %v1097 = vsel %vm336, %v1014, 0
    %v1100 = vsel %vm336, %v1053, 0
    %1102 = vmatpush.xpose.msra.mxu0 0.0
    %1103 = vmatpush.xpose.msra.mxu0 0.0
    %1104 = vmatpush.xpose.msra.mxu0 0.0
    %1105 = vmatpush.xpose.msra.mxu0 0.0
    %1106 = vmatpush.xpose.msra.mxu0 0.0
    %1107 = vmatpush.xpose.msra.mxu0 0.0
    %1108 = vmatpush.xpose.msra.mxu0 0.0
    %1109 = vmatpush.xpose.msra.mxu0 0.0
    %1110 = vmatpush.xpose.msra.mxu0 0.0
    %1111 = vmatpush.xpose.msra.mxu0 0.0
    %1112 = vmatpush.xpose.msra.mxu0 0.0
    %1113 = vmatpush.xpose.msra.mxu0 0.0
    %1114 = vmatpush.xpose.msra.mxu0 0.0
    %1115 = vmatpush.xpose.msra.mxu0 0.0
    %1116 = vmatpush.xpose.msra.mxu0 0.0
    %1117 = vmatpush.xpose.msra.mxu0 %v1100
    %1118 = vmatmul.f32.gmra.mxu0 %v1097
    %v1119 = vpop.f32.mrf.mxu0
    %v1120 = vadd.f32 0.0, %v1119
    %1121 = vdwg.mxu0
    %v1123 = vsel %vm336, %v1017, 0
    %v1126 = vsel %vm336, %v1056, 0
    %1128 = vmatpush.xpose.msra.mxu0 0.0
    %1129 = vmatpush.xpose.msra.mxu0 0.0
    %1130 = vmatpush.xpose.msra.mxu0 0.0
    %1131 = vmatpush.xpose.msra.mxu0 0.0
    %1132 = vmatpush.xpose.msra.mxu0 0.0
    %1133 = vmatpush.xpose.msra.mxu0 0.0
    %1134 = vmatpush.xpose.msra.mxu0 0.0
    %1135 = vmatpush.xpose.msra.mxu0 0.0
    %1136 = vmatpush.xpose.msra.mxu0 0.0
    %1137 = vmatpush.xpose.msra.mxu0 0.0
    %1138 = vmatpush.xpose.msra.mxu0 0.0
    %1139 = vmatpush.xpose.msra.mxu0 0.0
    %1140 = vmatpush.xpose.msra.mxu0 0.0
    %1141 = vmatpush.xpose.msra.mxu0 0.0
    %1142 = vmatpush.xpose.msra.mxu0 0.0
    %1143 = vmatpush.xpose.msra.mxu0 %v1126
    %1144 = vmatmul.f32.gmra.mxu0 %v1123
    %v1145 = vpop.f32.mrf.mxu0
    %v1146 = vadd.f32 0.0, %v1145
    %1147 = vdwg.mxu0
    %v1148 = vsel %vm336, %v1120, -inf
    %1149 = vmax.xlane.f32.xlu0 %v1148
    %v1150 = vpop.xlane.xlu0 %1149
    %v1151 = vsel %vm336, %v1146, -inf
    %1152 = vmax.xlane.f32.xlu0 %v1151
    %v1153 = vpop.xlane.xlu0 %1152
    %v1154 = vsub.f32 %v1120, %v1150
    %v1155 = vsub.f32 %v1146, %v1153
    %v1156 = vmul.f32 %v1154, 1.442695
    %v1157 = vpow.pop %v1156
    %v1158 = vmul.f32 %v1155, 1.442695
    %v1159 = vpow.pop %v1158
    %v1160 = vsel %vm336, %v1157, 0.0
    %1161 = vadd.xlane.f32.xlu0 %v1160
    %v1162 = vpop.xlane.xlu0 %1161
    %v1163 = vsel %vm336, %v1159, 0.0
    %1164 = vadd.xlane.f32.xlu0 %v1163
    %v1165 = vpop.xlane.xlu0 %1164
    %v1166 = vrcp.pop %v1162
    %v1167 = vrcp.pop %v1165
    %v1168 = vmul.f32 %v1157, %v1166
    %v1169 = vmul.f32 %v1159, %v1167
    %v1171 = vsel %vm336, %v1168, 0
    %1173 = vmatpush.msra.mxu0 0.0
    %1174 = vmatpush.msra.mxu0 0.0
    %1175 = vmatpush.msra.mxu0 0.0
    %1176 = vmatpush.msra.mxu0 0.0
    %1177 = vmatpush.msra.mxu0 0.0
    %1178 = vmatpush.msra.mxu0 0.0
    %1179 = vmatpush.msra.mxu0 0.0
    %1180 = vmatpush.msra.mxu0 0.0
    %1181 = vmatpush.msra.mxu0 0.0
    %1182 = vmatpush.msra.mxu0 0.0
    %1183 = vmatpush.msra.mxu0 0.0
    %1184 = vmatpush.msra.mxu0 0.0
    %1185 = vmatpush.msra.mxu0 0.0
    %1186 = vmatpush.msra.mxu0 0.0
    %1187 = vmatpush.msra.mxu0 0.0
    %1188 = vmatpush.msra.mxu0 %v1086
    %1189 = vmatmul.f32.gmra.mxu0 %v1171
    %v1190 = vpop.f32.mrf.mxu0
    %v1191 = vadd.f32 0.0, %v1190
    %1192 = vdwg.mxu0
    %v1194 = vsel %vm336, %v1169, 0
    %1196 = vmatpush.msra.mxu0 0.0
    %1197 = vmatpush.msra.mxu0 0.0
    %1198 = vmatpush.msra.mxu0 0.0
    %1199 = vmatpush.msra.mxu0 0.0
    %1200 = vmatpush.msra.mxu0 0.0
    %1201 = vmatpush.msra.mxu0 0.0
    %1202 = vmatpush.msra.mxu0 0.0
    %1203 = vmatpush.msra.mxu0 0.0
    %1204 = vmatpush.msra.mxu0 0.0
    %1205 = vmatpush.msra.mxu0 0.0
    %1206 = vmatpush.msra.mxu0 0.0
    %1207 = vmatpush.msra.mxu0 0.0
    %1208 = vmatpush.msra.mxu0 0.0
    %1209 = vmatpush.msra.mxu0 0.0
    %1210 = vmatpush.msra.mxu0 0.0
    %1211 = vmatpush.msra.mxu0 %v1089
    %1212 = vmatmul.f32.gmra.mxu0 %v1194
    %v1213 = vpop.f32.mrf.mxu0
    %v1214 = vadd.f32 0.0, %v1213
    %1215 = vdwg.mxu0
    %1216 = vrot.lane.b32.xlu0 %v1014, 120
    %v1217 = vpop.permute.xlu0 %1216
    %1218 = vrot.lane.b32.xlu0 %v1053, 120
    %v1219 = vpop.permute.xlu0 %1218
    %v1220 = vsel %vm336, %v1217, 0
    %v1222 = vsel %vm336, %v1219, 0
    %1224 = vmatpush.xpose.msra.mxu0 0.0
    %1225 = vmatpush.xpose.msra.mxu0 0.0
    %1226 = vmatpush.xpose.msra.mxu0 0.0
    %1227 = vmatpush.xpose.msra.mxu0 0.0
    %1228 = vmatpush.xpose.msra.mxu0 0.0
    %1229 = vmatpush.xpose.msra.mxu0 0.0
    %1230 = vmatpush.xpose.msra.mxu0 0.0
    %1231 = vmatpush.xpose.msra.mxu0 0.0
    %1232 = vmatpush.xpose.msra.mxu0 0.0
    %1233 = vmatpush.xpose.msra.mxu0 0.0
    %1234 = vmatpush.xpose.msra.mxu0 0.0
    %1235 = vmatpush.xpose.msra.mxu0 0.0
    %1236 = vmatpush.xpose.msra.mxu0 0.0
    %1237 = vmatpush.xpose.msra.mxu0 0.0
    %1238 = vmatpush.xpose.msra.mxu0 0.0
    %1239 = vmatpush.xpose.msra.mxu0 %v1222
    %1240 = vmatmul.f32.gmra.mxu0 %v1220
    %v1241 = vpop.f32.mrf.mxu0
    %v1242 = vadd.f32 0.0, %v1241
    %1243 = vdwg.mxu0
    %1244 = vrot.lane.b32.xlu0 %v1017, 120
    %v1245 = vpop.permute.xlu0 %1244
    %1246 = vrot.lane.b32.xlu0 %v1056, 120
    %v1247 = vpop.permute.xlu0 %1246
    %v1248 = vsel %vm336, %v1245, 0
    %v1250 = vsel %vm336, %v1247, 0
    %1252 = vmatpush.xpose.msra.mxu0 0.0
    %1253 = vmatpush.xpose.msra.mxu0 0.0
    %1254 = vmatpush.xpose.msra.mxu0 0.0
    %1255 = vmatpush.xpose.msra.mxu0 0.0
    %1256 = vmatpush.xpose.msra.mxu0 0.0
    %1257 = vmatpush.xpose.msra.mxu0 0.0
    %1258 = vmatpush.xpose.msra.mxu0 0.0
    %1259 = vmatpush.xpose.msra.mxu0 0.0
    %1260 = vmatpush.xpose.msra.mxu0 0.0
    %1261 = vmatpush.xpose.msra.mxu0 0.0
    %1262 = vmatpush.xpose.msra.mxu0 0.0
    %1263 = vmatpush.xpose.msra.mxu0 0.0
    %1264 = vmatpush.xpose.msra.mxu0 0.0
    %1265 = vmatpush.xpose.msra.mxu0 0.0
    %1266 = vmatpush.xpose.msra.mxu0 0.0
    %1267 = vmatpush.xpose.msra.mxu0 %v1250
    %1268 = vmatmul.f32.gmra.mxu0 %v1248
    %v1269 = vpop.f32.mrf.mxu0
    %v1270 = vadd.f32 0.0, %v1269
    %1271 = vdwg.mxu0
    %v1272 = vsel %vm336, %v1242, -inf
    %1273 = vmax.xlane.f32.xlu0 %v1272
    %v1274 = vpop.xlane.xlu0 %1273
    %v1275 = vsel %vm336, %v1270, -inf
    %1276 = vmax.xlane.f32.xlu0 %v1275
    %v1277 = vpop.xlane.xlu0 %1276
    %v1278 = vsub.f32 %v1242, %v1274
    %v1279 = vsub.f32 %v1270, %v1277
    %v1280 = vmul.f32 %v1278, 1.442695
    %v1281 = vpow.pop %v1280
    %v1282 = vmul.f32 %v1279, 1.442695
    %v1283 = vpow.pop %v1282
    %v1284 = vsel %vm336, %v1281, 0.0
    %1285 = vadd.xlane.f32.xlu0 %v1284
    %v1286 = vpop.xlane.xlu0 %1285
    %v1287 = vsel %vm336, %v1283, 0.0
    %1288 = vadd.xlane.f32.xlu0 %v1287
    %v1289 = vpop.xlane.xlu0 %1288
    %v1290 = vrcp.pop %v1286
    %v1291 = vrcp.pop %v1289
    %v1292 = vmul.f32 %v1281, %v1290
    %v1293 = vmul.f32 %v1283, %v1291
    %1295 = vrot.lane.b32.xlu0 %v1086, 120
    %v1296 = vpop.permute.xlu0 %1295
    %v1299 = vsel %vm336, %v1292, 0
    %1301 = vmatpush.msra.mxu0 0.0
    %1302 = vmatpush.msra.mxu0 0.0
    %1303 = vmatpush.msra.mxu0 0.0
    %1304 = vmatpush.msra.mxu0 0.0
    %1305 = vmatpush.msra.mxu0 0.0
    %1306 = vmatpush.msra.mxu0 0.0
    %1307 = vmatpush.msra.mxu0 0.0
    %1308 = vmatpush.msra.mxu0 0.0
    %1309 = vmatpush.msra.mxu0 0.0
    %1310 = vmatpush.msra.mxu0 0.0
    %1311 = vmatpush.msra.mxu0 0.0
    %1312 = vmatpush.msra.mxu0 0.0
    %1313 = vmatpush.msra.mxu0 0.0
    %1314 = vmatpush.msra.mxu0 0.0
    %1315 = vmatpush.msra.mxu0 0.0
    %1316 = vmatpush.msra.mxu0 %v1296
    %1317 = vmatmul.f32.gmra.mxu0 %v1299
    %v1318 = vpop.f32.mrf.mxu0
    %v1319 = vadd.f32 0.0, %v1318
    %1320 = vdwg.mxu0
    %1322 = vrot.lane.b32.xlu0 %v1089, 120
    %v1323 = vpop.permute.xlu0 %1322
    %v1326 = vsel %vm336, %v1293, 0
    %1328 = vmatpush.msra.mxu0 0.0
    %1329 = vmatpush.msra.mxu0 0.0
    %1330 = vmatpush.msra.mxu0 0.0
    %1331 = vmatpush.msra.mxu0 0.0
    %1332 = vmatpush.msra.mxu0 0.0
    %1333 = vmatpush.msra.mxu0 0.0
    %1334 = vmatpush.msra.mxu0 0.0
    %1335 = vmatpush.msra.mxu0 0.0
    %1336 = vmatpush.msra.mxu0 0.0
    %1337 = vmatpush.msra.mxu0 0.0
    %1338 = vmatpush.msra.mxu0 0.0
    %1339 = vmatpush.msra.mxu0 0.0
    %1340 = vmatpush.msra.mxu0 0.0
    %1341 = vmatpush.msra.mxu0 0.0
    %1342 = vmatpush.msra.mxu0 0.0
    %1343 = vmatpush.msra.mxu0 %v1323
    %1344 = vmatmul.f32.gmra.mxu0 %v1326
    %v1345 = vpop.f32.mrf.mxu0
    %v1346 = vadd.f32 0.0, %v1345
    %1347 = vdwg.mxu0
    %1348 = vrot.lane.b32.xlu0 %v1014, 112
    %v1349 = vpop.permute.xlu0 %1348
    %1350 = vrot.lane.b32.xlu0 %v1053, 112
    %v1351 = vpop.permute.xlu0 %1350
    %v1352 = vsel %vm336, %v1349, 0
    %v1354 = vsel %vm336, %v1351, 0
    %1356 = vmatpush.xpose.msra.mxu0 0.0
    %1357 = vmatpush.xpose.msra.mxu0 0.0
    %1358 = vmatpush.xpose.msra.mxu0 0.0
    %1359 = vmatpush.xpose.msra.mxu0 0.0
    %1360 = vmatpush.xpose.msra.mxu0 0.0
    %1361 = vmatpush.xpose.msra.mxu0 0.0
    %1362 = vmatpush.xpose.msra.mxu0 0.0
    %1363 = vmatpush.xpose.msra.mxu0 0.0
    %1364 = vmatpush.xpose.msra.mxu0 0.0
    %1365 = vmatpush.xpose.msra.mxu0 0.0
    %1366 = vmatpush.xpose.msra.mxu0 0.0
    %1367 = vmatpush.xpose.msra.mxu0 0.0
    %1368 = vmatpush.xpose.msra.mxu0 0.0
    %1369 = vmatpush.xpose.msra.mxu0 0.0
    %1370 = vmatpush.xpose.msra.mxu0 0.0
    %1371 = vmatpush.xpose.msra.mxu0 %v1354
    %1372 = vmatmul.f32.gmra.mxu0 %v1352
    %v1373 = vpop.f32.mrf.mxu0
    %v1374 = vadd.f32 0.0, %v1373
    %1375 = vdwg.mxu0
    %1376 = vrot.lane.b32.xlu0 %v1017, 112
    %v1377 = vpop.permute.xlu0 %1376
    %1378 = vrot.lane.b32.xlu0 %v1056, 112
    %v1379 = vpop.permute.xlu0 %1378
    %v1380 = vsel %vm336, %v1377, 0
    %v1382 = vsel %vm336, %v1379, 0
    %1384 = vmatpush.xpose.msra.mxu0 0.0
    %1385 = vmatpush.xpose.msra.mxu0 0.0
    %1386 = vmatpush.xpose.msra.mxu0 0.0
    %1387 = vmatpush.xpose.msra.mxu0 0.0
    %1388 = vmatpush.xpose.msra.mxu0 0.0
    %1389 = vmatpush.xpose.msra.mxu0 0.0
    %1390 = vmatpush.xpose.msra.mxu0 0.0
    %1391 = vmatpush.xpose.msra.mxu0 0.0
    %1392 = vmatpush.xpose.msra.mxu0 0.0
    %1393 = vmatpush.xpose.msra.mxu0 0.0
    %1394 = vmatpush.xpose.msra.mxu0 0.0
    %1395 = vmatpush.xpose.msra.mxu0 0.0
    %1396 = vmatpush.xpose.msra.mxu0 0.0
    %1397 = vmatpush.xpose.msra.mxu0 0.0
    %1398 = vmatpush.xpose.msra.mxu0 0.0
    %1399 = vmatpush.xpose.msra.mxu0 %v1382
    %1400 = vmatmul.f32.gmra.mxu0 %v1380
    %v1401 = vpop.f32.mrf.mxu0
    %v1402 = vadd.f32 0.0, %v1401
    %1403 = vdwg.mxu0
    %v1404 = vsel %vm336, %v1374, -inf
    %1405 = vmax.xlane.f32.xlu0 %v1404
    %v1406 = vpop.xlane.xlu0 %1405
    %v1407 = vsel %vm336, %v1402, -inf
    %1408 = vmax.xlane.f32.xlu0 %v1407
    %v1409 = vpop.xlane.xlu0 %1408
    %v1410 = vsub.f32 %v1374, %v1406
    %v1411 = vsub.f32 %v1402, %v1409
    %v1412 = vmul.f32 %v1410, 1.442695
    %v1413 = vpow.pop %v1412
    %v1414 = vmul.f32 %v1411, 1.442695
    %v1415 = vpow.pop %v1414
    %v1416 = vsel %vm336, %v1413, 0.0
    %1417 = vadd.xlane.f32.xlu0 %v1416
    %v1418 = vpop.xlane.xlu0 %1417
    %v1419 = vsel %vm336, %v1415, 0.0
    %1420 = vadd.xlane.f32.xlu0 %v1419
    %v1421 = vpop.xlane.xlu0 %1420
    %v1422 = vrcp.pop %v1418
    %v1423 = vrcp.pop %v1421
    %v1424 = vmul.f32 %v1413, %v1422
    %v1425 = vmul.f32 %v1415, %v1423
    %1426 = vrot.lane.b32.xlu0 %v1086, 112
    %v1427 = vpop.permute.xlu0 %1426
    %v1430 = vsel %vm336, %v1424, 0
    %1432 = vmatpush.msra.mxu0 0.0
    %1433 = vmatpush.msra.mxu0 0.0
    %1434 = vmatpush.msra.mxu0 0.0
    %1435 = vmatpush.msra.mxu0 0.0
    %1436 = vmatpush.msra.mxu0 0.0
    %1437 = vmatpush.msra.mxu0 0.0
    %1438 = vmatpush.msra.mxu0 0.0
    %1439 = vmatpush.msra.mxu0 0.0
    %1440 = vmatpush.msra.mxu0 0.0
    %1441 = vmatpush.msra.mxu0 0.0
    %1442 = vmatpush.msra.mxu0 0.0
    %1443 = vmatpush.msra.mxu0 0.0
    %1444 = vmatpush.msra.mxu0 0.0
    %1445 = vmatpush.msra.mxu0 0.0
    %1446 = vmatpush.msra.mxu0 0.0
    %1447 = vmatpush.msra.mxu0 %v1427
    %1448 = vmatmul.f32.gmra.mxu0 %v1430
    %v1449 = vpop.f32.mrf.mxu0
    %v1450 = vadd.f32 0.0, %v1449
    %1451 = vdwg.mxu0
    %1452 = vrot.lane.b32.xlu0 %v1089, 112
    %v1453 = vpop.permute.xlu0 %1452
    %v1456 = vsel %vm336, %v1425, 0
    %1458 = vmatpush.msra.mxu0 0.0
    %1459 = vmatpush.msra.mxu0 0.0
    %1460 = vmatpush.msra.mxu0 0.0
    %1461 = vmatpush.msra.mxu0 0.0
    %1462 = vmatpush.msra.mxu0 0.0
    %1463 = vmatpush.msra.mxu0 0.0
    %1464 = vmatpush.msra.mxu0 0.0
    %1465 = vmatpush.msra.mxu0 0.0
    %1466 = vmatpush.msra.mxu0 0.0
    %1467 = vmatpush.msra.mxu0 0.0
    %1468 = vmatpush.msra.mxu0 0.0
    %1469 = vmatpush.msra.mxu0 0.0
    %1470 = vmatpush.msra.mxu0 0.0
    %1471 = vmatpush.msra.mxu0 0.0
    %1472 = vmatpush.msra.mxu0 0.0
    %1473 = vmatpush.msra.mxu0 %v1453
    %1474 = vmatmul.f32.gmra.mxu0 %v1456
    %v1475 = vpop.f32.mrf.mxu0
    %v1476 = vadd.f32 0.0, %v1475
    %1477 = vdwg.mxu0
    %1478 = vrot.lane.b32.xlu0 %v1014, 104
    %v1479 = vpop.permute.xlu0 %1478
    %1480 = vrot.lane.b32.xlu0 %v1053, 104
    %v1481 = vpop.permute.xlu0 %1480
    %v1482 = vsel %vm336, %v1479, 0
    %v1484 = vsel %vm336, %v1481, 0
    %1486 = vmatpush.xpose.msra.mxu0 0.0
    %1487 = vmatpush.xpose.msra.mxu0 0.0
    %1488 = vmatpush.xpose.msra.mxu0 0.0
    %1489 = vmatpush.xpose.msra.mxu0 0.0
    %1490 = vmatpush.xpose.msra.mxu0 0.0
    %1491 = vmatpush.xpose.msra.mxu0 0.0
    %1492 = vmatpush.xpose.msra.mxu0 0.0
    %1493 = vmatpush.xpose.msra.mxu0 0.0
    %1494 = vmatpush.xpose.msra.mxu0 0.0
    %1495 = vmatpush.xpose.msra.mxu0 0.0
    %1496 = vmatpush.xpose.msra.mxu0 0.0
    %1497 = vmatpush.xpose.msra.mxu0 0.0
    %1498 = vmatpush.xpose.msra.mxu0 0.0
    %1499 = vmatpush.xpose.msra.mxu0 0.0
    %1500 = vmatpush.xpose.msra.mxu0 0.0
    %1501 = vmatpush.xpose.msra.mxu0 %v1484
    %1502 = vmatmul.f32.gmra.mxu0 %v1482
    %v1503 = vpop.f32.mrf.mxu0
    %v1504 = vadd.f32 0.0, %v1503
    %1505 = vdwg.mxu0
    %1506 = vrot.lane.b32.xlu0 %v1017, 104
    %v1507 = vpop.permute.xlu0 %1506
    %1508 = vrot.lane.b32.xlu0 %v1056, 104
    %v1509 = vpop.permute.xlu0 %1508
    %v1510 = vsel %vm336, %v1507, 0
    %v1512 = vsel %vm336, %v1509, 0
    %1514 = vmatpush.xpose.msra.mxu0 0.0
    %1515 = vmatpush.xpose.msra.mxu0 0.0
    %1516 = vmatpush.xpose.msra.mxu0 0.0
    %1517 = vmatpush.xpose.msra.mxu0 0.0
    %1518 = vmatpush.xpose.msra.mxu0 0.0
    %1519 = vmatpush.xpose.msra.mxu0 0.0
    %1520 = vmatpush.xpose.msra.mxu0 0.0
    %1521 = vmatpush.xpose.msra.mxu0 0.0
    %1522 = vmatpush.xpose.msra.mxu0 0.0
    %1523 = vmatpush.xpose.msra.mxu0 0.0
    %1524 = vmatpush.xpose.msra.mxu0 0.0
    %1525 = vmatpush.xpose.msra.mxu0 0.0
    %1526 = vmatpush.xpose.msra.mxu0 0.0
    %1527 = vmatpush.xpose.msra.mxu0 0.0
    %1528 = vmatpush.xpose.msra.mxu0 0.0
    %1529 = vmatpush.xpose.msra.mxu0 %v1512
    %1530 = vmatmul.f32.gmra.mxu0 %v1510
    %v1531 = vpop.f32.mrf.mxu0
    %v1532 = vadd.f32 0.0, %v1531
    %1533 = vdwg.mxu0
    %v1534 = vsel %vm336, %v1504, -inf
    %1535 = vmax.xlane.f32.xlu0 %v1534
    %v1536 = vpop.xlane.xlu0 %1535
    %v1537 = vsel %vm336, %v1532, -inf
    %1538 = vmax.xlane.f32.xlu0 %v1537
    %v1539 = vpop.xlane.xlu0 %1538
    %v1540 = vsub.f32 %v1504, %v1536
    %v1541 = vsub.f32 %v1532, %v1539
    %v1542 = vmul.f32 %v1540, 1.442695
    %v1543 = vpow.pop %v1542
    %v1544 = vmul.f32 %v1541, 1.442695
    %v1545 = vpow.pop %v1544
    %v1546 = vsel %vm336, %v1543, 0.0
    %1547 = vadd.xlane.f32.xlu0 %v1546
    %v1548 = vpop.xlane.xlu0 %1547
    %v1549 = vsel %vm336, %v1545, 0.0
    %1550 = vadd.xlane.f32.xlu0 %v1549
    %v1551 = vpop.xlane.xlu0 %1550
    %v1552 = vrcp.pop %v1548
    %v1553 = vrcp.pop %v1551
    %v1554 = vmul.f32 %v1543, %v1552
    %v1555 = vmul.f32 %v1545, %v1553
    %1556 = vrot.lane.b32.xlu0 %v1086, 104
    %v1557 = vpop.permute.xlu0 %1556
    %v1560 = vsel %vm336, %v1554, 0
    %1562 = vmatpush.msra.mxu0 0.0
    %1563 = vmatpush.msra.mxu0 0.0
    %1564 = vmatpush.msra.mxu0 0.0
    %1565 = vmatpush.msra.mxu0 0.0
    %1566 = vmatpush.msra.mxu0 0.0
    %1567 = vmatpush.msra.mxu0 0.0
    %1568 = vmatpush.msra.mxu0 0.0
    %1569 = vmatpush.msra.mxu0 0.0
    %1570 = vmatpush.msra.mxu0 0.0
    %1571 = vmatpush.msra.mxu0 0.0
    %1572 = vmatpush.msra.mxu0 0.0
    %1573 = vmatpush.msra.mxu0 0.0
    %1574 = vmatpush.msra.mxu0 0.0
    %1575 = vmatpush.msra.mxu0 0.0
    %1576 = vmatpush.msra.mxu0 0.0
    %1577 = vmatpush.msra.mxu0 %v1557
    %1578 = vmatmul.f32.gmra.mxu0 %v1560
    %v1579 = vpop.f32.mrf.mxu0
    %v1580 = vadd.f32 0.0, %v1579
    %1581 = vdwg.mxu0
    %1582 = vrot.lane.b32.xlu0 %v1089, 104
    %v1583 = vpop.permute.xlu0 %1582
    %v1586 = vsel %vm336, %v1555, 0
    %1588 = vmatpush.msra.mxu0 0.0
    %1589 = vmatpush.msra.mxu0 0.0
    %1590 = vmatpush.msra.mxu0 0.0
    %1591 = vmatpush.msra.mxu0 0.0
    %1592 = vmatpush.msra.mxu0 0.0
    %1593 = vmatpush.msra.mxu0 0.0
    %1594 = vmatpush.msra.mxu0 0.0
    %1595 = vmatpush.msra.mxu0 0.0
    %1596 = vmatpush.msra.mxu0 0.0
    %1597 = vmatpush.msra.mxu0 0.0
    %1598 = vmatpush.msra.mxu0 0.0
    %1599 = vmatpush.msra.mxu0 0.0
    %1600 = vmatpush.msra.mxu0 0.0
    %1601 = vmatpush.msra.mxu0 0.0
    %1602 = vmatpush.msra.mxu0 0.0
    %1603 = vmatpush.msra.mxu0 %v1583
    %1604 = vmatmul.f32.gmra.mxu0 %v1586
    %v1605 = vpop.f32.mrf.mxu0
    %v1606 = vadd.f32 0.0, %v1605
    %1607 = vdwg.mxu0
    %1610 = vrot.lane.b32.xlu0 %v1319, 8
    %v1611 = vpop.permute.xlu0 %1610
    %1612 = vrot.lane.b32.xlu0 %v1346, 8
    %v1613 = vpop.permute.xlu0 %1612
    %1618 = vrot.lane.b32.xlu0 %v1450, 16
    %v1619 = vpop.permute.xlu0 %1618
    %1620 = vrot.lane.b32.xlu0 %v1476, 16
    %v1621 = vpop.permute.xlu0 %1620
    %1626 = vrot.lane.b32.xlu0 %v1580, 24
    %v1627 = vpop.permute.xlu0 %1626
    %1628 = vrot.lane.b32.xlu0 %v1606, 24
    %v1629 = vpop.permute.xlu0 %1628
    %v1632 = vsel %vm336, %v1191, %v1611
    %v1633 = vsel %vm336, %v1214, %v1613
    %v1634 = vsel %vm875, %v1632, %v1619
    %v1635 = vsel %vm875, %v1633, %v1621
    %v1636 = vsel %vm878, %v1634, %v1627
    %v1637 = vsel %vm878, %v1635, %v1629
    %v1639 = vperm.slane %v1095, 0
    %v1642 = vsel %vm235, %v1636, 0
    %v1645 = vsel %vm235, %v1637, 0
    %1647 = vmatpush.msra.mxu0 0.0
    %1648 = vmatpush.msra.mxu0 0.0
    %1649 = vmatpush.msra.mxu0 0.0
    %1650 = vmatpush.msra.mxu0 0.0
    %1651 = vmatpush.msra.mxu0 0.0
    %1652 = vmatpush.msra.mxu0 0.0
    %1653 = vmatpush.msra.mxu0 0.0
    %1654 = vmatpush.msra.mxu0 0.0
    %1655 = vmatpush.msra.mxu0 0.0
    %1656 = vmatpush.msra.mxu0 0.0
    %1657 = vmatpush.msra.mxu0 0.0
    %1658 = vmatpush.msra.mxu0 0.0
    %1659 = vmatpush.msra.mxu0 %v1094
    %1660 = vmatpush.msra.mxu0 %v1093
    %1661 = vmatpush.msra.mxu0 %v1092
    %1662 = vmatpush.msra.mxu0 %v1091
    %1663 = vmatmul.f32.gmra.mxu0 %v1642
    %v1664 = vpop.f32.mrf.mxu0
    %v1665 = vadd.f32 %v1639, %v1664
    %1666 = vmatmul.f32.gmra.mxu0 %v1645
    %v1667 = vpop.f32.mrf.mxu0
    %v1668 = vadd.f32 %v1639, %v1667
    %1669 = vdwg.mxu0
    %v1670 = vld [vmem:[%s14] sm:$0x1]
    %v1671 = vld [vmem:[%s15] sm:$0x1]
    %v1672 = vadd.f32 %v980, %v1665
    %v1673 = vadd.f32 %v981, %v1668
    %v1674 = vsel %vm235, %v1672, 0.0
    %1675 = vadd.xlane.f32.xlu0 %v1674
    %v1676 = vpop.xlane.xlu0 %1675
    %v1677 = vsel %vm235, %v1673, 0.0
    %1678 = vadd.xlane.f32.xlu0 %v1677
    %v1679 = vpop.xlane.xlu0 %1678
    %v1680 = vmul.f32 %v1676, %v929
    %v1681 = vmul.f32 %v1679, %v929
    %v1682 = vmul.f32 %v1672, %v1672
    %v1683 = vmul.f32 %v1673, %v1673
    %v1684 = vsel %vm235, %v1682, 0.0
    %1685 = vadd.xlane.f32.xlu0 %v1684
    %v1686 = vpop.xlane.xlu0 %1685
    %v1687 = vsel %vm235, %v1683, 0.0
    %1688 = vadd.xlane.f32.xlu0 %v1687
    %v1689 = vpop.xlane.xlu0 %1688
    %v1690 = vmul.f32 %v1686, %v929
    %v1691 = vmul.f32 %v1689, %v929
    %v1692 = vmul.f32 %v1680, %v1680
    %v1693 = vmul.f32 %v1681, %v1681
    %v1694 = vsub.f32 %v1690, %v1692
    %v1695 = vsub.f32 %v1691, %v1693
    %v1696 = vsub.f32 %v1672, %v1680
    %v1697 = vsub.f32 %v1673, %v1681
    %v1698 = vadd.f32 %v1694, 1e-05
    %v1699 = vadd.f32 %v1695, 1e-05
    %v1700 = vrsqrt.pop %v1698
    %v1701 = vmul.f32 %v1700, %v1698
    %v1702 = vmul.f32 %v1701, %v1700
    %v1703 = vmul.f32 0.5, %v1702
    %v1704 = vsub.f32 1.5, %v1703
    %v1705 = vmul.f32 %v1700, %v1704
    %vm1706 = vweird.f32 %v1698
    %vm1707 = vweird.f32 %v1700
    %vm1708 = vmor %vm1706, %vm1707
    %v1709 = vsel %vm1708, %v1700, %v1705
    %v1710 = vrsqrt.pop %v1699
    %v1711 = vmul.f32 %v1710, %v1699
    %v1712 = vmul.f32 %v1711, %v1710
    %v1713 = vmul.f32 0.5, %v1712
    %v1714 = vsub.f32 1.5, %v1713
    %v1715 = vmul.f32 %v1710, %v1714
    %vm1716 = vweird.f32 %v1699
    %vm1717 = vweird.f32 %v1710
    %vm1718 = vmor %vm1716, %vm1717
    %v1719 = vsel %vm1718, %v1710, %v1715
    %v1720 = vmul.f32 %v1696, %v1709
    %v1721 = vmul.f32 %v1697, %v1719
    %v1723 = vperm.slane %v1670, 0
    %v1725 = vmul.f32 %v1720, %v1723
    %v1726 = vmul.f32 %v1721, %v1723
    %v1728 = vperm.slane %v1671, 0
    %v1730 = vadd.f32 %v1725, %v1728
    %v1731 = vadd.f32 %v1726, %v1728
    %v1732 = vld [vmem:[#allocation7] sm:$0xff]
    %v1733 = vld [vmem:[#allocation7 + $0x8] sm:$0xff]
    %v1734 = vld [vmem:[#allocation7 + $0x10] sm:$0xff]
    %v1735 = vld [vmem:[#allocation7 + $0x18] sm:$0xff]
    %v1736 = vld [vmem:[%s19] sm:$0x1]
    %v1738 = vperm.slane %v1736, 0
    %v1741 = vsel %vm235, %v1730, 0
    %v1744 = vsel %vm235, %v1731, 0
    %1746 = vmatpush.msra.mxu0 0.0
    %1747 = vmatpush.msra.mxu0 0.0
    %1748 = vmatpush.msra.mxu0 0.0
    %1749 = vmatpush.msra.mxu0 0.0
    %1750 = vmatpush.msra.mxu0 0.0
    %1751 = vmatpush.msra.mxu0 0.0
    %1752 = vmatpush.msra.mxu0 0.0
    %1753 = vmatpush.msra.mxu0 0.0
    %1754 = vmatpush.msra.mxu0 0.0
    %1755 = vmatpush.msra.mxu0 0.0
    %1756 = vmatpush.msra.mxu0 0.0
    %1757 = vmatpush.msra.mxu0 0.0
    %1758 = vmatpush.msra.mxu0 %v1735
    %1759 = vmatpush.msra.mxu0 %v1734
    %1760 = vmatpush.msra.mxu0 %v1733
    %1761 = vmatpush.msra.mxu0 %v1732
    %1762 = vmatmul.f32.gmra.mxu0 %v1741
    %v1763 = vpop.f32.mrf.mxu0
    %v1764 = vadd.f32 %v1738, %v1763
    %1765 = vmatmul.f32.gmra.mxu0 %v1744
    %v1766 = vpop.f32.mrf.mxu0
    %v1767 = vadd.f32 %v1738, %v1766
    %1768 = vdwg.mxu0
    %v1769 = vmax.f32 %v1764, 0.0
    %v1770 = vmax.f32 %v1767, 0.0
    %v1771 = vld [vmem:[#allocation9] sm:$0xff]
    %v1772 = vld [vmem:[#allocation9 + $0x8] sm:$0xff]
    %v1773 = vld [vmem:[#allocation9 + $0x10] sm:$0xff]
    %v1774 = vld [vmem:[#allocation9 + $0x18] sm:$0xff]
    %v1775 = vld [vmem:[%s21] sm:$0x1]
    %v1777 = vperm.slane %v1775, 0
    %v1780 = vsel %vm235, %v1769, 0
    %v1783 = vsel %vm235, %v1770, 0
    %1785 = vmatpush.msra.mxu0 0.0
    %1786 = vmatpush.msra.mxu0 0.0
    %1787 = vmatpush.msra.mxu0 0.0
    %1788 = vmatpush.msra.mxu0 0.0
    %1789 = vmatpush.msra.mxu0 0.0
    %1790 = vmatpush.msra.mxu0 0.0
    %1791 = vmatpush.msra.mxu0 0.0
    %1792 = vmatpush.msra.mxu0 0.0
    %1793 = vmatpush.msra.mxu0 0.0
    %1794 = vmatpush.msra.mxu0 0.0
    %1795 = vmatpush.msra.mxu0 0.0
    %1796 = vmatpush.msra.mxu0 0.0
    %1797 = vmatpush.msra.mxu0 %v1774
    %1798 = vmatpush.msra.mxu0 %v1773
    %1799 = vmatpush.msra.mxu0 %v1772
    %1800 = vmatpush.msra.mxu0 %v1771
    %1801 = vmatmul.f32.gmra.mxu0 %v1780
    %v1802 = vpop.f32.mrf.mxu0
    %v1803 = vadd.f32 %v1777, %v1802
    %1804 = vmatmul.f32.gmra.mxu0 %v1783
    %v1805 = vpop.f32.mrf.mxu0
    %v1806 = vadd.f32 %v1777, %v1805
    %1807 = vdwg.mxu0
    %v1808 = vld [vmem:[%s16] sm:$0x1]
    %v1809 = vld [vmem:[%s17] sm:$0x1]
    %v1810 = vadd.f32 %v1730, %v1803
    %v1811 = vadd.f32 %v1731, %v1806
    %v1812 = vsel %vm235, %v1810, 0.0
    %1813 = vadd.xlane.f32.xlu0 %v1812
    %v1814 = vpop.xlane.xlu0 %1813
    %v1815 = vsel %vm235, %v1811, 0.0
    %1816 = vadd.xlane.f32.xlu0 %v1815
    %v1817 = vpop.xlane.xlu0 %1816
    %v1818 = vmul.f32 %v1814, %v929
    %v1819 = vmul.f32 %v1817, %v929
    %v1820 = vmul.f32 %v1810, %v1810
    %v1821 = vmul.f32 %v1811, %v1811
    %v1822 = vsel %vm235, %v1820, 0.0
    %1823 = vadd.xlane.f32.xlu0 %v1822
    %v1824 = vpop.xlane.xlu0 %1823
    %v1825 = vsel %vm235, %v1821, 0.0
    %1826 = vadd.xlane.f32.xlu0 %v1825
    %v1827 = vpop.xlane.xlu0 %1826
    %v1828 = vmul.f32 %v1824, %v929
    %v1829 = vmul.f32 %v1827, %v929
    %v1830 = vmul.f32 %v1818, %v1818
    %v1831 = vmul.f32 %v1819, %v1819
    %v1832 = vsub.f32 %v1828, %v1830
    %v1833 = vsub.f32 %v1829, %v1831
    %v1834 = vsub.f32 %v1810, %v1818
    %v1835 = vsub.f32 %v1811, %v1819
    %v1836 = vadd.f32 %v1832, 1e-05
    %v1837 = vadd.f32 %v1833, 1e-05
    %v1838 = vrsqrt.pop %v1836
    %v1839 = vmul.f32 %v1838, %v1836
    %v1840 = vmul.f32 %v1839, %v1838
    %v1841 = vmul.f32 0.5, %v1840
    %v1842 = vsub.f32 1.5, %v1841
    %v1843 = vmul.f32 %v1838, %v1842
    %vm1844 = vweird.f32 %v1836
    %vm1845 = vweird.f32 %v1838
    %vm1846 = vmor %vm1844, %vm1845
    %v1847 = vsel %vm1846, %v1838, %v1843
    %v1848 = vrsqrt.pop %v1837
    %v1849 = vmul.f32 %v1848, %v1837
    %v1850 = vmul.f32 %v1849, %v1848
    %v1851 = vmul.f32 0.5, %v1850
    %v1852 = vsub.f32 1.5, %v1851
    %v1853 = vmul.f32 %v1848, %v1852
    %vm1854 = vweird.f32 %v1837
    %vm1855 = vweird.f32 %v1848
    %vm1856 = vmor %vm1854, %vm1855
    %v1857 = vsel %vm1856, %v1848, %v1853
    %v1858 = vmul.f32 %v1834, %v1847
    %v1859 = vmul.f32 %v1835, %v1857
    %v1861 = vperm.slane %v1808, 0
    %v1863 = vmul.f32 %v1858, %v1861
    %v1864 = vmul.f32 %v1859, %v1861
    %v1866 = vperm.slane %v1809, 0
    %v1868 = vadd.f32 %v1863, %v1866
    %v1869 = vadd.f32 %v1864, %v1866
    %s1870 = scalar_lea.vmem [#allocation2], 96
    %v1871 = vld [vmem:[%s1870] sm:$0xff]
    %v1872 = vld [vmem:[%s1870 + $0x8] sm:$0xff]
    %v1873 = vld [vmem:[%s1870 + $0x10] sm:$0xff]
    %v1874 = vld [vmem:[%s1870 + $0x18] sm:$0xff]
    %s1875 = scalar_lea.vmem %s5, 3
    %v1876 = vld [vmem:[%s1875] sm:$0x1]
    %v1878 = vperm.slane %v1876, 0
    %v1881 = vsel %vm235, %v1868, 0
    %v1884 = vsel %vm235, %v1869, 0
    %1886 = vmatpush.msra.mxu0 0.0
    %1887 = vmatpush.msra.mxu0 0.0
    %1888 = vmatpush.msra.mxu0 0.0
    %1889 = vmatpush.msra.mxu0 0.0
    %1890 = vmatpush.msra.mxu0 0.0
    %1891 = vmatpush.msra.mxu0 0.0
    %1892 = vmatpush.msra.mxu0 0.0
    %1893 = vmatpush.msra.mxu0 0.0
    %1894 = vmatpush.msra.mxu0 0.0
    %1895 = vmatpush.msra.mxu0 0.0
    %1896 = vmatpush.msra.mxu0 0.0
    %1897 = vmatpush.msra.mxu0 0.0
    %1898 = vmatpush.msra.mxu0 %v1874
    %1899 = vmatpush.msra.mxu0 %v1873
    %1900 = vmatpush.msra.mxu0 %v1872
    %1901 = vmatpush.msra.mxu0 %v1871
    %1902 = vmatmul.f32.gmra.mxu0 %v1881
    %v1903 = vpop.f32.mrf.mxu0
    %v1904 = vadd.f32 %v1878, %v1903
    %1905 = vmatmul.f32.gmra.mxu0 %v1884
    %v1906 = vpop.f32.mrf.mxu0
    %v1907 = vadd.f32 %v1878, %v1906
    %1908 = vdwg.mxu0
    %s1909 = scalar_lea.vmem [#allocation2], 128
    %v1910 = vld [vmem:[%s1909] sm:$0xff]
    %v1911 = vld [vmem:[%s1909 + $0x8] sm:$0xff]
    %v1912 = vld [vmem:[%s1909 + $0x10] sm:$0xff]
    %v1913 = vld [vmem:[%s1909 + $0x18] sm:$0xff]
    %s1914 = scalar_lea.vmem %s5, 4
    %v1915 = vld [vmem:[%s1914] sm:$0x1]
    %v1917 = vperm.slane %v1915, 0
    %1919 = vmatpush.msra.mxu0 0.0
    %1920 = vmatpush.msra.mxu0 0.0
    %1921 = vmatpush.msra.mxu0 0.0
    %1922 = vmatpush.msra.mxu0 0.0
    %1923 = vmatpush.msra.mxu0 0.0
    %1924 = vmatpush.msra.mxu0 0.0
    %1925 = vmatpush.msra.mxu0 0.0
    %1926 = vmatpush.msra.mxu0 0.0
    %1927 = vmatpush.msra.mxu0 0.0
    %1928 = vmatpush.msra.mxu0 0.0
    %1929 = vmatpush.msra.mxu0 0.0
    %1930 = vmatpush.msra.mxu0 0.0
    %1931 = vmatpush.msra.mxu0 %v1913
    %1932 = vmatpush.msra.mxu0 %v1912
    %1933 = vmatpush.msra.mxu0 %v1911
    %1934 = vmatpush.msra.mxu0 %v1910
    %1935 = vmatmul.f32.gmra.mxu0 %v1881
    %v1936 = vpop.f32.mrf.mxu0
    %v1937 = vadd.f32 %v1917, %v1936
    %1938 = vmatmul.f32.gmra.mxu0 %v1884
    %v1939 = vpop.f32.mrf.mxu0
    %v1940 = vadd.f32 %v1917, %v1939
    %1941 = vdwg.mxu0
    %s1942 = scalar_lea.vmem [#allocation2], 160
    %v1943 = vld [vmem:[%s1942] sm:$0xff]
    %v1944 = vld [vmem:[%s1942 + $0x8] sm:$0xff]
    %v1945 = vld [vmem:[%s1942 + $0x10] sm:$0xff]
    %v1946 = vld [vmem:[%s1942 + $0x18] sm:$0xff]
    %s1947 = scalar_lea.vmem %s5, 5
    %v1948 = vld [vmem:[%s1947] sm:$0x1]
    %v1950 = vperm.slane %v1948, 0
    %1952 = vmatpush.msra.mxu0 0.0
    %1953 = vmatpush.msra.mxu0 0.0
    %1954 = vmatpush.msra.mxu0 0.0
    %1955 = vmatpush.msra.mxu0 0.0
    %1956 = vmatpush.msra.mxu0 0.0
    %1957 = vmatpush.msra.mxu0 0.0
    %1958 = vmatpush.msra.mxu0 0.0
    %1959 = vmatpush.msra.mxu0 0.0
    %1960 = vmatpush.msra.mxu0 0.0
    %1961 = vmatpush.msra.mxu0 0.0
    %1962 = vmatpush.msra.mxu0 0.0
    %1963 = vmatpush.msra.mxu0 0.0
    %1964 = vmatpush.msra.mxu0 %v1946
    %1965 = vmatpush.msra.mxu0 %v1945
    %1966 = vmatpush.msra.mxu0 %v1944
    %1967 = vmatpush.msra.mxu0 %v1943
    %1968 = vmatmul.f32.gmra.mxu0 %v1881
    %v1969 = vpop.f32.mrf.mxu0
    %v1970 = vadd.f32 %v1950, %v1969
    %1971 = vmatmul.f32.gmra.mxu0 %v1884
    %v1972 = vpop.f32.mrf.mxu0
    %v1973 = vadd.f32 %v1950, %v1972
    %1974 = vdwg.mxu0
    %s1975 = scalar_lea.vmem %s6, 32
    %v1976 = vld [vmem:[%s1975] sm:$0xff]
    %v1977 = vld [vmem:[%s1975 + $0x8] sm:$0xff]
    %v1978 = vld [vmem:[%s1975 + $0x10] sm:$0xff]
    %v1979 = vld [vmem:[%s1975 + $0x18] sm:$0xff]
    %s1980 = scalar_lea.vmem %s7, 1
    %v1981 = vld [vmem:[%s1980] sm:$0x1]
    %v1983 = vsel %vm336, %v1904, 0
    %v1986 = vsel %vm336, %v1937, 0
    %1988 = vmatpush.xpose.msra.mxu0 0.0
    %1989 = vmatpush.xpose.msra.mxu0 0.0
    %1990 = vmatpush.xpose.msra.mxu0 0.0
    %1991 = vmatpush.xpose.msra.mxu0 0.0
    %1992 = vmatpush.xpose.msra.mxu0 0.0
    %1993 = vmatpush.xpose.msra.mxu0 0.0
    %1994 = vmatpush.xpose.msra.mxu0 0.0
    %1995 = vmatpush.xpose.msra.mxu0 0.0
    %1996 = vmatpush.xpose.msra.mxu0 0.0
    %1997 = vmatpush.xpose.msra.mxu0 0.0
    %1998 = vmatpush.xpose.msra.mxu0 0.0
    %1999 = vmatpush.xpose.msra.mxu0 0.0
    %2000 = vmatpush.xpose.msra.mxu0 0.0
    %2001 = vmatpush.xpose.msra.mxu0 0.0
    %2002 = vmatpush.xpose.msra.mxu0 0.0
    %2003 = vmatpush.xpose.msra.mxu0 %v1986
    %2004 = vmatmul.f32.gmra.mxu0 %v1983
    %v2005 = vpop.f32.mrf.mxu0
    %v2006 = vadd.f32 0.0, %v2005
    %2007 = vdwg.mxu0
    %v2009 = vsel %vm336, %v1907, 0
    %v2012 = vsel %vm336, %v1940, 0
    %2014 = vmatpush.xpose.msra.mxu0 0.0
    %2015 = vmatpush.xpose.msra.mxu0 0.0
    %2016 = vmatpush.xpose.msra.mxu0 0.0
    %2017 = vmatpush.xpose.msra.mxu0 0.0
    %2018 = vmatpush.xpose.msra.mxu0 0.0
    %2019 = vmatpush.xpose.msra.mxu0 0.0
    %2020 = vmatpush.xpose.msra.mxu0 0.0
    %2021 = vmatpush.xpose.msra.mxu0 0.0
    %2022 = vmatpush.xpose.msra.mxu0 0.0
    %2023 = vmatpush.xpose.msra.mxu0 0.0
    %2024 = vmatpush.xpose.msra.mxu0 0.0
    %2025 = vmatpush.xpose.msra.mxu0 0.0
    %2026 = vmatpush.xpose.msra.mxu0 0.0
    %2027 = vmatpush.xpose.msra.mxu0 0.0
    %2028 = vmatpush.xpose.msra.mxu0 0.0
    %2029 = vmatpush.xpose.msra.mxu0 %v2012
    %2030 = vmatmul.f32.gmra.mxu0 %v2009
    %v2031 = vpop.f32.mrf.mxu0
    %v2032 = vadd.f32 0.0, %v2031
    %2033 = vdwg.mxu0
    %v2034 = vsel %vm336, %v2006, -inf
    %2035 = vmax.xlane.f32.xlu0 %v2034
    %v2036 = vpop.xlane.xlu0 %2035
    %v2037 = vsel %vm336, %v2032, -inf
    %2038 = vmax.xlane.f32.xlu0 %v2037
    %v2039 = vpop.xlane.xlu0 %2038
    %v2040 = vsub.f32 %v2006, %v2036
    %v2041 = vsub.f32 %v2032, %v2039
    %v2042 = vmul.f32 %v2040, 1.442695
    %v2043 = vpow.pop %v2042
    %v2044 = vmul.f32 %v2041, 1.442695
    %v2045 = vpow.pop %v2044
    %v2046 = vsel %vm336, %v2043, 0.0
    %2047 = vadd.xlane.f32.xlu0 %v2046
    %v2048 = vpop.xlane.xlu0 %2047
    %v2049 = vsel %vm336, %v2045, 0.0
    %2050 = vadd.xlane.f32.xlu0 %v2049
    %v2051 = vpop.xlane.xlu0 %2050
    %v2052 = vrcp.pop %v2048
    %v2053 = vrcp.pop %v2051
    %v2054 = vmul.f32 %v2043, %v2052
    %v2055 = vmul.f32 %v2045, %v2053
    %v2057 = vsel %vm336, %v2054, 0
    %2059 = vmatpush.msra.mxu0 0.0
    %2060 = vmatpush.msra.mxu0 0.0
    %2061 = vmatpush.msra.mxu0 0.0
    %2062 = vmatpush.msra.mxu0 0.0
    %2063 = vmatpush.msra.mxu0 0.0
    %2064 = vmatpush.msra.mxu0 0.0
    %2065 = vmatpush.msra.mxu0 0.0
    %2066 = vmatpush.msra.mxu0 0.0
    %2067 = vmatpush.msra.mxu0 0.0
    %2068 = vmatpush.msra.mxu0 0.0
    %2069 = vmatpush.msra.mxu0 0.0
    %2070 = vmatpush.msra.mxu0 0.0
    %2071 = vmatpush.msra.mxu0 0.0
    %2072 = vmatpush.msra.mxu0 0.0
    %2073 = vmatpush.msra.mxu0 0.0
    %2074 = vmatpush.msra.mxu0 %v1970
    %2075 = vmatmul.f32.gmra.mxu0 %v2057
    %v2076 = vpop.f32.mrf.mxu0
    %v2077 = vadd.f32 0.0, %v2076
    %2078 = vdwg.mxu0
    %v2080 = vsel %vm336, %v2055, 0
    %2082 = vmatpush.msra.mxu0 0.0
    %2083 = vmatpush.msra.mxu0 0.0
    %2084 = vmatpush.msra.mxu0 0.0
    %2085 = vmatpush.msra.mxu0 0.0
    %2086 = vmatpush.msra.mxu0 0.0
    %2087 = vmatpush.msra.mxu0 0.0
    %2088 = vmatpush.msra.mxu0 0.0
    %2089 = vmatpush.msra.mxu0 0.0
    %2090 = vmatpush.msra.mxu0 0.0
    %2091 = vmatpush.msra.mxu0 0.0
    %2092 = vmatpush.msra.mxu0 0.0
    %2093 = vmatpush.msra.mxu0 0.0
    %2094 = vmatpush.msra.mxu0 0.0
    %2095 = vmatpush.msra.mxu0 0.0
    %2096 = vmatpush.msra.mxu0 0.0
    %2097 = vmatpush.msra.mxu0 %v1973
    %2098 = vmatmul.f32.gmra.mxu0 %v2080
    %v2099 = vpop.f32.mrf.mxu0
    %v2100 = vadd.f32 0.0, %v2099
    %2101 = vdwg.mxu0
    %2102 = vrot.lane.b32.xlu0 %v1904, 120
    %v2103 = vpop.permute.xlu0 %2102
    %2104 = vrot.lane.b32.xlu0 %v1937, 120
    %v2105 = vpop.permute.xlu0 %2104
    %v2106 = vsel %vm336, %v2103, 0
    %v2108 = vsel %vm336, %v2105, 0
    %2110 = vmatpush.xpose.msra.mxu0 0.0
    %2111 = vmatpush.xpose.msra.mxu0 0.0
    %2112 = vmatpush.xpose.msra.mxu0 0.0
    %2113 = vmatpush.xpose.msra.mxu0 0.0
    %2114 = vmatpush.xpose.msra.mxu0 0.0
    %2115 = vmatpush.xpose.msra.mxu0 0.0
    %2116 = vmatpush.xpose.msra.mxu0 0.0
    %2117 = vmatpush.xpose.msra.mxu0 0.0
    %2118 = vmatpush.xpose.msra.mxu0 0.0
    %2119 = vmatpush.xpose.msra.mxu0 0.0
    %2120 = vmatpush.xpose.msra.mxu0 0.0
    %2121 = vmatpush.xpose.msra.mxu0 0.0
    %2122 = vmatpush.xpose.msra.mxu0 0.0
    %2123 = vmatpush.xpose.msra.mxu0 0.0
    %2124 = vmatpush.xpose.msra.mxu0 0.0
    %2125 = vmatpush.xpose.msra.mxu0 %v2108
    %2126 = vmatmul.f32.gmra.mxu0 %v2106
    %v2127 = vpop.f32.mrf.mxu0
    %v2128 = vadd.f32 0.0, %v2127
    %2129 = vdwg.mxu0
    %2130 = vrot.lane.b32.xlu0 %v1907, 120
    %v2131 = vpop.permute.xlu0 %2130
    %2132 = vrot.lane.b32.xlu0 %v1940, 120
    %v2133 = vpop.permute.xlu0 %2132
    %v2134 = vsel %vm336, %v2131, 0
    %v2136 = vsel %vm336, %v2133, 0
    %2138 = vmatpush.xpose.msra.mxu0 0.0
    %2139 = vmatpush.xpose.msra.mxu0 0.0
    %2140 = vmatpush.xpose.msra.mxu0 0.0
    %2141 = vmatpush.xpose.msra.mxu0 0.0
    %2142 = vmatpush.xpose.msra.mxu0 0.0
    %2143 = vmatpush.xpose.msra.mxu0 0.0
    %2144 = vmatpush.xpose.msra.mxu0 0.0
    %2145 = vmatpush.xpose.msra.mxu0 0.0
    %2146 = vmatpush.xpose.msra.mxu0 0.0
    %2147 = vmatpush.xpose.msra.mxu0 0.0
    %2148 = vmatpush.xpose.msra.mxu0 0.0
    %2149 = vmatpush.xpose.msra.mxu0 0.0
    %2150 = vmatpush.xpose.msra.mxu0 0.0
    %2151 = vmatpush.xpose.msra.mxu0 0.0
    %2152 = vmatpush.xpose.msra.mxu0 0.0
    %2153 = vmatpush.xpose.msra.mxu0 %v2136
    %2154 = vmatmul.f32.gmra.mxu0 %v2134
    %v2155 = vpop.f32.mrf.mxu0
    %v2156 = vadd.f32 0.0, %v2155
    %2157 = vdwg.mxu0
    %v2158 = vsel %vm336, %v2128, -inf
    %2159 = vmax.xlane.f32.xlu0 %v2158
    %v2160 = vpop.xlane.xlu0 %2159
    %v2161 = vsel %vm336, %v2156, -inf
    %2162 = vmax.xlane.f32.xlu0 %v2161
    %v2163 = vpop.xlane.xlu0 %2162
    %v2164 = vsub.f32 %v2128, %v2160
    %v2165 = vsub.f32 %v2156, %v2163
    %v2166 = vmul.f32 %v2164, 1.442695
    %v2167 = vpow.pop %v2166
    %v2168 = vmul.f32 %v2165, 1.442695
    %v2169 = vpow.pop %v2168
    %v2170 = vsel %vm336, %v2167, 0.0
    %2171 = vadd.xlane.f32.xlu0 %v2170
    %v2172 = vpop.xlane.xlu0 %2171
    %v2173 = vsel %vm336, %v2169, 0.0
    %2174 = vadd.xlane.f32.xlu0 %v2173
    %v2175 = vpop.xlane.xlu0 %2174
    %v2176 = vrcp.pop %v2172
    %v2177 = vrcp.pop %v2175
    %v2178 = vmul.f32 %v2167, %v2176
    %v2179 = vmul.f32 %v2169, %v2177
    %2181 = vrot.lane.b32.xlu0 %v1970, 120
    %v2182 = vpop.permute.xlu0 %2181
    %v2185 = vsel %vm336, %v2178, 0
    %2187 = vmatpush.msra.mxu0 0.0
    %2188 = vmatpush.msra.mxu0 0.0
    %2189 = vmatpush.msra.mxu0 0.0
    %2190 = vmatpush.msra.mxu0 0.0
    %2191 = vmatpush.msra.mxu0 0.0
    %2192 = vmatpush.msra.mxu0 0.0
    %2193 = vmatpush.msra.mxu0 0.0
    %2194 = vmatpush.msra.mxu0 0.0
    %2195 = vmatpush.msra.mxu0 0.0
    %2196 = vmatpush.msra.mxu0 0.0
    %2197 = vmatpush.msra.mxu0 0.0
    %2198 = vmatpush.msra.mxu0 0.0
    %2199 = vmatpush.msra.mxu0 0.0
    %2200 = vmatpush.msra.mxu0 0.0
    %2201 = vmatpush.msra.mxu0 0.0
    %2202 = vmatpush.msra.mxu0 %v2182
    %2203 = vmatmul.f32.gmra.mxu0 %v2185
    %v2204 = vpop.f32.mrf.mxu0
    %v2205 = vadd.f32 0.0, %v2204
    %2206 = vdwg.mxu0
    %2208 = vrot.lane.b32.xlu0 %v1973, 120
    %v2209 = vpop.permute.xlu0 %2208
    %v2212 = vsel %vm336, %v2179, 0
    %2214 = vmatpush.msra.mxu0 0.0
    %2215 = vmatpush.msra.mxu0 0.0
    %2216 = vmatpush.msra.mxu0 0.0
    %2217 = vmatpush.msra.mxu0 0.0
    %2218 = vmatpush.msra.mxu0 0.0
    %2219 = vmatpush.msra.mxu0 0.0
    %2220 = vmatpush.msra.mxu0 0.0
    %2221 = vmatpush.msra.mxu0 0.0
    %2222 = vmatpush.msra.mxu0 0.0
    %2223 = vmatpush.msra.mxu0 0.0
    %2224 = vmatpush.msra.mxu0 0.0
    %2225 = vmatpush.msra.mxu0 0.0
    %2226 = vmatpush.msra.mxu0 0.0
    %2227 = vmatpush.msra.mxu0 0.0
    %2228 = vmatpush.msra.mxu0 0.0
    %2229 = vmatpush.msra.mxu0 %v2209
    %2230 = vmatmul.f32.gmra.mxu0 %v2212
    %v2231 = vpop.f32.mrf.mxu0
    %v2232 = vadd.f32 0.0, %v2231
    %2233 = vdwg.mxu0
    %2234 = vrot.lane.b32.xlu0 %v1904, 112
    %v2235 = vpop.permute.xlu0 %2234
    %2236 = vrot.lane.b32.xlu0 %v1937, 112
    %v2237 = vpop.permute.xlu0 %2236
    %v2238 = vsel %vm336, %v2235, 0
    %v2240 = vsel %vm336, %v2237, 0
    %2242 = vmatpush.xpose.msra.mxu0 0.0
    %2243 = vmatpush.xpose.msra.mxu0 0.0
    %2244 = vmatpush.xpose.msra.mxu0 0.0
    %2245 = vmatpush.xpose.msra.mxu0 0.0
    %2246 = vmatpush.xpose.msra.mxu0 0.0
    %2247 = vmatpush.xpose.msra.mxu0 0.0
    %2248 = vmatpush.xpose.msra.mxu0 0.0
    %2249 = vmatpush.xpose.msra.mxu0 0.0
    %2250 = vmatpush.xpose.msra.mxu0 0.0
    %2251 = vmatpush.xpose.msra.mxu0 0.0
    %2252 = vmatpush.xpose.msra.mxu0 0.0
    %2253 = vmatpush.xpose.msra.mxu0 0.0
    %2254 = vmatpush.xpose.msra.mxu0 0.0
    %2255 = vmatpush.xpose.msra.mxu0 0.0
    %2256 = vmatpush.xpose.msra.mxu0 0.0
    %2257 = vmatpush.xpose.msra.mxu0 %v2240
    %2258 = vmatmul.f32.gmra.mxu0 %v2238
    %v2259 = vpop.f32.mrf.mxu0
    %v2260 = vadd.f32 0.0, %v2259
    %2261 = vdwg.mxu0
    %2262 = vrot.lane.b32.xlu0 %v1907, 112
    %v2263 = vpop.permute.xlu0 %2262
    %2264 = vrot.lane.b32.xlu0 %v1940, 112
    %v2265 = vpop.permute.xlu0 %2264
    %v2266 = vsel %vm336, %v2263, 0
    %v2268 = vsel %vm336, %v2265, 0
    %2270 = vmatpush.xpose.msra.mxu0 0.0
    %2271 = vmatpush.xpose.msra.mxu0 0.0
    %2272 = vmatpush.xpose.msra.mxu0 0.0
    %2273 = vmatpush.xpose.msra.mxu0 0.0
    %2274 = vmatpush.xpose.msra.mxu0 0.0
    %2275 = vmatpush.xpose.msra.mxu0 0.0
    %2276 = vmatpush.xpose.msra.mxu0 0.0
    %2277 = vmatpush.xpose.msra.mxu0 0.0
    %2278 = vmatpush.xpose.msra.mxu0 0.0
    %2279 = vmatpush.xpose.msra.mxu0 0.0
    %2280 = vmatpush.xpose.msra.mxu0 0.0
    %2281 = vmatpush.xpose.msra.mxu0 0.0
    %2282 = vmatpush.xpose.msra.mxu0 0.0
    %2283 = vmatpush.xpose.msra.mxu0 0.0
    %2284 = vmatpush.xpose.msra.mxu0 0.0
    %2285 = vmatpush.xpose.msra.mxu0 %v2268
    %2286 = vmatmul.f32.gmra.mxu0 %v2266
    %v2287 = vpop.f32.mrf.mxu0
    %v2288 = vadd.f32 0.0, %v2287
    %2289 = vdwg.mxu0
    %v2290 = vsel %vm336, %v2260, -inf
    %2291 = vmax.xlane.f32.xlu0 %v2290
    %v2292 = vpop.xlane.xlu0 %2291
    %v2293 = vsel %vm336, %v2288, -inf
    %2294 = vmax.xlane.f32.xlu0 %v2293
    %v2295 = vpop.xlane.xlu0 %2294
    %v2296 = vsub.f32 %v2260, %v2292
    %v2297 = vsub.f32 %v2288, %v2295
    %v2298 = vmul.f32 %v2296, 1.442695
    %v2299 = vpow.pop %v2298
    %v2300 = vmul.f32 %v2297, 1.442695
    %v2301 = vpow.pop %v2300
    %v2302 = vsel %vm336, %v2299, 0.0
    %2303 = vadd.xlane.f32.xlu0 %v2302
    %v2304 = vpop.xlane.xlu0 %2303
    %v2305 = vsel %vm336, %v2301, 0.0
    %2306 = vadd.xlane.f32.xlu0 %v2305
    %v2307 = vpop.xlane.xlu0 %2306
    %v2308 = vrcp.pop %v2304
    %v2309 = vrcp.pop %v2307
    %v2310 = vmul.f32 %v2299, %v2308
    %v2311 = vmul.f32 %v2301, %v2309
    %2312 = vrot.lane.b32.xlu0 %v1970, 112
    %v2313 = vpop.permute.xlu0 %2312
    %v2316 = vsel %vm336, %v2310, 0
    %2318 = vmatpush.msra.mxu0 0.0
    %2319 = vmatpush.msra.mxu0 0.0
    %2320 = vmatpush.msra.mxu0 0.0
    %2321 = vmatpush.msra.mxu0 0.0
    %2322 = vmatpush.msra.mxu0 0.0
    %2323 = vmatpush.msra.mxu0 0.0
    %2324 = vmatpush.msra.mxu0 0.0
    %2325 = vmatpush.msra.mxu0 0.0
    %2326 = vmatpush.msra.mxu0 0.0
    %2327 = vmatpush.msra.mxu0 0.0
    %2328 = vmatpush.msra.mxu0 0.0
    %2329 = vmatpush.msra.mxu0 0.0
    %2330 = vmatpush.msra.mxu0 0.0
    %2331 = vmatpush.msra.mxu0 0.0
    %2332 = vmatpush.msra.mxu0 0.0
    %2333 = vmatpush.msra.mxu0 %v2313
    %2334 = vmatmul.f32.gmra.mxu0 %v2316
    %v2335 = vpop.f32.mrf.mxu0
    %v2336 = vadd.f32 0.0, %v2335
    %2337 = vdwg.mxu0
    %2338 = vrot.lane.b32.xlu0 %v1973, 112
    %v2339 = vpop.permute.xlu0 %2338
    %v2342 = vsel %vm336, %v2311, 0
    %2344 = vmatpush.msra.mxu0 0.0
    %2345 = vmatpush.msra.mxu0 0.0
    %2346 = vmatpush.msra.mxu0 0.0
    %2347 = vmatpush.msra.mxu0 0.0
    %2348 = vmatpush.msra.mxu0 0.0
    %2349 = vmatpush.msra.mxu0 0.0
    %2350 = vmatpush.msra.mxu0 0.0
    %2351 = vmatpush.msra.mxu0 0.0
    %2352 = vmatpush.msra.mxu0 0.0
    %2353 = vmatpush.msra.mxu0 0.0
    %2354 = vmatpush.msra.mxu0 0.0
    %2355 = vmatpush.msra.mxu0 0.0
    %2356 = vmatpush.msra.mxu0 0.0
    %2357 = vmatpush.msra.mxu0 0.0
    %2358 = vmatpush.msra.mxu0 0.0
    %2359 = vmatpush.msra.mxu0 %v2339
    %2360 = vmatmul.f32.gmra.mxu0 %v2342
    %v2361 = vpop.f32.mrf.mxu0
    %v2362 = vadd.f32 0.0, %v2361
    %2363 = vdwg.mxu0
    %2364 = vrot.lane.b32.xlu0 %v1904, 104
    %v2365 = vpop.permute.xlu0 %2364
    %2366 = vrot.lane.b32.xlu0 %v1937, 104
    %v2367 = vpop.permute.xlu0 %2366
    %v2368 = vsel %vm336, %v2365, 0
    %v2370 = vsel %vm336, %v2367, 0
    %2372 = vmatpush.xpose.msra.mxu0 0.0
    %2373 = vmatpush.xpose.msra.mxu0 0.0
    %2374 = vmatpush.xpose.msra.mxu0 0.0
    %2375 = vmatpush.xpose.msra.mxu0 0.0
    %2376 = vmatpush.xpose.msra.mxu0 0.0
    %2377 = vmatpush.xpose.msra.mxu0 0.0
    %2378 = vmatpush.xpose.msra.mxu0 0.0
    %2379 = vmatpush.xpose.msra.mxu0 0.0
    %2380 = vmatpush.xpose.msra.mxu0 0.0
    %2381 = vmatpush.xpose.msra.mxu0 0.0
    %2382 = vmatpush.xpose.msra.mxu0 0.0
    %2383 = vmatpush.xpose.msra.mxu0 0.0
    %2384 = vmatpush.xpose.msra.mxu0 0.0
    %2385 = vmatpush.xpose.msra.mxu0 0.0
    %2386 = vmatpush.xpose.msra.mxu0 0.0
    %2387 = vmatpush.xpose.msra.mxu0 %v2370
    %2388 = vmatmul.f32.gmra.mxu0 %v2368
    %v2389 = vpop.f32.mrf.mxu0
    %v2390 = vadd.f32 0.0, %v2389
    %2391 = vdwg.mxu0
    %2392 = vrot.lane.b32.xlu0 %v1907, 104
    %v2393 = vpop.permute.xlu0 %2392
    %2394 = vrot.lane.b32.xlu0 %v1940, 104
    %v2395 = vpop.permute.xlu0 %2394
    %v2396 = vsel %vm336, %v2393, 0
    %v2398 = vsel %vm336, %v2395, 0
    %2400 = vmatpush.xpose.msra.mxu0 0.0
    %2401 = vmatpush.xpose.msra.mxu0 0.0
    %2402 = vmatpush.xpose.msra.mxu0 0.0
    %2403 = vmatpush.xpose.msra.mxu0 0.0
    %2404 = vmatpush.xpose.msra.mxu0 0.0
    %2405 = vmatpush.xpose.msra.mxu0 0.0
    %2406 = vmatpush.xpose.msra.mxu0 0.0
    %2407 = vmatpush.xpose.msra.mxu0 0.0
    %2408 = vmatpush.xpose.msra.mxu0 0.0
    %2409 = vmatpush.xpose.msra.mxu0 0.0
    %2410 = vmatpush.xpose.msra.mxu0 0.0
    %2411 = vmatpush.xpose.msra.mxu0 0.0
    %2412 = vmatpush.xpose.msra.mxu0 0.0
    %2413 = vmatpush.xpose.msra.mxu0 0.0
    %2414 = vmatpush.xpose.msra.mxu0 0.0
    %2415 = vmatpush.xpose.msra.mxu0 %v2398
    %2416 = vmatmul.f32.gmra.mxu0 %v2396
    %v2417 = vpop.f32.mrf.mxu0
    %v2418 = vadd.f32 0.0, %v2417
    %2419 = vdwg.mxu0
    %v2420 = vsel %vm336, %v2390, -inf
    %2421 = vmax.xlane.f32.xlu0 %v2420
    %v2422 = vpop.xlane.xlu0 %2421
    %v2423 = vsel %vm336, %v2418, -inf
    %2424 = vmax.xlane.f32.xlu0 %v2423
    %v2425 = vpop.xlane.xlu0 %2424
    %v2426 = vsub.f32 %v2390, %v2422
    %v2427 = vsub.f32 %v2418, %v2425
    %v2428 = vmul.f32 %v2426, 1.442695
    %v2429 = vpow.pop %v2428
    %v2430 = vmul.f32 %v2427, 1.442695
    %v2431 = vpow.pop %v2430
    %v2432 = vsel %vm336, %v2429, 0.0
    %2433 = vadd.xlane.f32.xlu0 %v2432
    %v2434 = vpop.xlane.xlu0 %2433
    %v2435 = vsel %vm336, %v2431, 0.0
    %2436 = vadd.xlane.f32.xlu0 %v2435
    %v2437 = vpop.xlane.xlu0 %2436
    %v2438 = vrcp.pop %v2434
    %v2439 = vrcp.pop %v2437
    %v2440 = vmul.f32 %v2429, %v2438
    %v2441 = vmul.f32 %v2431, %v2439
    %2442 = vrot.lane.b32.xlu0 %v1970, 104
    %v2443 = vpop.permute.xlu0 %2442
    %v2446 = vsel %vm336, %v2440, 0
    %2448 = vmatpush.msra.mxu0 0.0
    %2449 = vmatpush.msra.mxu0 0.0
    %2450 = vmatpush.msra.mxu0 0.0
    %2451 = vmatpush.msra.mxu0 0.0
    %2452 = vmatpush.msra.mxu0 0.0
    %2453 = vmatpush.msra.mxu0 0.0
    %2454 = vmatpush.msra.mxu0 0.0
    %2455 = vmatpush.msra.mxu0 0.0
    %2456 = vmatpush.msra.mxu0 0.0
    %2457 = vmatpush.msra.mxu0 0.0
    %2458 = vmatpush.msra.mxu0 0.0
    %2459 = vmatpush.msra.mxu0 0.0
    %2460 = vmatpush.msra.mxu0 0.0
    %2461 = vmatpush.msra.mxu0 0.0
    %2462 = vmatpush.msra.mxu0 0.0
    %2463 = vmatpush.msra.mxu0 %v2443
    %2464 = vmatmul.f32.gmra.mxu0 %v2446
    %v2465 = vpop.f32.mrf.mxu0
    %v2466 = vadd.f32 0.0, %v2465
    %2467 = vdwg.mxu0
    %2468 = vrot.lane.b32.xlu0 %v1973, 104
    %v2469 = vpop.permute.xlu0 %2468
    %v2472 = vsel %vm336, %v2441, 0
    %2474 = vmatpush.msra.mxu0 0.0
    %2475 = vmatpush.msra.mxu0 0.0
    %2476 = vmatpush.msra.mxu0 0.0
    %2477 = vmatpush.msra.mxu0 0.0
    %2478 = vmatpush.msra.mxu0 0.0
    %2479 = vmatpush.msra.mxu0 0.0
    %2480 = vmatpush.msra.mxu0 0.0
    %2481 = vmatpush.msra.mxu0 0.0
    %2482 = vmatpush.msra.mxu0 0.0
    %2483 = vmatpush.msra.mxu0 0.0
    %2484 = vmatpush.msra.mxu0 0.0
    %2485 = vmatpush.msra.mxu0 0.0
    %2486 = vmatpush.msra.mxu0 0.0
    %2487 = vmatpush.msra.mxu0 0.0
    %2488 = vmatpush.msra.mxu0 0.0
    %2489 = vmatpush.msra.mxu0 %v2469
    %2490 = vmatmul.f32.gmra.mxu0 %v2472
    %v2491 = vpop.f32.mrf.mxu0
    %v2492 = vadd.f32 0.0, %v2491
    %2493 = vdwg.mxu0
    %2496 = vrot.lane.b32.xlu0 %v2205, 8
    %v2497 = vpop.permute.xlu0 %2496
    %2498 = vrot.lane.b32.xlu0 %v2232, 8
    %v2499 = vpop.permute.xlu0 %2498
    %2504 = vrot.lane.b32.xlu0 %v2336, 16
    %v2505 = vpop.permute.xlu0 %2504
    %2506 = vrot.lane.b32.xlu0 %v2362, 16
    %v2507 = vpop.permute.xlu0 %2506
    %2512 = vrot.lane.b32.xlu0 %v2466, 24
    %v2513 = vpop.permute.xlu0 %2512
    %2514 = vrot.lane.b32.xlu0 %v2492, 24
    %v2515 = vpop.permute.xlu0 %2514
    %v2518 = vsel %vm336, %v2077, %v2497
    %v2519 = vsel %vm336, %v2100, %v2499
    %v2520 = vsel %vm875, %v2518, %v2505
    %v2521 = vsel %vm875, %v2519, %v2507
    %v2522 = vsel %vm878, %v2520, %v2513
    %v2523 = vsel %vm878, %v2521, %v2515
    %v2525 = vperm.slane %v1981, 0
    %v2528 = vsel %vm235, %v2522, 0
    %v2531 = vsel %vm235, %v2523, 0
    %2533 = vmatpush.msra.mxu0 0.0
    %2534 = vmatpush.msra.mxu0 0.0
    %2535 = vmatpush.msra.mxu0 0.0
    %2536 = vmatpush.msra.mxu0 0.0
    %2537 = vmatpush.msra.mxu0 0.0
    %2538 = vmatpush.msra.mxu0 0.0
    %2539 = vmatpush.msra.mxu0 0.0
    %2540 = vmatpush.msra.mxu0 0.0
    %2541 = vmatpush.msra.mxu0 0.0
    %2542 = vmatpush.msra.mxu0 0.0
    %2543 = vmatpush.msra.mxu0 0.0
    %2544 = vmatpush.msra.mxu0 0.0
    %2545 = vmatpush.msra.mxu0 %v1979
    %2546 = vmatpush.msra.mxu0 %v1978
    %2547 = vmatpush.msra.mxu0 %v1977
    %2548 = vmatpush.msra.mxu0 %v1976
    %2549 = vmatmul.f32.gmra.mxu0 %v2528
    %v2550 = vpop.f32.mrf.mxu0
    %v2551 = vadd.f32 %v2525, %v2550
    %2552 = vmatmul.f32.gmra.mxu0 %v2531
    %v2553 = vpop.f32.mrf.mxu0
    %v2554 = vadd.f32 %v2525, %v2553
    %2555 = vdwg.mxu0
    %s2556 = scalar_lea.vmem %s12, 1
    %v2557 = vld [vmem:[%s2556] sm:$0x1]
    %s2558 = scalar_lea.vmem %s13, 1
    %v2559 = vld [vmem:[%s2558] sm:$0x1]
    %v2560 = vadd.f32 %v1868, %v2551
    %v2561 = vadd.f32 %v1869, %v2554
    %v2562 = vsel %vm235, %v2560, 0.0
    %2563 = vadd.xlane.f32.xlu0 %v2562
    %v2564 = vpop.xlane.xlu0 %2563
    %v2565 = vsel %vm235, %v2561, 0.0
    %2566 = vadd.xlane.f32.xlu0 %v2565
    %v2567 = vpop.xlane.xlu0 %2566
    %v2568 = vmul.f32 %v2564, %v929
    %v2569 = vmul.f32 %v2567, %v929
    %v2570 = vmul.f32 %v2560, %v2560
    %v2571 = vmul.f32 %v2561, %v2561
    %v2572 = vsel %vm235, %v2570, 0.0
    %2573 = vadd.xlane.f32.xlu0 %v2572
    %v2574 = vpop.xlane.xlu0 %2573
    %v2575 = vsel %vm235, %v2571, 0.0
    %2576 = vadd.xlane.f32.xlu0 %v2575
    %v2577 = vpop.xlane.xlu0 %2576
    %v2578 = vmul.f32 %v2574, %v929
    %v2579 = vmul.f32 %v2577, %v929
    %v2580 = vmul.f32 %v2568, %v2568
    %v2581 = vmul.f32 %v2569, %v2569
    %v2582 = vsub.f32 %v2578, %v2580
    %v2583 = vsub.f32 %v2579, %v2581
    %v2584 = vsub.f32 %v2560, %v2568
    %v2585 = vsub.f32 %v2561, %v2569
    %v2586 = vadd.f32 %v2582, 1e-05
    %v2587 = vadd.f32 %v2583, 1e-05
    %v2588 = vrsqrt.pop %v2586
    %v2589 = vmul.f32 %v2588, %v2586
    %v2590 = vmul.f32 %v2589, %v2588
    %v2591 = vmul.f32 0.5, %v2590
    %v2592 = vsub.f32 1.5, %v2591
    %v2593 = vmul.f32 %v2588, %v2592
    %vm2594 = vweird.f32 %v2586
    %vm2595 = vweird.f32 %v2588
    %vm2596 = vmor %vm2594, %vm2595
    %v2597 = vsel %vm2596, %v2588, %v2593
    %v2598 = vrsqrt.pop %v2587
    %v2599 = vmul.f32 %v2598, %v2587
    %v2600 = vmul.f32 %v2599, %v2598
    %v2601 = vmul.f32 0.5, %v2600
    %v2602 = vsub.f32 1.5, %v2601
    %v2603 = vmul.f32 %v2598, %v2602
    %vm2604 = vweird.f32 %v2587
    %vm2605 = vweird.f32 %v2598
    %vm2606 = vmor %vm2604, %vm2605
    %v2607 = vsel %vm2606, %v2598, %v2603
    %v2608 = vmul.f32 %v2584, %v2597
    %v2609 = vmul.f32 %v2585, %v2607
    %v2611 = vperm.slane %v2557, 0
    %v2613 = vmul.f32 %v2608, %v2611
    %v2614 = vmul.f32 %v2609, %v2611
    %v2616 = vperm.slane %v2559, 0
    %v2618 = vadd.f32 %v2613, %v2616
    %v2619 = vadd.f32 %v2614, %v2616
    %s2620 = scalar_lea.vmem [#allocation4], 96
    %v2621 = vld [vmem:[%s2620] sm:$0xff]
    %v2622 = vld [vmem:[%s2620 + $0x8] sm:$0xff]
    %v2623 = vld [vmem:[%s2620 + $0x10] sm:$0xff]
    %v2624 = vld [vmem:[%s2620 + $0x18] sm:$0xff]
    %s2625 = scalar_lea.vmem %s9, 3
    %v2626 = vld [vmem:[%s2625] sm:$0x1]
    %v2628 = vperm.slane %v2626, 0
    %v2631 = vsel %vm235, %v2618, 0
    %v2634 = vsel %vm235, %v2619, 0
    %2636 = vmatpush.msra.mxu0 0.0
    %2637 = vmatpush.msra.mxu0 0.0
    %2638 = vmatpush.msra.mxu0 0.0
    %2639 = vmatpush.msra.mxu0 0.0
    %2640 = vmatpush.msra.mxu0 0.0
    %2641 = vmatpush.msra.mxu0 0.0
    %2642 = vmatpush.msra.mxu0 0.0
    %2643 = vmatpush.msra.mxu0 0.0
    %2644 = vmatpush.msra.mxu0 0.0
    %2645 = vmatpush.msra.mxu0 0.0
    %2646 = vmatpush.msra.mxu0 0.0
    %2647 = vmatpush.msra.mxu0 0.0
    %2648 = vmatpush.msra.mxu0 %v2624
    %2649 = vmatpush.msra.mxu0 %v2623
    %2650 = vmatpush.msra.mxu0 %v2622
    %2651 = vmatpush.msra.mxu0 %v2621
    %2652 = vmatmul.f32.gmra.mxu0 %v2631
    %v2653 = vpop.f32.mrf.mxu0
    %v2654 = vadd.f32 %v2628, %v2653
    %2655 = vmatmul.f32.gmra.mxu0 %v2634
    %v2656 = vpop.f32.mrf.mxu0
    %v2657 = vadd.f32 %v2628, %v2656
    %2658 = vdwg.mxu0
    %s2659 = scalar_lea.vmem [#allocation4], 128
    %v2660 = vld [vmem:[%s2659] sm:$0xff]
    %v2661 = vld [vmem:[%s2659 + $0x8] sm:$0xff]
    %v2662 = vld [vmem:[%s2659 + $0x10] sm:$0xff]
    %v2663 = vld [vmem:[%s2659 + $0x18] sm:$0xff]
    %s2664 = scalar_lea.vmem %s9, 4
    %v2665 = vld [vmem:[%s2664] sm:$0x1]
    %v2667 = vperm.slane %v2665, 0
    %2669 = vmatpush.msra.mxu0 0.0
    %2670 = vmatpush.msra.mxu0 0.0
    %2671 = vmatpush.msra.mxu0 0.0
    %2672 = vmatpush.msra.mxu0 0.0
    %2673 = vmatpush.msra.mxu0 0.0
    %2674 = vmatpush.msra.mxu0 0.0
    %2675 = vmatpush.msra.mxu0 0.0
    %2676 = vmatpush.msra.mxu0 0.0
    %2677 = vmatpush.msra.mxu0 0.0
    %2678 = vmatpush.msra.mxu0 0.0
    %2679 = vmatpush.msra.mxu0 0.0
    %2680 = vmatpush.msra.mxu0 0.0
    %2681 = vmatpush.msra.mxu0 %v2663
    %2682 = vmatpush.msra.mxu0 %v2662
    %2683 = vmatpush.msra.mxu0 %v2661
    %2684 = vmatpush.msra.mxu0 %v2660
    %2685 = vmatmul.f32.gmra.mxu0 %v1030
    %v2686 = vpop.f32.mrf.mxu0
    %v2687 = vadd.f32 %v2667, %v2686
    %2688 = vmatmul.f32.gmra.mxu0 %v1033
    %v2689 = vpop.f32.mrf.mxu0
    %v2690 = vadd.f32 %v2667, %v2689
    %2691 = vdwg.mxu0
    %s2692 = scalar_lea.vmem [#allocation4], 160
    %v2693 = vld [vmem:[%s2692] sm:$0xff]
    %v2694 = vld [vmem:[%s2692 + $0x8] sm:$0xff]
    %v2695 = vld [vmem:[%s2692 + $0x10] sm:$0xff]
    %v2696 = vld [vmem:[%s2692 + $0x18] sm:$0xff]
    %s2697 = scalar_lea.vmem %s9, 5
    %v2698 = vld [vmem:[%s2697] sm:$0x1]
    %v2700 = vperm.slane %v2698, 0
    %2702 = vmatpush.msra.mxu0 0.0
    %2703 = vmatpush.msra.mxu0 0.0
    %2704 = vmatpush.msra.mxu0 0.0
    %2705 = vmatpush.msra.mxu0 0.0
    %2706 = vmatpush.msra.mxu0 0.0
    %2707 = vmatpush.msra.mxu0 0.0
    %2708 = vmatpush.msra.mxu0 0.0
    %2709 = vmatpush.msra.mxu0 0.0
    %2710 = vmatpush.msra.mxu0 0.0
    %2711 = vmatpush.msra.mxu0 0.0
    %2712 = vmatpush.msra.mxu0 0.0
    %2713 = vmatpush.msra.mxu0 0.0
    %2714 = vmatpush.msra.mxu0 %v2696
    %2715 = vmatpush.msra.mxu0 %v2695
    %2716 = vmatpush.msra.mxu0 %v2694
    %2717 = vmatpush.msra.mxu0 %v2693
    %2718 = vmatmul.f32.gmra.mxu0 %v1030
    %v2719 = vpop.f32.mrf.mxu0
    %v2720 = vadd.f32 %v2700, %v2719
    %2721 = vmatmul.f32.gmra.mxu0 %v1033
    %v2722 = vpop.f32.mrf.mxu0
    %v2723 = vadd.f32 %v2700, %v2722
    %2724 = vdwg.mxu0
    %s2725 = scalar_lea.vmem [#allocation6], 32
    %v2726 = vld [vmem:[%s2725] sm:$0xff]
    %v2727 = vld [vmem:[%s2725 + $0x8] sm:$0xff]
    %v2728 = vld [vmem:[%s2725 + $0x10] sm:$0xff]
    %v2729 = vld [vmem:[%s2725 + $0x18] sm:$0xff]
    %s2730 = scalar_lea.vmem %s11, 1
    %v2731 = vld [vmem:[%s2730] sm:$0x1]
    %v2733 = vsel %vm336, %v2654, 0
    %v2736 = vsel %vm336, %v2687, 0
    %2738 = vmatpush.xpose.msra.mxu0 0.0
    %2739 = vmatpush.xpose.msra.mxu0 0.0
    %2740 = vmatpush.xpose.msra.mxu0 0.0
    %2741 = vmatpush.xpose.msra.mxu0 0.0
    %2742 = vmatpush.xpose.msra.mxu0 0.0
    %2743 = vmatpush.xpose.msra.mxu0 0.0
    %2744 = vmatpush.xpose.msra.mxu0 0.0
    %2745 = vmatpush.xpose.msra.mxu0 0.0
    %2746 = vmatpush.xpose.msra.mxu0 0.0
    %2747 = vmatpush.xpose.msra.mxu0 0.0
    %2748 = vmatpush.xpose.msra.mxu0 0.0
    %2749 = vmatpush.xpose.msra.mxu0 0.0
    %2750 = vmatpush.xpose.msra.mxu0 0.0
    %2751 = vmatpush.xpose.msra.mxu0 0.0
    %2752 = vmatpush.xpose.msra.mxu0 0.0
    %2753 = vmatpush.xpose.msra.mxu0 %v2736
    %2754 = vmatmul.f32.gmra.mxu0 %v2733
    %v2755 = vpop.f32.mrf.mxu0
    %v2756 = vadd.f32 0.0, %v2755
    %2757 = vdwg.mxu0
    %v2759 = vsel %vm336, %v2657, 0
    %v2762 = vsel %vm336, %v2690, 0
    %2764 = vmatpush.xpose.msra.mxu0 0.0
    %2765 = vmatpush.xpose.msra.mxu0 0.0
    %2766 = vmatpush.xpose.msra.mxu0 0.0
    %2767 = vmatpush.xpose.msra.mxu0 0.0
    %2768 = vmatpush.xpose.msra.mxu0 0.0
    %2769 = vmatpush.xpose.msra.mxu0 0.0
    %2770 = vmatpush.xpose.msra.mxu0 0.0
    %2771 = vmatpush.xpose.msra.mxu0 0.0
    %2772 = vmatpush.xpose.msra.mxu0 0.0
    %2773 = vmatpush.xpose.msra.mxu0 0.0
    %2774 = vmatpush.xpose.msra.mxu0 0.0
    %2775 = vmatpush.xpose.msra.mxu0 0.0
    %2776 = vmatpush.xpose.msra.mxu0 0.0
    %2777 = vmatpush.xpose.msra.mxu0 0.0
    %2778 = vmatpush.xpose.msra.mxu0 0.0
    %2779 = vmatpush.xpose.msra.mxu0 %v2762
    %2780 = vmatmul.f32.gmra.mxu0 %v2759
    %v2781 = vpop.f32.mrf.mxu0
    %v2782 = vadd.f32 0.0, %v2781
    %2783 = vdwg.mxu0
    %v2784 = vsel %vm336, %v2756, -inf
    %2785 = vmax.xlane.f32.xlu0 %v2784
    %v2786 = vpop.xlane.xlu0 %2785
    %v2787 = vsel %vm336, %v2782, -inf
    %2788 = vmax.xlane.f32.xlu0 %v2787
    %v2789 = vpop.xlane.xlu0 %2788
    %v2790 = vsub.f32 %v2756, %v2786
    %v2791 = vsub.f32 %v2782, %v2789
    %v2792 = vmul.f32 %v2790, 1.442695
    %v2793 = vpow.pop %v2792
    %v2794 = vmul.f32 %v2791, 1.442695
    %v2795 = vpow.pop %v2794
    %v2796 = vsel %vm336, %v2793, 0.0
    %2797 = vadd.xlane.f32.xlu0 %v2796
    %v2798 = vpop.xlane.xlu0 %2797
    %v2799 = vsel %vm336, %v2795, 0.0
    %2800 = vadd.xlane.f32.xlu0 %v2799
    %v2801 = vpop.xlane.xlu0 %2800
    %v2802 = vrcp.pop %v2798
    %v2803 = vrcp.pop %v2801
    %v2804 = vmul.f32 %v2793, %v2802
    %v2805 = vmul.f32 %v2795, %v2803
    %v2807 = vsel %vm336, %v2804, 0
    %2809 = vmatpush.msra.mxu0 0.0
    %2810 = vmatpush.msra.mxu0 0.0
    %2811 = vmatpush.msra.mxu0 0.0
    %2812 = vmatpush.msra.mxu0 0.0
    %2813 = vmatpush.msra.mxu0 0.0
    %2814 = vmatpush.msra.mxu0 0.0
    %2815 = vmatpush.msra.mxu0 0.0
    %2816 = vmatpush.msra.mxu0 0.0
    %2817 = vmatpush.msra.mxu0 0.0
    %2818 = vmatpush.msra.mxu0 0.0
    %2819 = vmatpush.msra.mxu0 0.0
    %2820 = vmatpush.msra.mxu0 0.0
    %2821 = vmatpush.msra.mxu0 0.0
    %2822 = vmatpush.msra.mxu0 0.0
    %2823 = vmatpush.msra.mxu0 0.0
    %2824 = vmatpush.msra.mxu0 %v2720
    %2825 = vmatmul.f32.gmra.mxu0 %v2807
    %v2826 = vpop.f32.mrf.mxu0
    %v2827 = vadd.f32 0.0, %v2826
    %2828 = vdwg.mxu0
    %v2830 = vsel %vm336, %v2805, 0
    %2832 = vmatpush.msra.mxu0 0.0
    %2833 = vmatpush.msra.mxu0 0.0
    %2834 = vmatpush.msra.mxu0 0.0
    %2835 = vmatpush.msra.mxu0 0.0
    %2836 = vmatpush.msra.mxu0 0.0
    %2837 = vmatpush.msra.mxu0 0.0
    %2838 = vmatpush.msra.mxu0 0.0
    %2839 = vmatpush.msra.mxu0 0.0
    %2840 = vmatpush.msra.mxu0 0.0
    %2841 = vmatpush.msra.mxu0 0.0
    %2842 = vmatpush.msra.mxu0 0.0
    %2843 = vmatpush.msra.mxu0 0.0
    %2844 = vmatpush.msra.mxu0 0.0
    %2845 = vmatpush.msra.mxu0 0.0
    %2846 = vmatpush.msra.mxu0 0.0
    %2847 = vmatpush.msra.mxu0 %v2723
    %2848 = vmatmul.f32.gmra.mxu0 %v2830
    %v2849 = vpop.f32.mrf.mxu0
    %v2850 = vadd.f32 0.0, %v2849
    %2851 = vdwg.mxu0
    %2852 = vrot.lane.b32.xlu0 %v2654, 120
    %v2853 = vpop.permute.xlu0 %2852
    %2854 = vrot.lane.b32.xlu0 %v2687, 120
    %v2855 = vpop.permute.xlu0 %2854
    %v2856 = vsel %vm336, %v2853, 0
    %v2858 = vsel %vm336, %v2855, 0
    %2860 = vmatpush.xpose.msra.mxu0 0.0
    %2861 = vmatpush.xpose.msra.mxu0 0.0
    %2862 = vmatpush.xpose.msra.mxu0 0.0
    %2863 = vmatpush.xpose.msra.mxu0 0.0
    %2864 = vmatpush.xpose.msra.mxu0 0.0
    %2865 = vmatpush.xpose.msra.mxu0 0.0
    %2866 = vmatpush.xpose.msra.mxu0 0.0
    %2867 = vmatpush.xpose.msra.mxu0 0.0
    %2868 = vmatpush.xpose.msra.mxu0 0.0
    %2869 = vmatpush.xpose.msra.mxu0 0.0
    %2870 = vmatpush.xpose.msra.mxu0 0.0
    %2871 = vmatpush.xpose.msra.mxu0 0.0
    %2872 = vmatpush.xpose.msra.mxu0 0.0
    %2873 = vmatpush.xpose.msra.mxu0 0.0
    %2874 = vmatpush.xpose.msra.mxu0 0.0
    %2875 = vmatpush.xpose.msra.mxu0 %v2858
    %2876 = vmatmul.f32.gmra.mxu0 %v2856
    %v2877 = vpop.f32.mrf.mxu0
    %v2878 = vadd.f32 0.0, %v2877
    %2879 = vdwg.mxu0
    %2880 = vrot.lane.b32.xlu0 %v2657, 120
    %v2881 = vpop.permute.xlu0 %2880
    %2882 = vrot.lane.b32.xlu0 %v2690, 120
    %v2883 = vpop.permute.xlu0 %2882
    %v2884 = vsel %vm336, %v2881, 0
    %v2886 = vsel %vm336, %v2883, 0
    %2888 = vmatpush.xpose.msra.mxu0 0.0
    %2889 = vmatpush.xpose.msra.mxu0 0.0
    %2890 = vmatpush.xpose.msra.mxu0 0.0
    %2891 = vmatpush.xpose.msra.mxu0 0.0
    %2892 = vmatpush.xpose.msra.mxu0 0.0
    %2893 = vmatpush.xpose.msra.mxu0 0.0
    %2894 = vmatpush.xpose.msra.mxu0 0.0
    %2895 = vmatpush.xpose.msra.mxu0 0.0
    %2896 = vmatpush.xpose.msra.mxu0 0.0
    %2897 = vmatpush.xpose.msra.mxu0 0.0
    %2898 = vmatpush.xpose.msra.mxu0 0.0
    %2899 = vmatpush.xpose.msra.mxu0 0.0
    %2900 = vmatpush.xpose.msra.mxu0 0.0
    %2901 = vmatpush.xpose.msra.mxu0 0.0
    %2902 = vmatpush.xpose.msra.mxu0 0.0
    %2903 = vmatpush.xpose.msra.mxu0 %v2886
    %2904 = vmatmul.f32.gmra.mxu0 %v2884
    %v2905 = vpop.f32.mrf.mxu0
    %v2906 = vadd.f32 0.0, %v2905
    %2907 = vdwg.mxu0
    %v2908 = vsel %vm336, %v2878, -inf
    %2909 = vmax.xlane.f32.xlu0 %v2908
    %v2910 = vpop.xlane.xlu0 %2909
    %v2911 = vsel %vm336, %v2906, -inf
    %2912 = vmax.xlane.f32.xlu0 %v2911
    %v2913 = vpop.xlane.xlu0 %2912
    %v2914 = vsub.f32 %v2878, %v2910
    %v2915 = vsub.f32 %v2906, %v2913
    %v2916 = vmul.f32 %v2914, 1.442695
    %v2917 = vpow.pop %v2916
    %v2918 = vmul.f32 %v2915, 1.442695
    %v2919 = vpow.pop %v2918
    %v2920 = vsel %vm336, %v2917, 0.0
    %2921 = vadd.xlane.f32.xlu0 %v2920
    %v2922 = vpop.xlane.xlu0 %2921
    %v2923 = vsel %vm336, %v2919, 0.0
    %2924 = vadd.xlane.f32.xlu0 %v2923
    %v2925 = vpop.xlane.xlu0 %2924
    %v2926 = vrcp.pop %v2922
    %v2927 = vrcp.pop %v2925
    %v2928 = vmul.f32 %v2917, %v2926
    %v2929 = vmul.f32 %v2919, %v2927
    %2931 = vrot.lane.b32.xlu0 %v2720, 120
    %v2932 = vpop.permute.xlu0 %2931
    %v2935 = vsel %vm336, %v2928, 0
    %2937 = vmatpush.msra.mxu0 0.0
    %2938 = vmatpush.msra.mxu0 0.0
    %2939 = vmatpush.msra.mxu0 0.0
    %2940 = vmatpush.msra.mxu0 0.0
    %2941 = vmatpush.msra.mxu0 0.0
    %2942 = vmatpush.msra.mxu0 0.0
    %2943 = vmatpush.msra.mxu0 0.0
    %2944 = vmatpush.msra.mxu0 0.0
    %2945 = vmatpush.msra.mxu0 0.0
    %2946 = vmatpush.msra.mxu0 0.0
    %2947 = vmatpush.msra.mxu0 0.0
    %2948 = vmatpush.msra.mxu0 0.0
    %2949 = vmatpush.msra.mxu0 0.0
    %2950 = vmatpush.msra.mxu0 0.0
    %2951 = vmatpush.msra.mxu0 0.0
    %2952 = vmatpush.msra.mxu0 %v2932
    %2953 = vmatmul.f32.gmra.mxu0 %v2935
    %v2954 = vpop.f32.mrf.mxu0
    %v2955 = vadd.f32 0.0, %v2954
    %2956 = vdwg.mxu0
    %2958 = vrot.lane.b32.xlu0 %v2723, 120
    %v2959 = vpop.permute.xlu0 %2958
    %v2962 = vsel %vm336, %v2929, 0
    %2964 = vmatpush.msra.mxu0 0.0
    %2965 = vmatpush.msra.mxu0 0.0
    %2966 = vmatpush.msra.mxu0 0.0
    %2967 = vmatpush.msra.mxu0 0.0
    %2968 = vmatpush.msra.mxu0 0.0
    %2969 = vmatpush.msra.mxu0 0.0
    %2970 = vmatpush.msra.mxu0 0.0
    %2971 = vmatpush.msra.mxu0 0.0
    %2972 = vmatpush.msra.mxu0 0.0
    %2973 = vmatpush.msra.mxu0 0.0
    %2974 = vmatpush.msra.mxu0 0.0
    %2975 = vmatpush.msra.mxu0 0.0
    %2976 = vmatpush.msra.mxu0 0.0
    %2977 = vmatpush.msra.mxu0 0.0
    %2978 = vmatpush.msra.mxu0 0.0
    %2979 = vmatpush.msra.mxu0 %v2959
    %2980 = vmatmul.f32.gmra.mxu0 %v2962
    %v2981 = vpop.f32.mrf.mxu0
    %v2982 = vadd.f32 0.0, %v2981
    %2983 = vdwg.mxu0
    %2984 = vrot.lane.b32.xlu0 %v2654, 112
    %v2985 = vpop.permute.xlu0 %2984
    %2986 = vrot.lane.b32.xlu0 %v2687, 112
    %v2987 = vpop.permute.xlu0 %2986
    %v2988 = vsel %vm336, %v2985, 0
    %v2990 = vsel %vm336, %v2987, 0
    %2992 = vmatpush.xpose.msra.mxu0 0.0
    %2993 = vmatpush.xpose.msra.mxu0 0.0
    %2994 = vmatpush.xpose.msra.mxu0 0.0
    %2995 = vmatpush.xpose.msra.mxu0 0.0
    %2996 = vmatpush.xpose.msra.mxu0 0.0
    %2997 = vmatpush.xpose.msra.mxu0 0.0
    %2998 = vmatpush.xpose.msra.mxu0 0.0
    %2999 = vmatpush.xpose.msra.mxu0 0.0
    %3000 = vmatpush.xpose.msra.mxu0 0.0
    %3001 = vmatpush.xpose.msra.mxu0 0.0
    %3002 = vmatpush.xpose.msra.mxu0 0.0
    %3003 = vmatpush.xpose.msra.mxu0 0.0
    %3004 = vmatpush.xpose.msra.mxu0 0.0
    %3005 = vmatpush.xpose.msra.mxu0 0.0
    %3006 = vmatpush.xpose.msra.mxu0 0.0
    %3007 = vmatpush.xpose.msra.mxu0 %v2990
    %3008 = vmatmul.f32.gmra.mxu0 %v2988
    %v3009 = vpop.f32.mrf.mxu0
    %v3010 = vadd.f32 0.0, %v3009
    %3011 = vdwg.mxu0
    %3012 = vrot.lane.b32.xlu0 %v2657, 112
    %v3013 = vpop.permute.xlu0 %3012
    %3014 = vrot.lane.b32.xlu0 %v2690, 112
    %v3015 = vpop.permute.xlu0 %3014
    %v3016 = vsel %vm336, %v3013, 0
    %v3018 = vsel %vm336, %v3015, 0
    %3020 = vmatpush.xpose.msra.mxu0 0.0
    %3021 = vmatpush.xpose.msra.mxu0 0.0
    %3022 = vmatpush.xpose.msra.mxu0 0.0
    %3023 = vmatpush.xpose.msra.mxu0 0.0
    %3024 = vmatpush.xpose.msra.mxu0 0.0
    %3025 = vmatpush.xpose.msra.mxu0 0.0
    %3026 = vmatpush.xpose.msra.mxu0 0.0
    %3027 = vmatpush.xpose.msra.mxu0 0.0
    %3028 = vmatpush.xpose.msra.mxu0 0.0
    %3029 = vmatpush.xpose.msra.mxu0 0.0
    %3030 = vmatpush.xpose.msra.mxu0 0.0
    %3031 = vmatpush.xpose.msra.mxu0 0.0
    %3032 = vmatpush.xpose.msra.mxu0 0.0
    %3033 = vmatpush.xpose.msra.mxu0 0.0
    %3034 = vmatpush.xpose.msra.mxu0 0.0
    %3035 = vmatpush.xpose.msra.mxu0 %v3018
    %3036 = vmatmul.f32.gmra.mxu0 %v3016
    %v3037 = vpop.f32.mrf.mxu0
    %v3038 = vadd.f32 0.0, %v3037
    %3039 = vdwg.mxu0
    %v3040 = vsel %vm336, %v3010, -inf
    %3041 = vmax.xlane.f32.xlu0 %v3040
    %v3042 = vpop.xlane.xlu0 %3041
    %v3043 = vsel %vm336, %v3038, -inf
    %3044 = vmax.xlane.f32.xlu0 %v3043
    %v3045 = vpop.xlane.xlu0 %3044
    %v3046 = vsub.f32 %v3010, %v3042
    %v3047 = vsub.f32 %v3038, %v3045
    %v3048 = vmul.f32 %v3046, 1.442695
    %v3049 = vpow.pop %v3048
    %v3050 = vmul.f32 %v3047, 1.442695
    %v3051 = vpow.pop %v3050
    %v3052 = vsel %vm336, %v3049, 0.0
    %3053 = vadd.xlane.f32.xlu0 %v3052
    %v3054 = vpop.xlane.xlu0 %3053
    %v3055 = vsel %vm336, %v3051, 0.0
    %3056 = vadd.xlane.f32.xlu0 %v3055
    %v3057 = vpop.xlane.xlu0 %3056
    %v3058 = vrcp.pop %v3054
    %v3059 = vrcp.pop %v3057
    %v3060 = vmul.f32 %v3049, %v3058
    %v3061 = vmul.f32 %v3051, %v3059
    %3062 = vrot.lane.b32.xlu0 %v2720, 112
    %v3063 = vpop.permute.xlu0 %3062
    %v3066 = vsel %vm336, %v3060, 0
    %3068 = vmatpush.msra.mxu0 0.0
    %3069 = vmatpush.msra.mxu0 0.0
    %3070 = vmatpush.msra.mxu0 0.0
    %3071 = vmatpush.msra.mxu0 0.0
    %3072 = vmatpush.msra.mxu0 0.0
    %3073 = vmatpush.msra.mxu0 0.0
    %3074 = vmatpush.msra.mxu0 0.0
    %3075 = vmatpush.msra.mxu0 0.0
    %3076 = vmatpush.msra.mxu0 0.0
    %3077 = vmatpush.msra.mxu0 0.0
    %3078 = vmatpush.msra.mxu0 0.0
    %3079 = vmatpush.msra.mxu0 0.0
    %3080 = vmatpush.msra.mxu0 0.0
    %3081 = vmatpush.msra.mxu0 0.0
    %3082 = vmatpush.msra.mxu0 0.0
    %3083 = vmatpush.msra.mxu0 %v3063
    %3084 = vmatmul.f32.gmra.mxu0 %v3066
    %v3085 = vpop.f32.mrf.mxu0
    %v3086 = vadd.f32 0.0, %v3085
    %3087 = vdwg.mxu0
    %3088 = vrot.lane.b32.xlu0 %v2723, 112
    %v3089 = vpop.permute.xlu0 %3088
    %v3092 = vsel %vm336, %v3061, 0
    %3094 = vmatpush.msra.mxu0 0.0
    %3095 = vmatpush.msra.mxu0 0.0
    %3096 = vmatpush.msra.mxu0 0.0
    %3097 = vmatpush.msra.mxu0 0.0
    %3098 = vmatpush.msra.mxu0 0.0
    %3099 = vmatpush.msra.mxu0 0.0
    %3100 = vmatpush.msra.mxu0 0.0
    %3101 = vmatpush.msra.mxu0 0.0
    %3102 = vmatpush.msra.mxu0 0.0
    %3103 = vmatpush.msra.mxu0 0.0
    %3104 = vmatpush.msra.mxu0 0.0
    %3105 = vmatpush.msra.mxu0 0.0
    %3106 = vmatpush.msra.mxu0 0.0
    %3107 = vmatpush.msra.mxu0 0.0
    %3108 = vmatpush.msra.mxu0 0.0
    %3109 = vmatpush.msra.mxu0 %v3089
    %3110 = vmatmul.f32.gmra.mxu0 %v3092
    %v3111 = vpop.f32.mrf.mxu0
    %v3112 = vadd.f32 0.0, %v3111
    %3113 = vdwg.mxu0
    %3114 = vrot.lane.b32.xlu0 %v2654, 104
    %v3115 = vpop.permute.xlu0 %3114
    %3116 = vrot.lane.b32.xlu0 %v2687, 104
    %v3117 = vpop.permute.xlu0 %3116
    %v3118 = vsel %vm336, %v3115, 0
    %v3120 = vsel %vm336, %v3117, 0
    %3122 = vmatpush.xpose.msra.mxu0 0.0
    %3123 = vmatpush.xpose.msra.mxu0 0.0
    %3124 = vmatpush.xpose.msra.mxu0 0.0
    %3125 = vmatpush.xpose.msra.mxu0 0.0
    %3126 = vmatpush.xpose.msra.mxu0 0.0
    %3127 = vmatpush.xpose.msra.mxu0 0.0
    %3128 = vmatpush.xpose.msra.mxu0 0.0
    %3129 = vmatpush.xpose.msra.mxu0 0.0
    %3130 = vmatpush.xpose.msra.mxu0 0.0
    %3131 = vmatpush.xpose.msra.mxu0 0.0
    %3132 = vmatpush.xpose.msra.mxu0 0.0
    %3133 = vmatpush.xpose.msra.mxu0 0.0
    %3134 = vmatpush.xpose.msra.mxu0 0.0
    %3135 = vmatpush.xpose.msra.mxu0 0.0
    %3136 = vmatpush.xpose.msra.mxu0 0.0
    %3137 = vmatpush.xpose.msra.mxu0 %v3120
    %3138 = vmatmul.f32.gmra.mxu0 %v3118
    %v3139 = vpop.f32.mrf.mxu0
    %v3140 = vadd.f32 0.0, %v3139
    %3141 = vdwg.mxu0
    %3142 = vrot.lane.b32.xlu0 %v2657, 104
    %v3143 = vpop.permute.xlu0 %3142
    %3144 = vrot.lane.b32.xlu0 %v2690, 104
    %v3145 = vpop.permute.xlu0 %3144
    %v3146 = vsel %vm336, %v3143, 0
    %v3148 = vsel %vm336, %v3145, 0
    %3150 = vmatpush.xpose.msra.mxu0 0.0
    %3151 = vmatpush.xpose.msra.mxu0 0.0
    %3152 = vmatpush.xpose.msra.mxu0 0.0
    %3153 = vmatpush.xpose.msra.mxu0 0.0
    %3154 = vmatpush.xpose.msra.mxu0 0.0
    %3155 = vmatpush.xpose.msra.mxu0 0.0
    %3156 = vmatpush.xpose.msra.mxu0 0.0
    %3157 = vmatpush.xpose.msra.mxu0 0.0
    %3158 = vmatpush.xpose.msra.mxu0 0.0
    %3159 = vmatpush.xpose.msra.mxu0 0.0
    %3160 = vmatpush.xpose.msra.mxu0 0.0
    %3161 = vmatpush.xpose.msra.mxu0 0.0
    %3162 = vmatpush.xpose.msra.mxu0 0.0
    %3163 = vmatpush.xpose.msra.mxu0 0.0
    %3164 = vmatpush.xpose.msra.mxu0 0.0
    %3165 = vmatpush.xpose.msra.mxu0 %v3148
    %3166 = vmatmul.f32.gmra.mxu0 %v3146
    %v3167 = vpop.f32.mrf.mxu0
    %v3168 = vadd.f32 0.0, %v3167
    %3169 = vdwg.mxu0
    %v3170 = vsel %vm336, %v3140, -inf
    %3171 = vmax.xlane.f32.xlu0 %v3170
    %v3172 = vpop.xlane.xlu0 %3171
    %v3173 = vsel %vm336, %v3168, -inf
    %3174 = vmax.xlane.f32.xlu0 %v3173
    %v3175 = vpop.xlane.xlu0 %3174
    %v3176 = vsub.f32 %v3140, %v3172
    %v3177 = vsub.f32 %v3168, %v3175
    %v3178 = vmul.f32 %v3176, 1.442695
    %v3179 = vpow.pop %v3178
    %v3180 = vmul.f32 %v3177, 1.442695
    %v3181 = vpow.pop %v3180
    %v3182 = vsel %vm336, %v3179, 0.0
    %3183 = vadd.xlane.f32.xlu0 %v3182
    %v3184 = vpop.xlane.xlu0 %3183
    %v3185 = vsel %vm336, %v3181, 0.0
    %3186 = vadd.xlane.f32.xlu0 %v3185
    %v3187 = vpop.xlane.xlu0 %3186
    %v3188 = vrcp.pop %v3184
    %v3189 = vrcp.pop %v3187
    %v3190 = vmul.f32 %v3179, %v3188
    %v3191 = vmul.f32 %v3181, %v3189
    %3192 = vrot.lane.b32.xlu0 %v2720, 104
    %v3193 = vpop.permute.xlu0 %3192
    %v3196 = vsel %vm336, %v3190, 0
    %3198 = vmatpush.msra.mxu0 0.0
    %3199 = vmatpush.msra.mxu0 0.0
    %3200 = vmatpush.msra.mxu0 0.0
    %3201 = vmatpush.msra.mxu0 0.0
    %3202 = vmatpush.msra.mxu0 0.0
    %3203 = vmatpush.msra.mxu0 0.0
    %3204 = vmatpush.msra.mxu0 0.0
    %3205 = vmatpush.msra.mxu0 0.0
    %3206 = vmatpush.msra.mxu0 0.0
    %3207 = vmatpush.msra.mxu0 0.0
    %3208 = vmatpush.msra.mxu0 0.0
    %3209 = vmatpush.msra.mxu0 0.0
    %3210 = vmatpush.msra.mxu0 0.0
    %3211 = vmatpush.msra.mxu0 0.0
    %3212 = vmatpush.msra.mxu0 0.0
    %3213 = vmatpush.msra.mxu0 %v3193
    %3214 = vmatmul.f32.gmra.mxu0 %v3196
    %v3215 = vpop.f32.mrf.mxu0
    %v3216 = vadd.f32 0.0, %v3215
    %3217 = vdwg.mxu0
    %3218 = vrot.lane.b32.xlu0 %v2723, 104
    %v3219 = vpop.permute.xlu0 %3218
    %v3222 = vsel %vm336, %v3191, 0
    %3224 = vmatpush.msra.mxu0 0.0
    %3225 = vmatpush.msra.mxu0 0.0
    %3226 = vmatpush.msra.mxu0 0.0
    %3227 = vmatpush.msra.mxu0 0.0
    %3228 = vmatpush.msra.mxu0 0.0
    %3229 = vmatpush.msra.mxu0 0.0
    %3230 = vmatpush.msra.mxu0 0.0
    %3231 = vmatpush.msra.mxu0 0.0
    %3232 = vmatpush.msra.mxu0 0.0
    %3233 = vmatpush.msra.mxu0 0.0
    %3234 = vmatpush.msra.mxu0 0.0
    %3235 = vmatpush.msra.mxu0 0.0
    %3236 = vmatpush.msra.mxu0 0.0
    %3237 = vmatpush.msra.mxu0 0.0
    %3238 = vmatpush.msra.mxu0 0.0
    %3239 = vmatpush.msra.mxu0 %v3219
    %3240 = vmatmul.f32.gmra.mxu0 %v3222
    %v3241 = vpop.f32.mrf.mxu0
    %v3242 = vadd.f32 0.0, %v3241
    %3243 = vdwg.mxu0
    %3246 = vrot.lane.b32.xlu0 %v2955, 8
    %v3247 = vpop.permute.xlu0 %3246
    %3248 = vrot.lane.b32.xlu0 %v2982, 8
    %v3249 = vpop.permute.xlu0 %3248
    %3254 = vrot.lane.b32.xlu0 %v3086, 16
    %v3255 = vpop.permute.xlu0 %3254
    %3256 = vrot.lane.b32.xlu0 %v3112, 16
    %v3257 = vpop.permute.xlu0 %3256
    %3262 = vrot.lane.b32.xlu0 %v3216, 24
    %v3263 = vpop.permute.xlu0 %3262
    %3264 = vrot.lane.b32.xlu0 %v3242, 24
    %v3265 = vpop.permute.xlu0 %3264
    %v3268 = vsel %vm336, %v2827, %v3247
    %v3269 = vsel %vm336, %v2850, %v3249
    %v3270 = vsel %vm875, %v3268, %v3255
    %v3271 = vsel %vm875, %v3269, %v3257
    %v3272 = vsel %vm878, %v3270, %v3263
    %v3273 = vsel %vm878, %v3271, %v3265
    %v3275 = vperm.slane %v2731, 0
    %v3278 = vsel %vm235, %v3272, 0
    %v3281 = vsel %vm235, %v3273, 0
    %3283 = vmatpush.msra.mxu0 0.0
    %3284 = vmatpush.msra.mxu0 0.0
    %3285 = vmatpush.msra.mxu0 0.0
    %3286 = vmatpush.msra.mxu0 0.0
    %3287 = vmatpush.msra.mxu0 0.0
    %3288 = vmatpush.msra.mxu0 0.0
    %3289 = vmatpush.msra.mxu0 0.0
    %3290 = vmatpush.msra.mxu0 0.0
    %3291 = vmatpush.msra.mxu0 0.0
    %3292 = vmatpush.msra.mxu0 0.0
    %3293 = vmatpush.msra.mxu0 0.0
    %3294 = vmatpush.msra.mxu0 0.0
    %3295 = vmatpush.msra.mxu0 %v2729
    %3296 = vmatpush.msra.mxu0 %v2728
    %3297 = vmatpush.msra.mxu0 %v2727
    %3298 = vmatpush.msra.mxu0 %v2726
    %3299 = vmatmul.f32.gmra.mxu0 %v3278
    %v3300 = vpop.f32.mrf.mxu0
    %v3301 = vadd.f32 %v3275, %v3300
    %3302 = vmatmul.f32.gmra.mxu0 %v3281
    %v3303 = vpop.f32.mrf.mxu0
    %v3304 = vadd.f32 %v3275, %v3303
    %3305 = vdwg.mxu0
    %s3306 = scalar_lea.vmem %s14, 1
    %v3307 = vld [vmem:[%s3306] sm:$0x1]
    %s3308 = scalar_lea.vmem %s15, 1
    %v3309 = vld [vmem:[%s3308] sm:$0x1]
    %v3310 = vadd.f32 %v2618, %v3301
    %v3311 = vadd.f32 %v2619, %v3304
    %v3312 = vsel %vm235, %v3310, 0.0
    %3313 = vadd.xlane.f32.xlu0 %v3312
    %v3314 = vpop.xlane.xlu0 %3313
    %v3315 = vsel %vm235, %v3311, 0.0
    %3316 = vadd.xlane.f32.xlu0 %v3315
    %v3317 = vpop.xlane.xlu0 %3316
    %v3318 = vmul.f32 %v3314, %v929
    %v3319 = vmul.f32 %v3317, %v929
    %v3320 = vmul.f32 %v3310, %v3310
    %v3321 = vmul.f32 %v3311, %v3311
    %v3322 = vsel %vm235, %v3320, 0.0
    %3323 = vadd.xlane.f32.xlu0 %v3322
    %v3324 = vpop.xlane.xlu0 %3323
    %v3325 = vsel %vm235, %v3321, 0.0
    %3326 = vadd.xlane.f32.xlu0 %v3325
    %v3327 = vpop.xlane.xlu0 %3326
    %v3328 = vmul.f32 %v3324, %v929
    %v3329 = vmul.f32 %v3327, %v929
    %v3330 = vmul.f32 %v3318, %v3318
    %v3331 = vmul.f32 %v3319, %v3319
    %v3332 = vsub.f32 %v3328, %v3330
    %v3333 = vsub.f32 %v3329, %v3331
    %v3334 = vsub.f32 %v3310, %v3318
    %v3335 = vsub.f32 %v3311, %v3319
    %v3336 = vadd.f32 %v3332, 1e-05
    %v3337 = vadd.f32 %v3333, 1e-05
    %v3338 = vrsqrt.pop %v3336
    %v3339 = vmul.f32 %v3338, %v3336
    %v3340 = vmul.f32 %v3339, %v3338
    %v3341 = vmul.f32 0.5, %v3340
    %v3342 = vsub.f32 1.5, %v3341
    %v3343 = vmul.f32 %v3338, %v3342
    %vm3344 = vweird.f32 %v3336
    %vm3345 = vweird.f32 %v3338
    %vm3346 = vmor %vm3344, %vm3345
    %v3347 = vsel %vm3346, %v3338, %v3343
    %v3348 = vrsqrt.pop %v3337
    %v3349 = vmul.f32 %v3348, %v3337
    %v3350 = vmul.f32 %v3349, %v3348
    %v3351 = vmul.f32 0.5, %v3350
    %v3352 = vsub.f32 1.5, %v3351
    %v3353 = vmul.f32 %v3348, %v3352
    %vm3354 = vweird.f32 %v3337
    %vm3355 = vweird.f32 %v3348
    %vm3356 = vmor %vm3354, %vm3355
    %v3357 = vsel %vm3356, %v3348, %v3353
    %v3358 = vmul.f32 %v3334, %v3347
    %v3359 = vmul.f32 %v3335, %v3357
    %v3361 = vperm.slane %v3307, 0
    %v3363 = vmul.f32 %v3358, %v3361
    %v3364 = vmul.f32 %v3359, %v3361
    %v3366 = vperm.slane %v3309, 0
    %v3368 = vadd.f32 %v3363, %v3366
    %v3369 = vadd.f32 %v3364, %v3366
    %s3370 = scalar_lea.vmem [#allocation7], 32
    %v3371 = vld [vmem:[%s3370] sm:$0xff]
    %v3372 = vld [vmem:[%s3370 + $0x8] sm:$0xff]
    %v3373 = vld [vmem:[%s3370 + $0x10] sm:$0xff]
    %v3374 = vld [vmem:[%s3370 + $0x18] sm:$0xff]
    %s3375 = scalar_lea.vmem %s19, 1
    %v3376 = vld [vmem:[%s3375] sm:$0x1]
    %v3378 = vperm.slane %v3376, 0
    %v3381 = vsel %vm235, %v3368, 0
    %v3384 = vsel %vm235, %v3369, 0
    %3386 = vmatpush.msra.mxu0 0.0
    %3387 = vmatpush.msra.mxu0 0.0
    %3388 = vmatpush.msra.mxu0 0.0
    %3389 = vmatpush.msra.mxu0 0.0
    %3390 = vmatpush.msra.mxu0 0.0
    %3391 = vmatpush.msra.mxu0 0.0
    %3392 = vmatpush.msra.mxu0 0.0
    %3393 = vmatpush.msra.mxu0 0.0
    %3394 = vmatpush.msra.mxu0 0.0
    %3395 = vmatpush.msra.mxu0 0.0
    %3396 = vmatpush.msra.mxu0 0.0
    %3397 = vmatpush.msra.mxu0 0.0
    %3398 = vmatpush.msra.mxu0 %v3374
    %3399 = vmatpush.msra.mxu0 %v3373
    %3400 = vmatpush.msra.mxu0 %v3372
    %3401 = vmatpush.msra.mxu0 %v3371
    %3402 = vmatmul.f32.gmra.mxu0 %v3381
    %v3403 = vpop.f32.mrf.mxu0
    %v3404 = vadd.f32 %v3378, %v3403
    %3405 = vmatmul.f32.gmra.mxu0 %v3384
    %v3406 = vpop.f32.mrf.mxu0
    %v3407 = vadd.f32 %v3378, %v3406
    %3408 = vdwg.mxu0
    %v3409 = vmax.f32 %v3404, 0.0
    %v3410 = vmax.f32 %v3407, 0.0
    %s3411 = scalar_lea.vmem [#allocation9], 32
    %v3412 = vld [vmem:[%s3411] sm:$0xff]
    %v3413 = vld [vmem:[%s3411 + $0x8] sm:$0xff]
    %v3414 = vld [vmem:[%s3411 + $0x10] sm:$0xff]
    %v3415 = vld [vmem:[%s3411 + $0x18] sm:$0xff]
    %s3416 = scalar_lea.vmem %s21, 1
    %v3417 = vld [vmem:[%s3416] sm:$0x1]
    %v3419 = vperm.slane %v3417, 0
    %v3422 = vsel %vm235, %v3409, 0
    %v3425 = vsel %vm235, %v3410, 0
    %3427 = vmatpush.msra.mxu0 0.0
    %3428 = vmatpush.msra.mxu0 0.0
    %3429 = vmatpush.msra.mxu0 0.0
    %3430 = vmatpush.msra.mxu0 0.0
    %3431 = vmatpush.msra.mxu0 0.0
    %3432 = vmatpush.msra.mxu0 0.0
    %3433 = vmatpush.msra.mxu0 0.0
    %3434 = vmatpush.msra.mxu0 0.0
    %3435 = vmatpush.msra.mxu0 0.0
    %3436 = vmatpush.msra.mxu0 0.0
    %3437 = vmatpush.msra.mxu0 0.0
    %3438 = vmatpush.msra.mxu0 0.0
    %3439 = vmatpush.msra.mxu0 %v3415
    %3440 = vmatpush.msra.mxu0 %v3414
    %3441 = vmatpush.msra.mxu0 %v3413
    %3442 = vmatpush.msra.mxu0 %v3412
    %3443 = vmatmul.f32.gmra.mxu0 %v3422
    %v3444 = vpop.f32.mrf.mxu0
    %v3445 = vadd.f32 %v3419, %v3444
    %3446 = vmatmul.f32.gmra.mxu0 %v3425
    %v3447 = vpop.f32.mrf.mxu0
    %v3448 = vadd.f32 %v3419, %v3447
    %3449 = vdwg.mxu0
    %s3450 = scalar_lea.vmem %s16, 1
    %v3451 = vld [vmem:[%s3450] sm:$0x1]
    %s3452 = scalar_lea.vmem %s17, 1
    %v3453 = vld [vmem:[%s3452] sm:$0x1]
    %v3454 = vadd.f32 %v3368, %v3445
    %v3455 = vadd.f32 %v3369, %v3448
    %v3456 = vsel %vm235, %v3454, 0.0
    %3457 = vadd.xlane.f32.xlu0 %v3456
    %v3458 = vpop.xlane.xlu0 %3457
    %v3459 = vsel %vm235, %v3455, 0.0
    %3460 = vadd.xlane.f32.xlu0 %v3459
    %v3461 = vpop.xlane.xlu0 %3460
    %v3462 = vmul.f32 %v3458, %v929
    %v3463 = vmul.f32 %v3461, %v929
    %v3464 = vmul.f32 %v3454, %v3454
    %v3465 = vmul.f32 %v3455, %v3455
    %v3466 = vsel %vm235, %v3464, 0.0
    %3467 = vadd.xlane.f32.xlu0 %v3466
    %v3468 = vpop.xlane.xlu0 %3467
    %v3469 = vsel %vm235, %v3465, 0.0
    %3470 = vadd.xlane.f32.xlu0 %v3469
    %v3471 = vpop.xlane.xlu0 %3470
    %v3472 = vmul.f32 %v3468, %v929
    %v3473 = vmul.f32 %v3471, %v929
    %v3474 = vmul.f32 %v3462, %v3462
    %v3475 = vmul.f32 %v3463, %v3463
    %v3476 = vsub.f32 %v3472, %v3474
    %v3477 = vsub.f32 %v3473, %v3475
    %v3478 = vsub.f32 %v3454, %v3462
    %v3479 = vsub.f32 %v3455, %v3463
    %v3480 = vadd.f32 %v3476, 1e-05
    %v3481 = vadd.f32 %v3477, 1e-05
    %v3482 = vrsqrt.pop %v3480
    %v3483 = vmul.f32 %v3482, %v3480
    %v3484 = vmul.f32 %v3483, %v3482
    %v3485 = vmul.f32 0.5, %v3484
    %v3486 = vsub.f32 1.5, %v3485
    %v3487 = vmul.f32 %v3482, %v3486
    %vm3488 = vweird.f32 %v3480
    %vm3489 = vweird.f32 %v3482
    %vm3490 = vmor %vm3488, %vm3489
    %v3491 = vsel %vm3490, %v3482, %v3487
    %v3492 = vrsqrt.pop %v3481
    %v3493 = vmul.f32 %v3492, %v3481
    %v3494 = vmul.f32 %v3493, %v3492
    %v3495 = vmul.f32 0.5, %v3494
    %v3496 = vsub.f32 1.5, %v3495
    %v3497 = vmul.f32 %v3492, %v3496
    %vm3498 = vweird.f32 %v3481
    %vm3499 = vweird.f32 %v3492
    %vm3500 = vmor %vm3498, %vm3499
    %v3501 = vsel %vm3500, %v3492, %v3497
    %v3502 = vmul.f32 %v3478, %v3491
    %v3503 = vmul.f32 %v3479, %v3501
    %v3505 = vperm.slane %v3451, 0
    %v3507 = vmul.f32 %v3502, %v3505
    %v3508 = vmul.f32 %v3503, %v3505
    %v3510 = vperm.slane %v3453, 0
    %v3512 = vadd.f32 %v3507, %v3510
    %v3513 = vadd.f32 %v3508, %v3510
    %v3514 = vld [vmem:[%s22] sm:$0xff]
    %v3515 = vld [vmem:[%s22 + $0x8] sm:$0xff]
    %v3516 = vld [vmem:[%s22 + $0x10] sm:$0xff]
    %v3517 = vld [vmem:[%s22 + $0x18] sm:$0xff]
    %v3518 = vld [vmem:[%s23] sm:$0x1]
    %v3520 = vperm.slane %v3518, 0
    %v3523 = vsel %vm235, %v3512, 0
    %v3526 = vsel %vm235, %v3513, 0
    %3528 = vmatpush.msra.mxu0 0.0
    %3529 = vmatpush.msra.mxu0 0.0
    %3530 = vmatpush.msra.mxu0 0.0
    %3531 = vmatpush.msra.mxu0 0.0
    %3532 = vmatpush.msra.mxu0 0.0
    %3533 = vmatpush.msra.mxu0 0.0
    %3534 = vmatpush.msra.mxu0 0.0
    %3535 = vmatpush.msra.mxu0 0.0
    %3536 = vmatpush.msra.mxu0 0.0
    %3537 = vmatpush.msra.mxu0 0.0
    %3538 = vmatpush.msra.mxu0 0.0
    %3539 = vmatpush.msra.mxu0 0.0
    %3540 = vmatpush.msra.mxu0 %v3517
    %3541 = vmatpush.msra.mxu0 %v3516
    %3542 = vmatpush.msra.mxu0 %v3515
    %3543 = vmatpush.msra.mxu0 %v3514
    %3544 = vmatmul.f32.gmra.mxu0 %v3523
    %v3545 = vpop.f32.mrf.mxu0
    %v3546 = vadd.f32 %v3520, %v3545
    %3547 = vmatmul.f32.gmra.mxu0 %v3526
    %v3548 = vpop.f32.mrf.mxu0
    %v3549 = vadd.f32 %v3520, %v3548
    %3550 = vdwg.mxu0
    %v3551 = vsub.f32 0.0, %v3546
    %v3552 = vsub.f32 0.0, %v3549
    %v3553 = vmul.f32 %v3551, 1.442695
    %v3554 = vpow.pop %v3553
    %v3555 = vmul.f32 %v3552, 1.442695
    %v3556 = vpow.pop %v3555
    %v3557 = vadd.f32 %v3554, 1.0
    %v3558 = vadd.f32 %v3556, 1.0
    %v3559 = vrcp.pop %v3557
    %v3560 = vrcp.pop %v3558
    %3561 = vst.msk [vmem:[%s24] sm:$0xff] %vm162, %v3559
    %3562 = vst.msk [vmem:[%s24 + $0x8] sm:$0xff] %vm162, %v3560
    // Predicated region
    $region118: #{attention_decoder_forward.1} parent=1 // pred_check
      _
    $region119: #{attention_decoder_forward.1} parent=1 // pred_check_branch
      %3564 = sbr.rel (0) target = $region121
    $region120: #{attention_decoder_forward.1} parent=1 // pred_region
      _
    $region121: #{attention_decoder_forward.1} parent=1 // pred_fallthru
      _
    // Predicated region
    $region122: #{attention_decoder_forward.1} parent=1 // pred_check
      _
    $region123: #{attention_decoder_forward.1} parent=1 // pred_check_branch
      %3566 = sbr.rel (0) target = $region125
    $region124: #{attention_decoder_forward.1} parent=1 // pred_region
      _
    $region125: #{attention_decoder_forward.1} parent=1 // pred_fallthru
      _
    %3567 = vsyncpa [#allocation3], 1
    %3568 = vsyncpa [#allocation5], 1
    %3569 = vsyncpa [#allocation8], 1

</llo_original>
